<compile_context>
chip_gen: v6e
topology: v6e:2x2x1
jax: 0.10.0
libtpu: 0.0.40
codegen_flags: <defaults>
</compile_context>

<pallas_src>
import jax
import jax.numpy as jnp
from jax import lax
from jax.experimental import pallas as pl
from jax.experimental.pallas import tpu as pltpu


# ----------------------------------------------------------------------------
# helpers
# ----------------------------------------------------------------------------
def _silu(x):
    # exp -> EUP, approx reciprocal -> EUP slot: keeps the divide off the VALU.
    return x * pl.reciprocal(1.0 + jnp.exp(-x), approx=True)


# ----------------------------------------------------------------------------
# The single fused kernel: one grid step = one batch element, everything VMEM.
# ----------------------------------------------------------------------------
def _make_fused_kernel(Ho, Wo):
    HW = Ho * Wo
    wo_pow2 = (Wo & (Wo - 1)) == 0

    def kernel(cols_ref, sw_ref, sb_ref, ew_ref, eb_ref, dw_ref, db_ref,
               q1w_ref, q1b_ref, q2w_ref, q2b_ref, pw_ref, pb_ref,
               hw_ref, hb_ref, ow_ref, ob_ref, out_ref):
        f32 = jnp.float32

        # --- stem 3x3 s2 conv (im2col columns) + folded-BN bias + SiLU -----
        cols = cols_ref[0].astype(f32)                                    # (HW, 27)
        h = jnp.dot(cols, sw_ref[...], preferred_element_type=f32) + sb_ref[...]
        h = _silu(h)                                                      # (HW, 32)  residual, VMEM only

        # --- MBConv expand 1x1 + SiLU ---------------------------------------
        e = jnp.dot(h, ew_ref[...], preferred_element_type=f32) + eb_ref[...]
        e = _silu(e)                                                      # (HW, 128) VMEM only

        # --- depthwise 3x3 (zero padded) via 9 sublane rolls + iota masks ---
        idx = lax.broadcasted_iota(jnp.int32, (HW, 1), 0)                 # flat spatial index
        if wo_pow2:
            xcol = jnp.bitwise_and(idx, Wo - 1)                           # idx % Wo, no VPU divide
        else:
            xcol = lax.rem(idx, Wo)
        dwt = dw_ref[...].astype(f32)                                     # (9, C)
        C = dwt.shape[1]
        acc = jnp.zeros((HW, C), f32)
        k = 0
        for dy in (-1, 0, 1):
            row_lo = max(0, -dy) * Wo
            row_hi = (Ho - max(0, dy)) * Wo
            for dx in (-1, 0, 1):
                off = dy * Wo + dx
                if off == 0:
                    tap = e
                else:
                    tap = pltpu.roll(e, shift=(-off) % HW, axis=0)        # XLU, free slot
                    rm = jnp.logical_and(idx >= row_lo, idx < row_hi)
                    cm = jnp.logical_and(xcol + dx >= 0, xcol + dx < Wo)
                    tap = jnp.where(jnp.logical_and(rm, cm), tap, 0.0)    # zero padding
                acc = acc + tap * dwt[k:k + 1, :]
                k += 1
        d = _silu(acc + db_ref[...])                                      # (HW, 128) VMEM only

        # --- squeeze-excite: GAP -> FC+SiLU -> FC+sigmoid (exact, tiny) -----
        pooled = jnp.sum(d, axis=0, keepdims=True) * (1.0 / HW)           # (1, C)
        g = jnp.dot(pooled, q1w_ref[...], preferred_element_type=f32) + q1b_ref[...]
        g = _silu(g)                                                      # (1, Cr)
        g = jnp.dot(g, q2w_ref[...], preferred_element_type=f32) + q2b_ref[...]
        gate = 1.0 / (1.0 + jnp.exp(-g))                                  # (1, C) exact sigmoid

        # --- SE scale -> project 1x1 -> residual add ------------------------
        xs = d * gate                                                     # (HW, C)
        pr = jnp.dot(xs, pw_ref[...], preferred_element_type=f32) + pb_ref[...]
        res = pr + h                                                      # (HW, 32) VMEM only

        # --- head 1x1 + SiLU (bf16 MXU operands, f32 acc) -> GAP ------------
        hd = jnp.dot(res.astype(jnp.bfloat16), hw_ref[...],
                     preferred_element_type=f32) + hb_ref[...]
        hd = _silu(hd)                                                    # (HW, 1280) VMEM only
        feat = jnp.sum(hd, axis=0, keepdims=True) * (1.0 / HW)            # (1, 1280)

        # --- classifier: dense3/dense4 collapse to ReLU; Linear(1280, 3) ----
        feat = jnp.maximum(feat, 0.0)
        out_ref[0] = jnp.dot(feat, ow_ref[...], preferred_element_type=f32) + ob_ref[...]

    return kernel


def effnet_fused(cols, p, Ho, Wo):
    B, HW, Kc = cols.shape
    C = p["exp_w"].shape[1]
    Cr = p["se1_w"].shape[1]
    Cp = p["proj_w"].shape[1]
    F = p["head_w"].shape[1]
    NO = p["out_w"].shape[1]

    c2 = lambda b: (0, 0)   # constant-index weight blocks: DMA'd once, not per step
    out = pl.pallas_call(
        _make_fused_kernel(Ho, Wo),
        out_shape=jax.ShapeDtypeStruct((B, 1, NO), jnp.float32),
        grid=(B,),
        in_specs=[
            pl.BlockSpec((1, HW, Kc), lambda b: (b, 0, 0)),   # stem im2col columns
            pl.BlockSpec(p["stem_w"].shape, c2),
            pl.BlockSpec((1, p["stem_b"].shape[0]), c2),
            pl.BlockSpec(p["exp_w"].shape, c2),
            pl.BlockSpec((1, C), c2),
            pl.BlockSpec(p["dw_w"].shape, c2),
            pl.BlockSpec((1, C), c2),
            pl.BlockSpec(p["se1_w"].shape, c2),
            pl.BlockSpec((1, Cr), c2),
            pl.BlockSpec(p["se2_w"].shape, c2),
            pl.BlockSpec((1, C), c2),
            pl.BlockSpec(p["proj_w"].shape, c2),
            pl.BlockSpec((1, Cp), c2),
            pl.BlockSpec(p["head_w"].shape, c2),              # bf16, pre-cast in init
            pl.BlockSpec((1, F), c2),
            pl.BlockSpec(p["out_w"].shape, c2),
            pl.BlockSpec((1, NO), c2),
        ],
        out_specs=pl.BlockSpec((1, 1, NO), lambda b: (b, 0, 0)),
        compiler_params=pltpu.CompilerParams(dimension_semantics=("parallel",)),
    )(cols,
      p["stem_w"], p["stem_b"].reshape(1, -1),
      p["exp_w"], p["exp_b"].reshape(1, -1),
      p["dw_w"], p["dw_b"].reshape(1, -1),
      p["se1_w"], p["se1_b"].reshape(1, -1),
      p["se2_w"], p["se2_b"].reshape(1, -1),
      p["proj_w"], p["proj_b"].reshape(1, -1),
      p["head_w"], p["head_b"].reshape(1, -1),
      p["out_w"], p["out_b"].reshape(1, -1))
    return out.reshape(B, NO)


# ----------------------------------------------------------------------------
# Glue: im2col only for the 3-channel stride-2 stem (tiny at these shapes).
# ----------------------------------------------------------------------------
def im2col(x, k, stride, pad):
    # x: [B, H, W, C] -> ([k*k, B, Ho, Wo, C], Ho, Wo); tap order is (dy, dx)
    B, H, W, C = x.shape
    xp = jnp.pad(x, ((0, 0), (pad, pad), (pad, pad), (0, 0)))
    Ho = (H + 2 * pad - k) // stride + 1
    Wo = (W + 2 * pad - k) // stride + 1
    taps = []
    for dy in range(k):
        for dx in range(k):
            taps.append(xp[:, dy:dy + stride * Ho:stride,
                           dx:dx + stride * Wo:stride, :])
    return jnp.stack(taps, axis=0), Ho, Wo


# ----------------------------------------------------------------------------
# Parameters (deterministic synthetic init; BN folded into conv scale/bias)
# ----------------------------------------------------------------------------
def init_params(key):
    ks = jax.random.split(key, 16)
    w = lambda k, shape, s: jax.random.normal(k, shape, jnp.float32) * s
    p = {}
    p["stem_w"] = w(ks[0], (27, 32), 0.10)       # 3x3 s2 conv, 3 -> 32 (rows = dy,dx,cin)
    p["stem_b"] = w(ks[1], (32,), 0.01)
    p["exp_w"] = w(ks[2], (32, 128), 0.10)       # MBConv expand 1x1, 32 -> 128
    p["exp_b"] = w(ks[3], (128,), 0.01)
    p["dw_w"] = w(ks[4], (9, 128), 0.10)         # depthwise 3x3 taps (dy,dx) x 128 ch
    p["dw_b"] = w(ks[5], (128,), 0.01)
    p["se1_w"] = w(ks[6], (128, 8), 0.10)        # SE reduce
    p["se1_b"] = w(ks[7], (8,), 0.01)
    p["se2_w"] = w(ks[8], (8, 128), 0.10)        # SE expand
    p["se2_b"] = w(ks[9], (128,), 0.01)
    p["proj_w"] = w(ks[10], (128, 32), 0.10)     # MBConv project 1x1, 128 -> 32
    p["proj_b"] = w(ks[11], (32,), 0.01)
    p["head_w"] = w(ks[12], (32, 1280), 0.05).astype(jnp.bfloat16)  # pre-cast bf16 MXU operand
    p["head_b"] = w(ks[13], (1280,), 0.01)
    p["out_w"] = w(ks[14], (1280, 3), 0.02)      # output_condition = Linear(1280, 3)
    p["out_b"] = w(ks[15], (3,), 0.01)
    return p


# ----------------------------------------------------------------------------
# Forward pass
# ----------------------------------------------------------------------------
def effnet_model_forward(params, x_nchw):
    # layout: NCHW in (PyTorch), NHWC internally for TPU kernels.
    x = jnp.transpose(x_nchw, (0, 2, 3, 1)).astype(jnp.float32)     # [B, H, W, 3]
    B = x.shape[0]

    # stem im2col (9 taps x 3 ch = 27 columns); negligible at 16x16.
    taps, Ho, Wo = im2col(x, 3, 2, 1)                                # [9, B, Ho, Wo, 3]
    cols = jnp.transpose(taps, (1, 2, 3, 0, 4)).reshape(B, Ho * Wo, 27)

    # one fused Pallas kernel: stem -> MBConv(expand/dw/SE/project/res) ->
    # head+SiLU -> GAP -> (ReLU == dense3/dense4) -> Linear(1280, 3)
    return effnet_fused(cols, params, Ho, Wo)                        # [B, 3]


if __name__ == "__main__":
    key = jax.random.PRNGKey(0)
    pkey, xkey = jax.random.split(key)
    params = init_params(pkey)
    inputs = jax.random.normal(xkey, (2, 3, 16, 16), jnp.float32)    # NCHW, like PyTorch

    fwd = jax.jit(effnet_model_forward)
    out = jax.block_until_ready(fwd(params, inputs))
    assert out.shape == (2, 3) and out.dtype == jnp.float32
    print("KERNEL_OK")
</pallas_src>

<mosaic_0001>
module attributes {stable_mosaic.version = 11 : i64} {
  func.func @kernel(%arg0: i32, %arg1: memref<1x64x27xf32, #tpu.memory_space<vmem>>, %arg2: memref<27x32xf32, #tpu.memory_space<vmem>>, %arg3: memref<1x32xf32, #tpu.memory_space<vmem>>, %arg4: memref<32x128xf32, #tpu.memory_space<vmem>>, %arg5: memref<1x128xf32, #tpu.memory_space<vmem>>, %arg6: memref<9x128xf32, #tpu.memory_space<vmem>>, %arg7: memref<1x128xf32, #tpu.memory_space<vmem>>, %arg8: memref<128x8xf32, #tpu.memory_space<vmem>>, %arg9: memref<1x8xf32, #tpu.memory_space<vmem>>, %arg10: memref<8x128xf32, #tpu.memory_space<vmem>>, %arg11: memref<1x128xf32, #tpu.memory_space<vmem>>, %arg12: memref<128x32xf32, #tpu.memory_space<vmem>>, %arg13: memref<1x32xf32, #tpu.memory_space<vmem>>, %arg14: memref<32x1280xbf16, #tpu.memory_space<vmem>>, %arg15: memref<1x1280xf32, #tpu.memory_space<vmem>>, %arg16: memref<1280x3xf32, #tpu.memory_space<vmem>>, %arg17: memref<1x3xf32, #tpu.memory_space<vmem>>, %arg18: memref<1x1x3xf32, #tpu.memory_space<vmem>>) attributes {dimension_semantics = [#tpu.dimension_semantics<parallel>], iteration_bounds = array<i64: 2>, scalar_prefetch = 0 : i64, scratch_operands = 0 : i64, tpu.core_type = #tpu.core_type<tc>, window_params = [{transform_indices = @transform_0, window_bounds = array<i64: 1, 64, 27>}, {pipeline_mode = #tpu.pipeline_mode<synchronous>, transform_indices = @transform_1, window_bounds = array<i64: 27, 32>}, {pipeline_mode = #tpu.pipeline_mode<synchronous>, transform_indices = @transform_2, window_bounds = array<i64: 1, 32>}, {pipeline_mode = #tpu.pipeline_mode<synchronous>, transform_indices = @transform_3, window_bounds = array<i64: 32, 128>}, {pipeline_mode = #tpu.pipeline_mode<synchronous>, transform_indices = @transform_4, window_bounds = array<i64: 1, 128>}, {pipeline_mode = #tpu.pipeline_mode<synchronous>, transform_indices = @transform_5, window_bounds = array<i64: 9, 128>}, {pipeline_mode = #tpu.pipeline_mode<synchronous>, transform_indices = @transform_6, window_bounds = array<i64: 1, 128>}, {pipeline_mode = #tpu.pipeline_mode<synchronous>, transform_indices = @transform_7, window_bounds = array<i64: 128, 8>}, {pipeline_mode = #tpu.pipeline_mode<synchronous>, transform_indices = @transform_8, window_bounds = array<i64: 1, 8>}, {pipeline_mode = #tpu.pipeline_mode<synchronous>, transform_indices = @transform_9, window_bounds = array<i64: 8, 128>}, {pipeline_mode = #tpu.pipeline_mode<synchronous>, transform_indices = @transform_10, window_bounds = array<i64: 1, 128>}, {pipeline_mode = #tpu.pipeline_mode<synchronous>, transform_indices = @transform_11, window_bounds = array<i64: 128, 32>}, {pipeline_mode = #tpu.pipeline_mode<synchronous>, transform_indices = @transform_12, window_bounds = array<i64: 1, 32>}, {pipeline_mode = #tpu.pipeline_mode<synchronous>, transform_indices = @transform_13, window_bounds = array<i64: 32, 1280>}, {pipeline_mode = #tpu.pipeline_mode<synchronous>, transform_indices = @transform_14, window_bounds = array<i64: 1, 1280>}, {pipeline_mode = #tpu.pipeline_mode<synchronous>, transform_indices = @transform_15, window_bounds = array<i64: 1280, 3>}, {pipeline_mode = #tpu.pipeline_mode<synchronous>, transform_indices = @transform_16, window_bounds = array<i64: 1, 3>}, {transform_indices = @transform_17, window_bounds = array<i64: 1, 1, 3>}]} {
    %c0 = arith.constant 0 : index
    %c0_0 = arith.constant 0 : index
    %c0_1 = arith.constant 0 : index
    %0 = vector.load %arg1[%c0, %c0_0, %c0_1] : memref<1x64x27xf32, #tpu.memory_space<vmem>>, vector<1x64x27xf32>
    %1 = vector.shape_cast %0 : vector<1x64x27xf32> to vector<64x27xf32>
    %c0_2 = arith.constant 0 : index
    %c0_3 = arith.constant 0 : index
    %2 = vector.load %arg2[%c0_2, %c0_3] : memref<27x32xf32, #tpu.memory_space<vmem>>, vector<27x32xf32>
    %cst = arith.constant dense<0.000000e+00> : vector<64x32xf32>
    %3 = tpu.matmul %1, %2, %cst {dimension_numbers = #tpu.dot_dimension_numbers<[1], [0], [0], [1], [0, 0, 1, 1], [], []>} : vector<64x27xf32>, vector<27x32xf32>, vector<64x32xf32> -> vector<64x32xf32>
    %c0_4 = arith.constant 0 : index
    %c0_5 = arith.constant 0 : index
    %4 = vector.load %arg3[%c0_4, %c0_5] : memref<1x32xf32, #tpu.memory_space<vmem>>, vector<1x32xf32>
    %5 = vector.broadcast %4 : vector<1x32xf32> to vector<64x32xf32>
    %6 = arith.addf %3, %5 : vector<64x32xf32>
    %cst_6 = arith.constant 0.000000e+00 : f32
    %7 = vector.broadcast %cst_6 : f32 to vector<64x32xf32>
    %8 = arith.subf %7, %6 : vector<64x32xf32>
    %9 = math.exp %8 : vector<64x32xf32>
    %cst_7 = arith.constant 1.000000e+00 : f32
    %10 = vector.broadcast %cst_7 : f32 to vector<64x32xf32>
    %11 = arith.addf %10, %9 : vector<64x32xf32>
    %12 = tpu.reciprocal %11 {approx = true} : vector<64x32xf32> -> vector<64x32xf32>
    %13 = arith.mulf %6, %12 : vector<64x32xf32>
    %c0_8 = arith.constant 0 : index
    %c0_9 = arith.constant 0 : index
    %14 = vector.load %arg4[%c0_8, %c0_9] : memref<32x128xf32, #tpu.memory_space<vmem>>, vector<32x128xf32>
    %cst_10 = arith.constant dense<0.000000e+00> : vector<64x128xf32>
    %15 = tpu.matmul %13, %14, %cst_10 {dimension_numbers = #tpu.dot_dimension_numbers<[1], [0], [0], [1], [0, 0, 1, 1], [], []>} : vector<64x32xf32>, vector<32x128xf32>, vector<64x128xf32> -> vector<64x128xf32>
    %c0_11 = arith.constant 0 : index
    %c0_12 = arith.constant 0 : index
    %16 = vector.load %arg5[%c0_11, %c0_12] : memref<1x128xf32, #tpu.memory_space<vmem>>, vector<1x128xf32>
    %17 = vector.broadcast %16 : vector<1x128xf32> to vector<64x128xf32>
    %18 = arith.addf %15, %17 : vector<64x128xf32>
    %cst_13 = arith.constant 0.000000e+00 : f32
    %19 = vector.broadcast %cst_13 : f32 to vector<64x128xf32>
    %20 = arith.subf %19, %18 : vector<64x128xf32>
    %21 = math.exp %20 : vector<64x128xf32>
    %cst_14 = arith.constant 1.000000e+00 : f32
    %22 = vector.broadcast %cst_14 : f32 to vector<64x128xf32>
    %23 = arith.addf %22, %21 : vector<64x128xf32>
    %24 = tpu.reciprocal %23 {approx = true} : vector<64x128xf32> -> vector<64x128xf32>
    %25 = arith.mulf %18, %24 : vector<64x128xf32>
    %26 = tpu.iota {dimensions = array<i32: 0>} : vector<64x1xi32>
    %c7_i32 = arith.constant 7 : i32
    %27 = vector.broadcast %c7_i32 : i32 to vector<64x1xi32>
    %28 = arith.andi %26, %27 : vector<64x1xi32>
    %c0_15 = arith.constant 0 : index
    %c0_16 = arith.constant 0 : index
    %29 = vector.load %arg6[%c0_15, %c0_16] : memref<9x128xf32, #tpu.memory_space<vmem>>, vector<9x128xf32>
    %cst_17 = arith.constant 0.000000e+00 : f32
    %30 = vector.broadcast %cst_17 : f32 to vector<64x128xf32>
    %c9_i32 = arith.constant 9 : i32
    %31 = tpu.dynamic_rotate %25 by %c9_i32 dim 0 : vector<64x128xf32>, i32 -> vector<64x128xf32>
    %c8_i32 = arith.constant 8 : i32
    %32 = vector.broadcast %c8_i32 : i32 to vector<64x1xi32>
    %33 = arith.cmpi sge, %26, %32 : vector<64x1xi32>
    %c64_i32 = arith.constant 64 : i32
    %34 = vector.broadcast %c64_i32 : i32 to vector<64x1xi32>
    %35 = arith.cmpi slt, %26, %34 : vector<64x1xi32>
    %36 = arith.andi %33, %35 : vector<64x1xi1>
    %c-1_i32 = arith.constant -1 : i32
    %37 = vector.broadcast %c-1_i32 : i32 to vector<64x1xi32>
    %38 = arith.addi %28, %37 : vector<64x1xi32>
    %c0_i32 = arith.constant 0 : i32
    %39 = vector.broadcast %c0_i32 : i32 to vector<64x1xi32>
    %40 = arith.cmpi sge, %38, %39 : vector<64x1xi32>
    %c-1_i32_18 = arith.constant -1 : i32
    %41 = vector.broadcast %c-1_i32_18 : i32 to vector<64x1xi32>
    %42 = arith.addi %28, %41 : vector<64x1xi32>
    %c8_i32_19 = arith.constant 8 : i32
    %43 = vector.broadcast %c8_i32_19 : i32 to vector<64x1xi32>
    %44 = arith.cmpi slt, %42, %43 : vector<64x1xi32>
    %45 = arith.andi %40, %44 : vector<64x1xi1>
    %46 = arith.andi %36, %45 : vector<64x1xi1>
    %cst_20 = arith.constant 0.000000e+00 : f32
    %47 = vector.shape_cast %46 : vector<64x1xi1> to vector<64x1xi1>
    %48 = vector.broadcast %47 : vector<64x1xi1> to vector<64x128xi1>
    %49 = vector.broadcast %cst_20 : f32 to vector<64x128xf32>
    %50 = arith.select %48, %31, %49 : vector<64x128xi1>, vector<64x128xf32>
    %51 = vector.extract_strided_slice %29 {offsets = [0, 0], sizes = [1, 128], strides = [1, 1]} : vector<9x128xf32> to vector<1x128xf32>
    %52 = vector.broadcast %51 : vector<1x128xf32> to vector<64x128xf32>
    %53 = arith.mulf %50, %52 : vector<64x128xf32>
    %54 = arith.addf %30, %53 : vector<64x128xf32>
    %c8_i32_21 = arith.constant 8 : i32
    %55 = tpu.dynamic_rotate %25 by %c8_i32_21 dim 0 : vector<64x128xf32>, i32 -> vector<64x128xf32>
    %c8_i32_22 = arith.constant 8 : i32
    %56 = vector.broadcast %c8_i32_22 : i32 to vector<64x1xi32>
    %57 = arith.cmpi sge, %26, %56 : vector<64x1xi32>
    %c64_i32_23 = arith.constant 64 : i32
    %58 = vector.broadcast %c64_i32_23 : i32 to vector<64x1xi32>
    %59 = arith.cmpi slt, %26, %58 : vector<64x1xi32>
    %60 = arith.andi %57, %59 : vector<64x1xi1>
    %c0_i32_24 = arith.constant 0 : i32
    %61 = vector.broadcast %c0_i32_24 : i32 to vector<64x1xi32>
    %62 = arith.addi %28, %61 : vector<64x1xi32>
    %c0_i32_25 = arith.constant 0 : i32
    %63 = vector.broadcast %c0_i32_25 : i32 to vector<64x1xi32>
    %64 = arith.cmpi sge, %62, %63 : vector<64x1xi32>
    %c0_i32_26 = arith.constant 0 : i32
    %65 = vector.broadcast %c0_i32_26 : i32 to vector<64x1xi32>
    %66 = arith.addi %28, %65 : vector<64x1xi32>
    %c8_i32_27 = arith.constant 8 : i32
    %67 = vector.broadcast %c8_i32_27 : i32 to vector<64x1xi32>
    %68 = arith.cmpi slt, %66, %67 : vector<64x1xi32>
    %69 = arith.andi %64, %68 : vector<64x1xi1>
    %70 = arith.andi %60, %69 : vector<64x1xi1>
    %cst_28 = arith.constant 0.000000e+00 : f32
    %71 = vector.shape_cast %70 : vector<64x1xi1> to vector<64x1xi1>
    %72 = vector.broadcast %71 : vector<64x1xi1> to vector<64x128xi1>
    %73 = vector.broadcast %cst_28 : f32 to vector<64x128xf32>
    %74 = arith.select %72, %55, %73 : vector<64x128xi1>, vector<64x128xf32>
    %75 = vector.extract_strided_slice %29 {offsets = [1, 0], sizes = [1, 128], strides = [1, 1]} : vector<9x128xf32> to vector<1x128xf32>
    %76 = vector.broadcast %75 : vector<1x128xf32> to vector<64x128xf32>
    %77 = arith.mulf %74, %76 : vector<64x128xf32>
    %78 = arith.addf %54, %77 : vector<64x128xf32>
    %c7_i32_29 = arith.constant 7 : i32
    %79 = tpu.dynamic_rotate %25 by %c7_i32_29 dim 0 : vector<64x128xf32>, i32 -> vector<64x128xf32>
    %c8_i32_30 = arith.constant 8 : i32
    %80 = vector.broadcast %c8_i32_30 : i32 to vector<64x1xi32>
    %81 = arith.cmpi sge, %26, %80 : vector<64x1xi32>
    %c64_i32_31 = arith.constant 64 : i32
    %82 = vector.broadcast %c64_i32_31 : i32 to vector<64x1xi32>
    %83 = arith.cmpi slt, %26, %82 : vector<64x1xi32>
    %84 = arith.andi %81, %83 : vector<64x1xi1>
    %c1_i32 = arith.constant 1 : i32
    %85 = vector.broadcast %c1_i32 : i32 to vector<64x1xi32>
    %86 = arith.addi %28, %85 : vector<64x1xi32>
    %c0_i32_32 = arith.constant 0 : i32
    %87 = vector.broadcast %c0_i32_32 : i32 to vector<64x1xi32>
    %88 = arith.cmpi sge, %86, %87 : vector<64x1xi32>
    %c1_i32_33 = arith.constant 1 : i32
    %89 = vector.broadcast %c1_i32_33 : i32 to vector<64x1xi32>
    %90 = arith.addi %28, %89 : vector<64x1xi32>
    %c8_i32_34 = arith.constant 8 : i32
    %91 = vector.broadcast %c8_i32_34 : i32 to vector<64x1xi32>
    %92 = arith.cmpi slt, %90, %91 : vector<64x1xi32>
    %93 = arith.andi %88, %92 : vector<64x1xi1>
    %94 = arith.andi %84, %93 : vector<64x1xi1>
    %cst_35 = arith.constant 0.000000e+00 : f32
    %95 = vector.shape_cast %94 : vector<64x1xi1> to vector<64x1xi1>
    %96 = vector.broadcast %95 : vector<64x1xi1> to vector<64x128xi1>
    %97 = vector.broadcast %cst_35 : f32 to vector<64x128xf32>
    %98 = arith.select %96, %79, %97 : vector<64x128xi1>, vector<64x128xf32>
    %99 = vector.extract_strided_slice %29 {offsets = [2, 0], sizes = [1, 128], strides = [1, 1]} : vector<9x128xf32> to vector<1x128xf32>
    %100 = vector.broadcast %99 : vector<1x128xf32> to vector<64x128xf32>
    %101 = arith.mulf %98, %100 : vector<64x128xf32>
    %102 = arith.addf %78, %101 : vector<64x128xf32>
    %c1_i32_36 = arith.constant 1 : i32
    %103 = tpu.dynamic_rotate %25 by %c1_i32_36 dim 0 : vector<64x128xf32>, i32 -> vector<64x128xf32>
    %c0_i32_37 = arith.constant 0 : i32
    %104 = vector.broadcast %c0_i32_37 : i32 to vector<64x1xi32>
    %105 = arith.cmpi sge, %26, %104 : vector<64x1xi32>
    %c64_i32_38 = arith.constant 64 : i32
    %106 = vector.broadcast %c64_i32_38 : i32 to vector<64x1xi32>
    %107 = arith.cmpi slt, %26, %106 : vector<64x1xi32>
    %108 = arith.andi %105, %107 : vector<64x1xi1>
    %c-1_i32_39 = arith.constant -1 : i32
    %109 = vector.broadcast %c-1_i32_39 : i32 to vector<64x1xi32>
    %110 = arith.addi %28, %109 : vector<64x1xi32>
    %c0_i32_40 = arith.constant 0 : i32
    %111 = vector.broadcast %c0_i32_40 : i32 to vector<64x1xi32>
    %112 = arith.cmpi sge, %110, %111 : vector<64x1xi32>
    %c-1_i32_41 = arith.constant -1 : i32
    %113 = vector.broadcast %c-1_i32_41 : i32 to vector<64x1xi32>
    %114 = arith.addi %28, %113 : vector<64x1xi32>
    %c8_i32_42 = arith.constant 8 : i32
    %115 = vector.broadcast %c8_i32_42 : i32 to vector<64x1xi32>
    %116 = arith.cmpi slt, %114, %115 : vector<64x1xi32>
    %117 = arith.andi %112, %116 : vector<64x1xi1>
    %118 = arith.andi %108, %117 : vector<64x1xi1>
    %cst_43 = arith.constant 0.000000e+00 : f32
    %119 = vector.shape_cast %118 : vector<64x1xi1> to vector<64x1xi1>
    %120 = vector.broadcast %119 : vector<64x1xi1> to vector<64x128xi1>
    %121 = vector.broadcast %cst_43 : f32 to vector<64x128xf32>
    %122 = arith.select %120, %103, %121 : vector<64x128xi1>, vector<64x128xf32>
    %123 = vector.extract_strided_slice %29 {offsets = [3, 0], sizes = [1, 128], strides = [1, 1]} : vector<9x128xf32> to vector<1x128xf32>
    %124 = vector.broadcast %123 : vector<1x128xf32> to vector<64x128xf32>
    %125 = arith.mulf %122, %124 : vector<64x128xf32>
    %126 = arith.addf %102, %125 : vector<64x128xf32>
    %127 = vector.extract_strided_slice %29 {offsets = [4, 0], sizes = [1, 128], strides = [1, 1]} : vector<9x128xf32> to vector<1x128xf32>
    %128 = vector.broadcast %127 : vector<1x128xf32> to vector<64x128xf32>
    %129 = arith.mulf %25, %128 : vector<64x128xf32>
    %130 = arith.addf %126, %129 : vector<64x128xf32>
    %c63_i32 = arith.constant 63 : i32
    %131 = tpu.dynamic_rotate %25 by %c63_i32 dim 0 : vector<64x128xf32>, i32 -> vector<64x128xf32>
    %c0_i32_44 = arith.constant 0 : i32
    %132 = vector.broadcast %c0_i32_44 : i32 to vector<64x1xi32>
    %133 = arith.cmpi sge, %26, %132 : vector<64x1xi32>
    %c64_i32_45 = arith.constant 64 : i32
    %134 = vector.broadcast %c64_i32_45 : i32 to vector<64x1xi32>
    %135 = arith.cmpi slt, %26, %134 : vector<64x1xi32>
    %136 = arith.andi %133, %135 : vector<64x1xi1>
    %c1_i32_46 = arith.constant 1 : i32
    %137 = vector.broadcast %c1_i32_46 : i32 to vector<64x1xi32>
    %138 = arith.addi %28, %137 : vector<64x1xi32>
    %c0_i32_47 = arith.constant 0 : i32
    %139 = vector.broadcast %c0_i32_47 : i32 to vector<64x1xi32>
    %140 = arith.cmpi sge, %138, %139 : vector<64x1xi32>
    %c1_i32_48 = arith.constant 1 : i32
    %141 = vector.broadcast %c1_i32_48 : i32 to vector<64x1xi32>
    %142 = arith.addi %28, %141 : vector<64x1xi32>
    %c8_i32_49 = arith.constant 8 : i32
    %143 = vector.broadcast %c8_i32_49 : i32 to vector<64x1xi32>
    %144 = arith.cmpi slt, %142, %143 : vector<64x1xi32>
    %145 = arith.andi %140, %144 : vector<64x1xi1>
    %146 = arith.andi %136, %145 : vector<64x1xi1>
    %cst_50 = arith.constant 0.000000e+00 : f32
    %147 = vector.shape_cast %146 : vector<64x1xi1> to vector<64x1xi1>
    %148 = vector.broadcast %147 : vector<64x1xi1> to vector<64x128xi1>
    %149 = vector.broadcast %cst_50 : f32 to vector<64x128xf32>
    %150 = arith.select %148, %131, %149 : vector<64x128xi1>, vector<64x128xf32>
    %151 = vector.extract_strided_slice %29 {offsets = [5, 0], sizes = [1, 128], strides = [1, 1]} : vector<9x128xf32> to vector<1x128xf32>
    %152 = vector.broadcast %151 : vector<1x128xf32> to vector<64x128xf32>
    %153 = arith.mulf %150, %152 : vector<64x128xf32>
    %154 = arith.addf %130, %153 : vector<64x128xf32>
    %c57_i32 = arith.constant 57 : i32
    %155 = tpu.dynamic_rotate %25 by %c57_i32 dim 0 : vector<64x128xf32>, i32 -> vector<64x128xf32>
    %c0_i32_51 = arith.constant 0 : i32
    %156 = vector.broadcast %c0_i32_51 : i32 to vector<64x1xi32>
    %157 = arith.cmpi sge, %26, %156 : vector<64x1xi32>
    %c56_i32 = arith.constant 56 : i32
    %158 = vector.broadcast %c56_i32 : i32 to vector<64x1xi32>
    %159 = arith.cmpi slt, %26, %158 : vector<64x1xi32>
    %160 = arith.andi %157, %159 : vector<64x1xi1>
    %c-1_i32_52 = arith.constant -1 : i32
    %161 = vector.broadcast %c-1_i32_52 : i32 to vector<64x1xi32>
    %162 = arith.addi %28, %161 : vector<64x1xi32>
    %c0_i32_53 = arith.constant 0 : i32
    %163 = vector.broadcast %c0_i32_53 : i32 to vector<64x1xi32>
    %164 = arith.cmpi sge, %162, %163 : vector<64x1xi32>
    %c-1_i32_54 = arith.constant -1 : i32
    %165 = vector.broadcast %c-1_i32_54 : i32 to vector<64x1xi32>
    %166 = arith.addi %28, %165 : vector<64x1xi32>
    %c8_i32_55 = arith.constant 8 : i32
    %167 = vector.broadcast %c8_i32_55 : i32 to vector<64x1xi32>
    %168 = arith.cmpi slt, %166, %167 : vector<64x1xi32>
    %169 = arith.andi %164, %168 : vector<64x1xi1>
    %170 = arith.andi %160, %169 : vector<64x1xi1>
    %cst_56 = arith.constant 0.000000e+00 : f32
    %171 = vector.shape_cast %170 : vector<64x1xi1> to vector<64x1xi1>
    %172 = vector.broadcast %171 : vector<64x1xi1> to vector<64x128xi1>
    %173 = vector.broadcast %cst_56 : f32 to vector<64x128xf32>
    %174 = arith.select %172, %155, %173 : vector<64x128xi1>, vector<64x128xf32>
    %175 = vector.extract_strided_slice %29 {offsets = [6, 0], sizes = [1, 128], strides = [1, 1]} : vector<9x128xf32> to vector<1x128xf32>
    %176 = vector.broadcast %175 : vector<1x128xf32> to vector<64x128xf32>
    %177 = arith.mulf %174, %176 : vector<64x128xf32>
    %178 = arith.addf %154, %177 : vector<64x128xf32>
    %c56_i32_57 = arith.constant 56 : i32
    %179 = tpu.dynamic_rotate %25 by %c56_i32_57 dim 0 : vector<64x128xf32>, i32 -> vector<64x128xf32>
    %c0_i32_58 = arith.constant 0 : i32
    %180 = vector.broadcast %c0_i32_58 : i32 to vector<64x1xi32>
    %181 = arith.cmpi sge, %26, %180 : vector<64x1xi32>
    %c56_i32_59 = arith.constant 56 : i32
    %182 = vector.broadcast %c56_i32_59 : i32 to vector<64x1xi32>
    %183 = arith.cmpi slt, %26, %182 : vector<64x1xi32>
    %184 = arith.andi %181, %183 : vector<64x1xi1>
    %c0_i32_60 = arith.constant 0 : i32
    %185 = vector.broadcast %c0_i32_60 : i32 to vector<64x1xi32>
    %186 = arith.addi %28, %185 : vector<64x1xi32>
    %c0_i32_61 = arith.constant 0 : i32
    %187 = vector.broadcast %c0_i32_61 : i32 to vector<64x1xi32>
    %188 = arith.cmpi sge, %186, %187 : vector<64x1xi32>
    %c0_i32_62 = arith.constant 0 : i32
    %189 = vector.broadcast %c0_i32_62 : i32 to vector<64x1xi32>
    %190 = arith.addi %28, %189 : vector<64x1xi32>
    %c8_i32_63 = arith.constant 8 : i32
    %191 = vector.broadcast %c8_i32_63 : i32 to vector<64x1xi32>
    %192 = arith.cmpi slt, %190, %191 : vector<64x1xi32>
    %193 = arith.andi %188, %192 : vector<64x1xi1>
    %194 = arith.andi %184, %193 : vector<64x1xi1>
    %cst_64 = arith.constant 0.000000e+00 : f32
    %195 = vector.shape_cast %194 : vector<64x1xi1> to vector<64x1xi1>
    %196 = vector.broadcast %195 : vector<64x1xi1> to vector<64x128xi1>
    %197 = vector.broadcast %cst_64 : f32 to vector<64x128xf32>
    %198 = arith.select %196, %179, %197 : vector<64x128xi1>, vector<64x128xf32>
    %199 = vector.extract_strided_slice %29 {offsets = [7, 0], sizes = [1, 128], strides = [1, 1]} : vector<9x128xf32> to vector<1x128xf32>
    %200 = vector.broadcast %199 : vector<1x128xf32> to vector<64x128xf32>
    %201 = arith.mulf %198, %200 : vector<64x128xf32>
    %202 = arith.addf %178, %201 : vector<64x128xf32>
    %c55_i32 = arith.constant 55 : i32
    %203 = tpu.dynamic_rotate %25 by %c55_i32 dim 0 : vector<64x128xf32>, i32 -> vector<64x128xf32>
    %c0_i32_65 = arith.constant 0 : i32
    %204 = vector.broadcast %c0_i32_65 : i32 to vector<64x1xi32>
    %205 = arith.cmpi sge, %26, %204 : vector<64x1xi32>
    %c56_i32_66 = arith.constant 56 : i32
    %206 = vector.broadcast %c56_i32_66 : i32 to vector<64x1xi32>
    %207 = arith.cmpi slt, %26, %206 : vector<64x1xi32>
    %208 = arith.andi %205, %207 : vector<64x1xi1>
    %c1_i32_67 = arith.constant 1 : i32
    %209 = vector.broadcast %c1_i32_67 : i32 to vector<64x1xi32>
    %210 = arith.addi %28, %209 : vector<64x1xi32>
    %c0_i32_68 = arith.constant 0 : i32
    %211 = vector.broadcast %c0_i32_68 : i32 to vector<64x1xi32>
    %212 = arith.cmpi sge, %210, %211 : vector<64x1xi32>
    %c1_i32_69 = arith.constant 1 : i32
    %213 = vector.broadcast %c1_i32_69 : i32 to vector<64x1xi32>
    %214 = arith.addi %28, %213 : vector<64x1xi32>
    %c8_i32_70 = arith.constant 8 : i32
    %215 = vector.broadcast %c8_i32_70 : i32 to vector<64x1xi32>
    %216 = arith.cmpi slt, %214, %215 : vector<64x1xi32>
    %217 = arith.andi %212, %216 : vector<64x1xi1>
    %218 = arith.andi %208, %217 : vector<64x1xi1>
    %cst_71 = arith.constant 0.000000e+00 : f32
    %219 = vector.shape_cast %218 : vector<64x1xi1> to vector<64x1xi1>
    %220 = vector.broadcast %219 : vector<64x1xi1> to vector<64x128xi1>
    %221 = vector.broadcast %cst_71 : f32 to vector<64x128xf32>
    %222 = arith.select %220, %203, %221 : vector<64x128xi1>, vector<64x128xf32>
    %223 = vector.extract_strided_slice %29 {offsets = [8, 0], sizes = [1, 128], strides = [1, 1]} : vector<9x128xf32> to vector<1x128xf32>
    %224 = vector.broadcast %223 : vector<1x128xf32> to vector<64x128xf32>
    %225 = arith.mulf %222, %224 : vector<64x128xf32>
    %226 = arith.addf %202, %225 : vector<64x128xf32>
    %c0_72 = arith.constant 0 : index
    %c0_73 = arith.constant 0 : index
    %227 = vector.load %arg7[%c0_72, %c0_73] : memref<1x128xf32, #tpu.memory_space<vmem>>, vector<1x128xf32>
    %228 = vector.broadcast %227 : vector<1x128xf32> to vector<64x128xf32>
    %229 = arith.addf %226, %228 : vector<64x128xf32>
    %cst_74 = arith.constant 0.000000e+00 : f32
    %230 = vector.broadcast %cst_74 : f32 to vector<64x128xf32>
    %231 = arith.subf %230, %229 : vector<64x128xf32>
    %232 = math.exp %231 : vector<64x128xf32>
    %cst_75 = arith.constant 1.000000e+00 : f32
    %233 = vector.broadcast %cst_75 : f32 to vector<64x128xf32>
    %234 = arith.addf %233, %232 : vector<64x128xf32>
    %235 = tpu.reciprocal %234 {approx = true} : vector<64x128xf32> -> vector<64x128xf32>
    %236 = arith.mulf %229, %235 : vector<64x128xf32>
    %cst_76 = arith.constant dense<0.000000e+00> : vector<128xf32>
    %237 = vector.multi_reduction <add>, %236, %cst_76 [0] : vector<64x128xf32> to vector<128xf32>
    %238 = vector.shape_cast %237 : vector<128xf32> to vector<1x128xf32>
    %cst_77 = arith.constant 1.562500e-02 : f32
    %239 = vector.broadcast %cst_77 : f32 to vector<1x128xf32>
    %240 = arith.mulf %238, %239 : vector<1x128xf32>
    %c0_78 = arith.constant 0 : index
    %c0_79 = arith.constant 0 : index
    %241 = vector.load %arg8[%c0_78, %c0_79] : memref<128x8xf32, #tpu.memory_space<vmem>>, vector<128x8xf32>
    %cst_80 = arith.constant dense<0.000000e+00> : vector<1x8xf32>
    %242 = tpu.matmul %240, %241, %cst_80 {dimension_numbers = #tpu.dot_dimension_numbers<[1], [0], [0], [1], [0, 0, 1, 1], [], []>} : vector<1x128xf32>, vector<128x8xf32>, vector<1x8xf32> -> vector<1x8xf32>
    %c0_81 = arith.constant 0 : index
    %c0_82 = arith.constant 0 : index
    %243 = vector.load %arg9[%c0_81, %c0_82] : memref<1x8xf32, #tpu.memory_space<vmem>>, vector<1x8xf32>
    %244 = arith.addf %242, %243 : vector<1x8xf32>
    %cst_83 = arith.constant 0.000000e+00 : f32
    %245 = vector.broadcast %cst_83 : f32 to vector<1x8xf32>
    %246 = arith.subf %245, %244 : vector<1x8xf32>
    %247 = math.exp %246 : vector<1x8xf32>
    %cst_84 = arith.constant 1.000000e+00 : f32
    %248 = vector.broadcast %cst_84 : f32 to vector<1x8xf32>
    %249 = arith.addf %248, %247 : vector<1x8xf32>
    %250 = tpu.reciprocal %249 {approx = true} : vector<1x8xf32> -> vector<1x8xf32>
    %251 = arith.mulf %244, %250 : vector<1x8xf32>
    %c0_85 = arith.constant 0 : index
    %c0_86 = arith.constant 0 : index
    %252 = vector.load %arg10[%c0_85, %c0_86] : memref<8x128xf32, #tpu.memory_space<vmem>>, vector<8x128xf32>
    %cst_87 = arith.constant dense<0.000000e+00> : vector<1x128xf32>
    %253 = tpu.matmul %251, %252, %cst_87 {dimension_numbers = #tpu.dot_dimension_numbers<[1], [0], [0], [1], [0, 0, 1, 1], [], []>} : vector<1x8xf32>, vector<8x128xf32>, vector<1x128xf32> -> vector<1x128xf32>
    %c0_88 = arith.constant 0 : index
    %c0_89 = arith.constant 0 : index
    %254 = vector.load %arg11[%c0_88, %c0_89] : memref<1x128xf32, #tpu.memory_space<vmem>>, vector<1x128xf32>
    %255 = arith.addf %253, %254 : vector<1x128xf32>
    %cst_90 = arith.constant 0.000000e+00 : f32
    %256 = vector.broadcast %cst_90 : f32 to vector<1x128xf32>
    %257 = arith.subf %256, %255 : vector<1x128xf32>
    %258 = math.exp %257 : vector<1x128xf32>
    %cst_91 = arith.constant 1.000000e+00 : f32
    %259 = vector.broadcast %cst_91 : f32 to vector<1x128xf32>
    %260 = arith.addf %259, %258 : vector<1x128xf32>
    %cst_92 = arith.constant 1.000000e+00 : f32
    %261 = vector.broadcast %cst_92 : f32 to vector<1x128xf32>
    %262 = arith.divf %261, %260 : vector<1x128xf32>
    %263 = vector.broadcast %262 : vector<1x128xf32> to vector<64x128xf32>
    %264 = arith.mulf %236, %263 : vector<64x128xf32>
    %c0_93 = arith.constant 0 : index
    %c0_94 = arith.constant 0 : index
    %265 = vector.load %arg12[%c0_93, %c0_94] : memref<128x32xf32, #tpu.memory_space<vmem>>, vector<128x32xf32>
    %cst_95 = arith.constant dense<0.000000e+00> : vector<64x32xf32>
    %266 = tpu.matmul %264, %265, %cst_95 {dimension_numbers = #tpu.dot_dimension_numbers<[1], [0], [0], [1], [0, 0, 1, 1], [], []>} : vector<64x128xf32>, vector<128x32xf32>, vector<64x32xf32> -> vector<64x32xf32>
    %c0_96 = arith.constant 0 : index
    %c0_97 = arith.constant 0 : index
    %267 = vector.load %arg13[%c0_96, %c0_97] : memref<1x32xf32, #tpu.memory_space<vmem>>, vector<1x32xf32>
    %268 = vector.broadcast %267 : vector<1x32xf32> to vector<64x32xf32>
    %269 = arith.addf %266, %268 : vector<64x32xf32>
    %270 = arith.addf %269, %13 : vector<64x32xf32>
    %271 = arith.truncf %270 : vector<64x32xf32> to vector<64x32xbf16>
    %c0_98 = arith.constant 0 : index
    %c0_99 = arith.constant 0 : index
    %272 = vector.load %arg14[%c0_98, %c0_99] : memref<32x1280xbf16, #tpu.memory_space<vmem>>, vector<32x1280xbf16>
    %cst_100 = arith.constant dense<0.000000e+00> : vector<64x1280xf32>
    %273 = tpu.matmul %271, %272, %cst_100 {dimension_numbers = #tpu.dot_dimension_numbers<[1], [0], [0], [1], [0, 0, 1, 1], [], []>} : vector<64x32xbf16>, vector<32x1280xbf16>, vector<64x1280xf32> -> vector<64x1280xf32>
    %c0_101 = arith.constant 0 : index
    %c0_102 = arith.constant 0 : index
    %274 = vector.load %arg15[%c0_101, %c0_102] : memref<1x1280xf32, #tpu.memory_space<vmem>>, vector<1x1280xf32>
    %275 = vector.broadcast %274 : vector<1x1280xf32> to vector<64x1280xf32>
    %276 = arith.addf %273, %275 : vector<64x1280xf32>
    %cst_103 = arith.constant 0.000000e+00 : f32
    %277 = vector.broadcast %cst_103 : f32 to vector<64x1280xf32>
    %278 = arith.subf %277, %276 : vector<64x1280xf32>
    %279 = math.exp %278 : vector<64x1280xf32>
    %cst_104 = arith.constant 1.000000e+00 : f32
    %280 = vector.broadcast %cst_104 : f32 to vector<64x1280xf32>
    %281 = arith.addf %280, %279 : vector<64x1280xf32>
    %282 = tpu.reciprocal %281 {approx = true} : vector<64x1280xf32> -> vector<64x1280xf32>
    %283 = arith.mulf %276, %282 : vector<64x1280xf32>
    %cst_105 = arith.constant dense<0.000000e+00> : vector<1280xf32>
    %284 = vector.multi_reduction <add>, %283, %cst_105 [0] : vector<64x1280xf32> to vector<1280xf32>
    %285 = vector.shape_cast %284 : vector<1280xf32> to vector<1x1280xf32>
    %cst_106 = arith.constant 1.562500e-02 : f32
    %286 = vector.broadcast %cst_106 : f32 to vector<1x1280xf32>
    %287 = arith.mulf %285, %286 : vector<1x1280xf32>
    %cst_107 = arith.constant 0.000000e+00 : f32
    %288 = vector.broadcast %cst_107 : f32 to vector<1x1280xf32>
    %289 = arith.maximumf %287, %288 : vector<1x1280xf32>
    %c0_108 = arith.constant 0 : index
    %c0_109 = arith.constant 0 : index
    %290 = vector.load %arg16[%c0_108, %c0_109] : memref<1280x3xf32, #tpu.memory_space<vmem>>, vector<1280x3xf32>
    %cst_110 = arith.constant dense<0.000000e+00> : vector<1x3xf32>
    %291 = tpu.matmul %289, %290, %cst_110 {dimension_numbers = #tpu.dot_dimension_numbers<[1], [0], [0], [1], [0, 0, 1, 1], [], []>} : vector<1x1280xf32>, vector<1280x3xf32>, vector<1x3xf32> -> vector<1x3xf32>
    %c0_111 = arith.constant 0 : index
    %c0_112 = arith.constant 0 : index
    %292 = vector.load %arg17[%c0_111, %c0_112] : memref<1x3xf32, #tpu.memory_space<vmem>>, vector<1x3xf32>
    %293 = arith.addf %291, %292 : vector<1x3xf32>
    %c0_113 = arith.constant 0 : index
    %c0_114 = arith.constant 0 : index
    %c0_115 = arith.constant 0 : index
    %294 = vector.load %arg18[%c0_113, %c0_114, %c0_115] : memref<1x1x3xf32, #tpu.memory_space<vmem>>, vector<1x1x3xf32>
    %295 = vector.shape_cast %294 : vector<1x1x3xf32> to vector<1x3xf32>
    %296 = vector.shape_cast %293 : vector<1x3xf32> to vector<1x1x3xf32>
    tpu.vector_store %arg18[%c0_113, %c0_114, %c0_115], %296 {strides = array<i32>} : memref<1x1x3xf32, #tpu.memory_space<vmem>>, vector<1x1x3xf32>,
    return
  }
  func.func @transform_0(%arg0: i32) -> (i32, i32, i32) {
    %c0_i32 = arith.constant 0 : i32
    %c0_i32_0 = arith.constant 0 : i32
    %c0_i32_1 = arith.constant 0 : i32
    return %arg0, %c0_i32, %c0_i32_0 : i32, i32, i32
  }
  func.func @transform_1(%arg0: i32) -> (i32, i32) {
    %c0_i32 = arith.constant 0 : i32
    %c0_i32_0 = arith.constant 0 : i32
    %c0_i32_1 = arith.constant 0 : i32
    return %c0_i32, %c0_i32_0 : i32, i32
  }
  func.func @transform_2(%arg0: i32) -> (i32, i32) {
    %c0_i32 = arith.constant 0 : i32
    %c0_i32_0 = arith.constant 0 : i32
    %c0_i32_1 = arith.constant 0 : i32
    return %c0_i32, %c0_i32_0 : i32, i32
  }
  func.func @transform_3(%arg0: i32) -> (i32, i32) {
    %c0_i32 = arith.constant 0 : i32
    %c0_i32_0 = arith.constant 0 : i32
    %c0_i32_1 = arith.constant 0 : i32
    return %c0_i32, %c0_i32_0 : i32, i32
  }
  func.func @transform_4(%arg0: i32) -> (i32, i32) {
    %c0_i32 = arith.constant 0 : i32
    %c0_i32_0 = arith.constant 0 : i32
    %c0_i32_1 = arith.constant 0 : i32
    return %c0_i32, %c0_i32_0 : i32, i32
  }
  func.func @transform_5(%arg0: i32) -> (i32, i32) {
    %c0_i32 = arith.constant 0 : i32
    %c0_i32_0 = arith.constant 0 : i32
    %c0_i32_1 = arith.constant 0 : i32
    return %c0_i32, %c0_i32_0 : i32, i32
  }
  func.func @transform_6(%arg0: i32) -> (i32, i32) {
    %c0_i32 = arith.constant 0 : i32
    %c0_i32_0 = arith.constant 0 : i32
    %c0_i32_1 = arith.constant 0 : i32
    return %c0_i32, %c0_i32_0 : i32, i32
  }
  func.func @transform_7(%arg0: i32) -> (i32, i32) {
    %c0_i32 = arith.constant 0 : i32
    %c0_i32_0 = arith.constant 0 : i32
    %c0_i32_1 = arith.constant 0 : i32
    return %c0_i32, %c0_i32_0 : i32, i32
  }
  func.func @transform_8(%arg0: i32) -> (i32, i32) {
    %c0_i32 = arith.constant 0 : i32
    %c0_i32_0 = arith.constant 0 : i32
    %c0_i32_1 = arith.constant 0 : i32
    return %c0_i32, %c0_i32_0 : i32, i32
  }
  func.func @transform_9(%arg0: i32) -> (i32, i32) {
    %c0_i32 = arith.constant 0 : i32
    %c0_i32_0 = arith.constant 0 : i32
    %c0_i32_1 = arith.constant 0 : i32
    return %c0_i32, %c0_i32_0 : i32, i32
  }
  func.func @transform_10(%arg0: i32) -> (i32, i32) {
    %c0_i32 = arith.constant 0 : i32
    %c0_i32_0 = arith.constant 0 : i32
    %c0_i32_1 = arith.constant 0 : i32
    return %c0_i32, %c0_i32_0 : i32, i32
  }
  func.func @transform_11(%arg0: i32) -> (i32, i32) {
    %c0_i32 = arith.constant 0 : i32
    %c0_i32_0 = arith.constant 0 : i32
    %c0_i32_1 = arith.constant 0 : i32
    return %c0_i32, %c0_i32_0 : i32, i32
  }
  func.func @transform_12(%arg0: i32) -> (i32, i32) {
    %c0_i32 = arith.constant 0 : i32
    %c0_i32_0 = arith.constant 0 : i32
    %c0_i32_1 = arith.constant 0 : i32
    return %c0_i32, %c0_i32_0 : i32, i32
  }
  func.func @transform_13(%arg0: i32) -> (i32, i32) {
    %c0_i32 = arith.constant 0 : i32
    %c0_i32_0 = arith.constant 0 : i32
    %c0_i32_1 = arith.constant 0 : i32
    return %c0_i32, %c0_i32_0 : i32, i32
  }
  func.func @transform_14(%arg0: i32) -> (i32, i32) {
    %c0_i32 = arith.constant 0 : i32
    %c0_i32_0 = arith.constant 0 : i32
    %c0_i32_1 = arith.constant 0 : i32
    return %c0_i32, %c0_i32_0 : i32, i32
  }
  func.func @transform_15(%arg0: i32) -> (i32, i32) {
    %c0_i32 = arith.constant 0 : i32
    %c0_i32_0 = arith.constant 0 : i32
    %c0_i32_1 = arith.constant 0 : i32
    return %c0_i32, %c0_i32_0 : i32, i32
  }
  func.func @transform_16(%arg0: i32) -> (i32, i32) {
    %c0_i32 = arith.constant 0 : i32
    %c0_i32_0 = arith.constant 0 : i32
    %c0_i32_1 = arith.constant 0 : i32
    return %c0_i32, %c0_i32_0 : i32, i32
  }
  func.func @transform_17(%arg0: i32) -> (i32, i32, i32) {
    %c0_i32 = arith.constant 0 : i32
    %c0_i32_0 = arith.constant 0 : i32
    %c0_i32_1 = arith.constant 0 : i32
    return %arg0, %c0_i32, %c0_i32_0 : i32, i32, i32
  }
}

</mosaic_0001>

<llo_original>
// kernel: effnet_model_forward.1
$region0: #{effnet_model_forward.1}
  #allocation0 [shape = 'u32[]', space=smem, size = 0x4, offset = 0x4, fixed_abs, tag = 'smem constant byte address 0x4 - core index']
  #allocation1 [shape = 'u32[144,128]{1,0:T(1,128)}', space=vmem, size = 0x12000, scoped, tag = 'internal scratch']
  %s0 = inlined_call_operand.vmem [shape: f32[2,64,27], index: 0, kind: input, shape index: {}]
  %s1 = inlined_call_operand.vmem [shape: f32[27,32], index: 1, kind: input, shape index: {}]
  %s2 = inlined_call_operand.vmem [shape: f32[1,32], index: 2, kind: input, shape index: {}]
  %s3 = inlined_call_operand.vmem [shape: f32[32,128], index: 3, kind: input, shape index: {}]
  %s4 = inlined_call_operand.vmem [shape: f32[1,128], index: 4, kind: input, shape index: {}]
  %s5 = inlined_call_operand.vmem [shape: f32[9,128], index: 5, kind: input, shape index: {}]
  %s6 = inlined_call_operand.vmem [shape: f32[1,128], index: 6, kind: input, shape index: {}]
  %s7 = inlined_call_operand.vmem [shape: f32[128,8], index: 7, kind: input, shape index: {}]
  %s8 = inlined_call_operand.vmem [shape: f32[1,8], index: 8, kind: input, shape index: {}]
  %s9 = inlined_call_operand.vmem [shape: f32[8,128], index: 9, kind: input, shape index: {}]
  %s10 = inlined_call_operand.vmem [shape: f32[1,128], index: 10, kind: input, shape index: {}]
  %s11 = inlined_call_operand.vmem [shape: f32[128,32], index: 11, kind: input, shape index: {}]
  %s12 = inlined_call_operand.vmem [shape: f32[1,32], index: 12, kind: input, shape index: {}]
  %s13 = inlined_call_operand.vmem [shape: bf16[32,1280], index: 13, kind: input, shape index: {}]
  %s14 = inlined_call_operand.vmem [shape: f32[1,1280], index: 14, kind: input, shape index: {}]
  %s15 = inlined_call_operand.vmem [shape: f32[1280,3], index: 15, kind: input, shape index: {}]
  %s16 = inlined_call_operand.vmem [shape: f32[1,3], index: 16, kind: input, shape index: {}]
  %s17 = inlined_call_operand.hbm [shape: f32[2,1,3], index: 17, kind: output, shape index: {}]
  %s18 = sld [smem:[#allocation0]]
  $region101: #{effnet_model_forward.1} parent=0
    _
  %s20 = ssub.s32 1, %s18
  %s21 = scalar_select 0, %s20, %s18
  $region1: #{effnet_model_forward.1} parent=0
    #allocation2 [shape = 'u8[1024]{0}', space=vmem, size = 0x400, scoped, tag = 'output window, operand 0']
    #allocation3 [shape = 's32[2]{0}', space=sflag, size = 0x8, scoped, tag = 'scoped memory for effnet_model_forward.1']
    %22 = vsyncpa [#allocation3], 0
    %s23 = scalar_lea.sflag [#allocation3], 1
    %24 = vsyncpa %s23, 0
    loop: start=0, step=1, limit=4
    $region2: #{effnet_model_forward.1} parent=1 // loop_pre_header
      _
    $region3: #{effnet_model_forward.1} parent=1 // loop_header
      %s26 = sphi 0, %s30
      %p27 = scmp.ge.s32.totalorder %s26, 4
      %s36 = sphi 0, %s38
      %s39 = sphi 0, %s36
      %s40 = sphi 0, %s39
      %s56 = sphi 0, %s40
      %s60 = sphi 0, %s60
      %s62 = sphi 0, %s60
      %s63 = sphi 0, %s62
      %s77 = sphi 0, %s63
      %s81 = sphi 0, %s81
      %s83 = sphi 0, %s81
      %s84 = sphi 0, %s83
      %s98 = sphi 0, %s84
      %s102 = sphi 0, %s102
      %s104 = sphi 0, %s102
      %s105 = sphi 0, %s104
      %s119 = sphi 0, %s105
      %s123 = sphi 0, %s123
      %s125 = sphi 0, %s123
      %s126 = sphi 0, %s125
      %s140 = sphi 0, %s126
      %s144 = sphi 0, %s144
      %s146 = sphi 0, %s144
      %s147 = sphi 0, %s146
      %s161 = sphi 0, %s147
      %s165 = sphi 0, %s165
      %s167 = sphi 0, %s165
      %s168 = sphi 0, %s167
      %s182 = sphi 0, %s168
      %s186 = sphi 0, %s186
      %s188 = sphi 0, %s186
      %s189 = sphi 0, %s188
      %s203 = sphi 0, %s189
      %s207 = sphi 0, %s207
      %s209 = sphi 0, %s207
      %s210 = sphi 0, %s209
      %s224 = sphi 0, %s210
      %s228 = sphi 0, %s228
      %s230 = sphi 0, %s228
      %s231 = sphi 0, %s230
      %s245 = sphi 0, %s231
      %s249 = sphi 0, %s249
      %s251 = sphi 0, %s249
      %s252 = sphi 0, %s251
      %s266 = sphi 0, %s252
      %s270 = sphi 0, %s270
      %s272 = sphi 0, %s270
      %s273 = sphi 0, %s272
      %s287 = sphi 0, %s273
      %s291 = sphi 0, %s291
      %s293 = sphi 0, %s291
      %s294 = sphi 0, %s293
      %s308 = sphi 0, %s294
      %s312 = sphi 0, %s312
      %s314 = sphi 0, %s312
      %s315 = sphi 0, %s314
      %s329 = sphi 0, %s315
      %s333 = sphi 0, %s333
      %s335 = sphi 0, %s333
      %s336 = sphi 0, %s335
      %s350 = sphi 0, %s336
      %s354 = sphi 0, %s354
      %s356 = sphi 0, %s354
      %s357 = sphi 0, %s356
      %s371 = sphi 0, %s357
      %s375 = sphi 0, %s375
      %s377 = sphi 0, %s375
      %s378 = sphi 0, %s377
      %s392 = sphi 0, %s378
      %s398 = sphi 0, %s400
      %s401 = sphi 0, %s398
      %s402 = sphi 0, %s401
      %s418 = sphi 0, %s402
    $region4: #{effnet_model_forward.1} parent=1 // loop_header_branch
      %29 = sbr.rel (%p27) target = $region8
    $region5: #{effnet_model_forward.1} parent=1 // loop_body
      %s31 = ssub.s32 %s26, 1
      %s32 = ssub.s32 %s26, 2
      %s33 = sadd.s32 %s26, 1
      %s34 = ssub.s32 %s26, %s33
      %p35 = scmp.eq.s32.totalorder %s34, 0
      %s37 = sadd.s32 %s36, 1
      %s38 = scalar_select %p35, %s36, %s37
      %p41 = pneg %p35
      %p42 = scmp.eq.s32.totalorder %s26, 1
      %p43 = por %p41, %p42
      %p44 = scmp.ne.s32.totalorder %s36, %s39
      %p45 = scmp.eq.s32.totalorder %s26, 0
      %p46 = por %p44, %p45
      %p47 = scmp.ne.s32.totalorder %s36, %s39
      %p48 = scmp.eq.s32.totalorder %s31, 1
      %p49 = por %p47, %p48
      %p50 = scmp.ne.s32.totalorder %s39, %s40
      %p51 = scmp.eq.s32.totalorder %s31, 0
      %p52 = por %p50, %p51
      %p53 = scmp.ne.s32.totalorder %s39, %s40
      %p54 = scmp.eq.s32.totalorder %s32, 1
      %p55 = por %p53, %p54
      %p57 = scmp.ne.s32.totalorder %s40, %s56
      %p58 = scmp.eq.s32.totalorder %s32, 0
      %p59 = por %p57, %p58
      %s61 = sadd.s32 %s60, 1
      %p64 = scmp.eq.s32.totalorder %s26, 1
      %p65 = scmp.ne.s32.totalorder %s60, %s62
      %p66 = scmp.eq.s32.totalorder %s26, 0
      %p67 = por %p65, %p66
      %p68 = scmp.ne.s32.totalorder %s60, %s62
      %p69 = scmp.eq.s32.totalorder %s31, 1
      %p70 = por %p68, %p69
      %p71 = scmp.ne.s32.totalorder %s62, %s63
      %p72 = scmp.eq.s32.totalorder %s31, 0
      %p73 = por %p71, %p72
      %p74 = scmp.ne.s32.totalorder %s62, %s63
      %p75 = scmp.eq.s32.totalorder %s32, 1
      %p76 = por %p74, %p75
      %p78 = scmp.ne.s32.totalorder %s63, %s77
      %p79 = scmp.eq.s32.totalorder %s32, 0
      %p80 = por %p78, %p79
      %s82 = sadd.s32 %s81, 1
      %p85 = scmp.eq.s32.totalorder %s26, 1
      %p86 = scmp.ne.s32.totalorder %s81, %s83
      %p87 = scmp.eq.s32.totalorder %s26, 0
      %p88 = por %p86, %p87
      %p89 = scmp.ne.s32.totalorder %s81, %s83
      %p90 = scmp.eq.s32.totalorder %s31, 1
      %p91 = por %p89, %p90
      %p92 = scmp.ne.s32.totalorder %s83, %s84
      %p93 = scmp.eq.s32.totalorder %s31, 0
      %p94 = por %p92, %p93
      %p95 = scmp.ne.s32.totalorder %s83, %s84
      %p96 = scmp.eq.s32.totalorder %s32, 1
      %p97 = por %p95, %p96
      %p99 = scmp.ne.s32.totalorder %s84, %s98
      %p100 = scmp.eq.s32.totalorder %s32, 0
      %p101 = por %p99, %p100
      %s103 = sadd.s32 %s102, 1
      %p106 = scmp.eq.s32.totalorder %s26, 1
      %p107 = scmp.ne.s32.totalorder %s102, %s104
      %p108 = scmp.eq.s32.totalorder %s26, 0
      %p109 = por %p107, %p108
      %p110 = scmp.ne.s32.totalorder %s102, %s104
      %p111 = scmp.eq.s32.totalorder %s31, 1
      %p112 = por %p110, %p111
      %p113 = scmp.ne.s32.totalorder %s104, %s105
      %p114 = scmp.eq.s32.totalorder %s31, 0
      %p115 = por %p113, %p114
      %p116 = scmp.ne.s32.totalorder %s104, %s105
      %p117 = scmp.eq.s32.totalorder %s32, 1
      %p118 = por %p116, %p117
      %p120 = scmp.ne.s32.totalorder %s105, %s119
      %p121 = scmp.eq.s32.totalorder %s32, 0
      %p122 = por %p120, %p121
      %s124 = sadd.s32 %s123, 1
      %p127 = scmp.eq.s32.totalorder %s26, 1
      %p128 = scmp.ne.s32.totalorder %s123, %s125
      %p129 = scmp.eq.s32.totalorder %s26, 0
      %p130 = por %p128, %p129
      %p131 = scmp.ne.s32.totalorder %s123, %s125
      %p132 = scmp.eq.s32.totalorder %s31, 1
      %p133 = por %p131, %p132
      %p134 = scmp.ne.s32.totalorder %s125, %s126
      %p135 = scmp.eq.s32.totalorder %s31, 0
      %p136 = por %p134, %p135
      %p137 = scmp.ne.s32.totalorder %s125, %s126
      %p138 = scmp.eq.s32.totalorder %s32, 1
      %p139 = por %p137, %p138
      %p141 = scmp.ne.s32.totalorder %s126, %s140
      %p142 = scmp.eq.s32.totalorder %s32, 0
      %p143 = por %p141, %p142
      %s145 = sadd.s32 %s144, 1
      %p148 = scmp.eq.s32.totalorder %s26, 1
      %p149 = scmp.ne.s32.totalorder %s144, %s146
      %p150 = scmp.eq.s32.totalorder %s26, 0
      %p151 = por %p149, %p150
      %p152 = scmp.ne.s32.totalorder %s144, %s146
      %p153 = scmp.eq.s32.totalorder %s31, 1
      %p154 = por %p152, %p153
      %p155 = scmp.ne.s32.totalorder %s146, %s147
      %p156 = scmp.eq.s32.totalorder %s31, 0
      %p157 = por %p155, %p156
      %p158 = scmp.ne.s32.totalorder %s146, %s147
      %p159 = scmp.eq.s32.totalorder %s32, 1
      %p160 = por %p158, %p159
      %p162 = scmp.ne.s32.totalorder %s147, %s161
      %p163 = scmp.eq.s32.totalorder %s32, 0
      %p164 = por %p162, %p163
      %s166 = sadd.s32 %s165, 1
      %p169 = scmp.eq.s32.totalorder %s26, 1
      %p170 = scmp.ne.s32.totalorder %s165, %s167
      %p171 = scmp.eq.s32.totalorder %s26, 0
      %p172 = por %p170, %p171
      %p173 = scmp.ne.s32.totalorder %s165, %s167
      %p174 = scmp.eq.s32.totalorder %s31, 1
      %p175 = por %p173, %p174
      %p176 = scmp.ne.s32.totalorder %s167, %s168
      %p177 = scmp.eq.s32.totalorder %s31, 0
      %p178 = por %p176, %p177
      %p179 = scmp.ne.s32.totalorder %s167, %s168
      %p180 = scmp.eq.s32.totalorder %s32, 1
      %p181 = por %p179, %p180
      %p183 = scmp.ne.s32.totalorder %s168, %s182
      %p184 = scmp.eq.s32.totalorder %s32, 0
      %p185 = por %p183, %p184
      %s187 = sadd.s32 %s186, 1
      %p190 = scmp.eq.s32.totalorder %s26, 1
      %p191 = scmp.ne.s32.totalorder %s186, %s188
      %p192 = scmp.eq.s32.totalorder %s26, 0
      %p193 = por %p191, %p192
      %p194 = scmp.ne.s32.totalorder %s186, %s188
      %p195 = scmp.eq.s32.totalorder %s31, 1
      %p196 = por %p194, %p195
      %p197 = scmp.ne.s32.totalorder %s188, %s189
      %p198 = scmp.eq.s32.totalorder %s31, 0
      %p199 = por %p197, %p198
      %p200 = scmp.ne.s32.totalorder %s188, %s189
      %p201 = scmp.eq.s32.totalorder %s32, 1
      %p202 = por %p200, %p201
      %p204 = scmp.ne.s32.totalorder %s189, %s203
      %p205 = scmp.eq.s32.totalorder %s32, 0
      %p206 = por %p204, %p205
      %s208 = sadd.s32 %s207, 1
      %p211 = scmp.eq.s32.totalorder %s26, 1
      %p212 = scmp.ne.s32.totalorder %s207, %s209
      %p213 = scmp.eq.s32.totalorder %s26, 0
      %p214 = por %p212, %p213
      %p215 = scmp.ne.s32.totalorder %s207, %s209
      %p216 = scmp.eq.s32.totalorder %s31, 1
      %p217 = por %p215, %p216
      %p218 = scmp.ne.s32.totalorder %s209, %s210
      %p219 = scmp.eq.s32.totalorder %s31, 0
      %p220 = por %p218, %p219
      %p221 = scmp.ne.s32.totalorder %s209, %s210
      %p222 = scmp.eq.s32.totalorder %s32, 1
      %p223 = por %p221, %p222
      %p225 = scmp.ne.s32.totalorder %s210, %s224
      %p226 = scmp.eq.s32.totalorder %s32, 0
      %p227 = por %p225, %p226
      %s229 = sadd.s32 %s228, 1
      %p232 = scmp.eq.s32.totalorder %s26, 1
      %p233 = scmp.ne.s32.totalorder %s228, %s230
      %p234 = scmp.eq.s32.totalorder %s26, 0
      %p235 = por %p233, %p234
      %p236 = scmp.ne.s32.totalorder %s228, %s230
      %p237 = scmp.eq.s32.totalorder %s31, 1
      %p238 = por %p236, %p237
      %p239 = scmp.ne.s32.totalorder %s230, %s231
      %p240 = scmp.eq.s32.totalorder %s31, 0
      %p241 = por %p239, %p240
      %p242 = scmp.ne.s32.totalorder %s230, %s231
      %p243 = scmp.eq.s32.totalorder %s32, 1
      %p244 = por %p242, %p243
      %p246 = scmp.ne.s32.totalorder %s231, %s245
      %p247 = scmp.eq.s32.totalorder %s32, 0
      %p248 = por %p246, %p247
      %s250 = sadd.s32 %s249, 1
      %p253 = scmp.eq.s32.totalorder %s26, 1
      %p254 = scmp.ne.s32.totalorder %s249, %s251
      %p255 = scmp.eq.s32.totalorder %s26, 0
      %p256 = por %p254, %p255
      %p257 = scmp.ne.s32.totalorder %s249, %s251
      %p258 = scmp.eq.s32.totalorder %s31, 1
      %p259 = por %p257, %p258
      %p260 = scmp.ne.s32.totalorder %s251, %s252
      %p261 = scmp.eq.s32.totalorder %s31, 0
      %p262 = por %p260, %p261
      %p263 = scmp.ne.s32.totalorder %s251, %s252
      %p264 = scmp.eq.s32.totalorder %s32, 1
      %p265 = por %p263, %p264
      %p267 = scmp.ne.s32.totalorder %s252, %s266
      %p268 = scmp.eq.s32.totalorder %s32, 0
      %p269 = por %p267, %p268
      %s271 = sadd.s32 %s270, 1
      %p274 = scmp.eq.s32.totalorder %s26, 1
      %p275 = scmp.ne.s32.totalorder %s270, %s272
      %p276 = scmp.eq.s32.totalorder %s26, 0
      %p277 = por %p275, %p276
      %p278 = scmp.ne.s32.totalorder %s270, %s272
      %p279 = scmp.eq.s32.totalorder %s31, 1
      %p280 = por %p278, %p279
      %p281 = scmp.ne.s32.totalorder %s272, %s273
      %p282 = scmp.eq.s32.totalorder %s31, 0
      %p283 = por %p281, %p282
      %p284 = scmp.ne.s32.totalorder %s272, %s273
      %p285 = scmp.eq.s32.totalorder %s32, 1
      %p286 = por %p284, %p285
      %p288 = scmp.ne.s32.totalorder %s273, %s287
      %p289 = scmp.eq.s32.totalorder %s32, 0
      %p290 = por %p288, %p289
      %s292 = sadd.s32 %s291, 1
      %p295 = scmp.eq.s32.totalorder %s26, 1
      %p296 = scmp.ne.s32.totalorder %s291, %s293
      %p297 = scmp.eq.s32.totalorder %s26, 0
      %p298 = por %p296, %p297
      %p299 = scmp.ne.s32.totalorder %s291, %s293
      %p300 = scmp.eq.s32.totalorder %s31, 1
      %p301 = por %p299, %p300
      %p302 = scmp.ne.s32.totalorder %s293, %s294
      %p303 = scmp.eq.s32.totalorder %s31, 0
      %p304 = por %p302, %p303
      %p305 = scmp.ne.s32.totalorder %s293, %s294
      %p306 = scmp.eq.s32.totalorder %s32, 1
      %p307 = por %p305, %p306
      %p309 = scmp.ne.s32.totalorder %s294, %s308
      %p310 = scmp.eq.s32.totalorder %s32, 0
      %p311 = por %p309, %p310
      %s313 = sadd.s32 %s312, 1
      %p316 = scmp.eq.s32.totalorder %s26, 1
      %p317 = scmp.ne.s32.totalorder %s312, %s314
      %p318 = scmp.eq.s32.totalorder %s26, 0
      %p319 = por %p317, %p318
      %p320 = scmp.ne.s32.totalorder %s312, %s314
      %p321 = scmp.eq.s32.totalorder %s31, 1
      %p322 = por %p320, %p321
      %p323 = scmp.ne.s32.totalorder %s314, %s315
      %p324 = scmp.eq.s32.totalorder %s31, 0
      %p325 = por %p323, %p324
      %p326 = scmp.ne.s32.totalorder %s314, %s315
      %p327 = scmp.eq.s32.totalorder %s32, 1
      %p328 = por %p326, %p327
      %p330 = scmp.ne.s32.totalorder %s315, %s329
      %p331 = scmp.eq.s32.totalorder %s32, 0
      %p332 = por %p330, %p331
      %s334 = sadd.s32 %s333, 1
      %p337 = scmp.eq.s32.totalorder %s26, 1
      %p338 = scmp.ne.s32.totalorder %s333, %s335
      %p339 = scmp.eq.s32.totalorder %s26, 0
      %p340 = por %p338, %p339
      %p341 = scmp.ne.s32.totalorder %s333, %s335
      %p342 = scmp.eq.s32.totalorder %s31, 1
      %p343 = por %p341, %p342
      %p344 = scmp.ne.s32.totalorder %s335, %s336
      %p345 = scmp.eq.s32.totalorder %s31, 0
      %p346 = por %p344, %p345
      %p347 = scmp.ne.s32.totalorder %s335, %s336
      %p348 = scmp.eq.s32.totalorder %s32, 1
      %p349 = por %p347, %p348
      %p351 = scmp.ne.s32.totalorder %s336, %s350
      %p352 = scmp.eq.s32.totalorder %s32, 0
      %p353 = por %p351, %p352
      %s355 = sadd.s32 %s354, 1
      %p358 = scmp.eq.s32.totalorder %s26, 1
      %p359 = scmp.ne.s32.totalorder %s354, %s356
      %p360 = scmp.eq.s32.totalorder %s26, 0
      %p361 = por %p359, %p360
      %p362 = scmp.ne.s32.totalorder %s354, %s356
      %p363 = scmp.eq.s32.totalorder %s31, 1
      %p364 = por %p362, %p363
      %p365 = scmp.ne.s32.totalorder %s356, %s357
      %p366 = scmp.eq.s32.totalorder %s31, 0
      %p367 = por %p365, %p366
      %p368 = scmp.ne.s32.totalorder %s356, %s357
      %p369 = scmp.eq.s32.totalorder %s32, 1
      %p370 = por %p368, %p369
      %p372 = scmp.ne.s32.totalorder %s357, %s371
      %p373 = scmp.eq.s32.totalorder %s32, 0
      %p374 = por %p372, %p373
      %s376 = sadd.s32 %s375, 1
      %p379 = scmp.eq.s32.totalorder %s26, 1
      %p380 = scmp.ne.s32.totalorder %s375, %s377
      %p381 = scmp.eq.s32.totalorder %s26, 0
      %p382 = por %p380, %p381
      %p383 = scmp.ne.s32.totalorder %s375, %s377
      %p384 = scmp.eq.s32.totalorder %s31, 1
      %p385 = por %p383, %p384
      %p386 = scmp.ne.s32.totalorder %s377, %s378
      %p387 = scmp.eq.s32.totalorder %s31, 0
      %p388 = por %p386, %p387
      %p389 = scmp.ne.s32.totalorder %s377, %s378
      %p390 = scmp.eq.s32.totalorder %s32, 1
      %p391 = por %p389, %p390
      %p393 = scmp.ne.s32.totalorder %s378, %s392
      %p394 = scmp.eq.s32.totalorder %s32, 0
      %p395 = por %p393, %p394
      %s396 = ssub.s32 %s26, %s33
      %p397 = scmp.eq.s32.totalorder %s396, 0
      %s399 = sadd.s32 %s398, 1
      %s400 = scalar_select %p397, %s398, %s399
      %p403 = pneg %p397
      %p404 = scmp.eq.s32.totalorder %s26, 1
      %p405 = por %p403, %p404
      %p406 = scmp.ne.s32.totalorder %s398, %s401
      %p407 = scmp.eq.s32.totalorder %s26, 0
      %p408 = por %p406, %p407
      %p409 = scmp.ne.s32.totalorder %s398, %s401
      %p410 = scmp.eq.s32.totalorder %s31, 1
      %p411 = por %p409, %p410
      %p412 = scmp.ne.s32.totalorder %s401, %s402
      %p413 = scmp.eq.s32.totalorder %s31, 0
      %p414 = por %p412, %p413
      %p415 = scmp.ne.s32.totalorder %s401, %s402
      %p416 = scmp.eq.s32.totalorder %s32, 1
      %p417 = por %p415, %p416
      %p419 = scmp.ne.s32.totalorder %s402, %s418
      %p420 = scmp.eq.s32.totalorder %s32, 0
      %p421 = por %p419, %p420
      %p422 = scmp.le.s32.totalorder 1, %s26
      %p423 = scmp.lt.s32.totalorder %s26, 3
      %p424 = pnand %p422, %p423
      %p425 = pneg %p424
      // Predicated region
      $region9: #{effnet_model_forward.1} parent=5 // pred_check
        _
      $region10: #{effnet_model_forward.1} parent=5 // pred_check_branch
        %427 = sbr.rel (%p424) target = $region12
      $region11: #{effnet_model_forward.1} parent=5 // pred_region
        %s428 = ssub.s32 %s26, 1
        // Predicated region
        $region13: #{effnet_model_forward.1} parent=11 // pred_check
          %p429 = pneg %p73
        $region14: #{effnet_model_forward.1} parent=11 // pred_check_branch
          %431 = sbr.rel (%p429) target = $region16
        $region15: #{effnet_model_forward.1} parent=11 // pred_region
          _
        $region16: #{effnet_model_forward.1} parent=11 // pred_fallthru
          _
        // Predicated region
        $region17: #{effnet_model_forward.1} parent=11 // pred_check
          %p432 = pneg %p94
        $region18: #{effnet_model_forward.1} parent=11 // pred_check_branch
          %434 = sbr.rel (%p432) target = $region20
        $region19: #{effnet_model_forward.1} parent=11 // pred_region
          _
        $region20: #{effnet_model_forward.1} parent=11 // pred_fallthru
          _
        // Predicated region
        $region21: #{effnet_model_forward.1} parent=11 // pred_check
          %p435 = pneg %p115
        $region22: #{effnet_model_forward.1} parent=11 // pred_check_branch
          %437 = sbr.rel (%p435) target = $region24
        $region23: #{effnet_model_forward.1} parent=11 // pred_region
          _
        $region24: #{effnet_model_forward.1} parent=11 // pred_fallthru
          _
        // Predicated region
        $region25: #{effnet_model_forward.1} parent=11 // pred_check
          %p438 = pneg %p136
        $region26: #{effnet_model_forward.1} parent=11 // pred_check_branch
          %440 = sbr.rel (%p438) target = $region28
        $region27: #{effnet_model_forward.1} parent=11 // pred_region
          _
        $region28: #{effnet_model_forward.1} parent=11 // pred_fallthru
          _
        // Predicated region
        $region29: #{effnet_model_forward.1} parent=11 // pred_check
          %p441 = pneg %p157
        $region30: #{effnet_model_forward.1} parent=11 // pred_check_branch
          %443 = sbr.rel (%p441) target = $region32
        $region31: #{effnet_model_forward.1} parent=11 // pred_region
          _
        $region32: #{effnet_model_forward.1} parent=11 // pred_fallthru
          _
        // Predicated region
        $region33: #{effnet_model_forward.1} parent=11 // pred_check
          %p444 = pneg %p178
        $region34: #{effnet_model_forward.1} parent=11 // pred_check_branch
          %446 = sbr.rel (%p444) target = $region36
        $region35: #{effnet_model_forward.1} parent=11 // pred_region
          _
        $region36: #{effnet_model_forward.1} parent=11 // pred_fallthru
          _
        // Predicated region
        $region37: #{effnet_model_forward.1} parent=11 // pred_check
          %p447 = pneg %p199
        $region38: #{effnet_model_forward.1} parent=11 // pred_check_branch
          %449 = sbr.rel (%p447) target = $region40
        $region39: #{effnet_model_forward.1} parent=11 // pred_region
          _
        $region40: #{effnet_model_forward.1} parent=11 // pred_fallthru
          _
        // Predicated region
        $region41: #{effnet_model_forward.1} parent=11 // pred_check
          %p450 = pneg %p220
        $region42: #{effnet_model_forward.1} parent=11 // pred_check_branch
          %452 = sbr.rel (%p450) target = $region44
        $region43: #{effnet_model_forward.1} parent=11 // pred_region
          _
        $region44: #{effnet_model_forward.1} parent=11 // pred_fallthru
          _
        // Predicated region
        $region45: #{effnet_model_forward.1} parent=11 // pred_check
          %p453 = pneg %p241
        $region46: #{effnet_model_forward.1} parent=11 // pred_check_branch
          %455 = sbr.rel (%p453) target = $region48
        $region47: #{effnet_model_forward.1} parent=11 // pred_region
          _
        $region48: #{effnet_model_forward.1} parent=11 // pred_fallthru
          _
        // Predicated region
        $region49: #{effnet_model_forward.1} parent=11 // pred_check
          %p456 = pneg %p262
        $region50: #{effnet_model_forward.1} parent=11 // pred_check_branch
          %458 = sbr.rel (%p456) target = $region52
        $region51: #{effnet_model_forward.1} parent=11 // pred_region
          _
        $region52: #{effnet_model_forward.1} parent=11 // pred_fallthru
          _
        // Predicated region
        $region53: #{effnet_model_forward.1} parent=11 // pred_check
          %p459 = pneg %p283
        $region54: #{effnet_model_forward.1} parent=11 // pred_check_branch
          %461 = sbr.rel (%p459) target = $region56
        $region55: #{effnet_model_forward.1} parent=11 // pred_region
          _
        $region56: #{effnet_model_forward.1} parent=11 // pred_fallthru
          _
        // Predicated region
        $region57: #{effnet_model_forward.1} parent=11 // pred_check
          %p462 = pneg %p304
        $region58: #{effnet_model_forward.1} parent=11 // pred_check_branch
          %464 = sbr.rel (%p462) target = $region60
        $region59: #{effnet_model_forward.1} parent=11 // pred_region
          _
        $region60: #{effnet_model_forward.1} parent=11 // pred_fallthru
          _
        // Predicated region
        $region61: #{effnet_model_forward.1} parent=11 // pred_check
          %p465 = pneg %p325
        $region62: #{effnet_model_forward.1} parent=11 // pred_check_branch
          %467 = sbr.rel (%p465) target = $region64
        $region63: #{effnet_model_forward.1} parent=11 // pred_region
          _
        $region64: #{effnet_model_forward.1} parent=11 // pred_fallthru
          _
        // Predicated region
        $region65: #{effnet_model_forward.1} parent=11 // pred_check
          %p468 = pneg %p346
        $region66: #{effnet_model_forward.1} parent=11 // pred_check_branch
          %470 = sbr.rel (%p468) target = $region68
        $region67: #{effnet_model_forward.1} parent=11 // pred_region
          _
        $region68: #{effnet_model_forward.1} parent=11 // pred_fallthru
          _
        // Predicated region
        $region69: #{effnet_model_forward.1} parent=11 // pred_check
          %p471 = pneg %p367
        $region70: #{effnet_model_forward.1} parent=11 // pred_check_branch
          %473 = sbr.rel (%p471) target = $region72
        $region71: #{effnet_model_forward.1} parent=11 // pred_region
          _
        $region72: #{effnet_model_forward.1} parent=11 // pred_fallthru
          _
        // Predicated region
        $region73: #{effnet_model_forward.1} parent=11 // pred_check
          %p474 = pneg %p388
        $region74: #{effnet_model_forward.1} parent=11 // pred_check_branch
          %476 = sbr.rel (%p474) target = $region76
        $region75: #{effnet_model_forward.1} parent=11 // pred_region
          _
        $region76: #{effnet_model_forward.1} parent=11 // pred_fallthru
          _
      $region12: #{effnet_model_forward.1} parent=5 // pred_fallthru
        _
      %p477 = scmp.lt.s32.totalorder %s26, 2
      // Predicated region
      $region77: #{effnet_model_forward.1} parent=5 // pred_check
        %p478 = pneg %p477
      $region78: #{effnet_model_forward.1} parent=5 // pred_check_branch
        %480 = sbr.rel (%p478) target = $region80
      $region79: #{effnet_model_forward.1} parent=5 // pred_region
        // Predicated region
        $region81: #{effnet_model_forward.1} parent=79 // pred_check
          %p481 = pneg %p46
        $region82: #{effnet_model_forward.1} parent=79 // pred_check_branch
          %483 = sbr.rel (%p481) target = $region84
        $region83: #{effnet_model_forward.1} parent=79 // pred_region
          %p484 = scmp.lt.s32.totalorder %s26, 1
          %s485 = scalar_select %p484, %s26, 1
          %s486 = smul.addr %s485, 8
          %s487 = smul.addr %s486, 8
          %s488 = scalar_lea.vmem %s0, %s487
        $region84: #{effnet_model_forward.1} parent=79 // pred_fallthru
          _
      $region80: #{effnet_model_forward.1} parent=5 // pred_fallthru
        _
      %p489 = scmp.le.s32.totalorder 1, %s26
      %p490 = scmp.lt.s32.totalorder %s26, 3
      %p491 = pnand %p489, %p490
      %p492 = pneg %p491
      // Predicated region
      $region85: #{effnet_model_forward.1} parent=5 // pred_check
        _
      $region86: #{effnet_model_forward.1} parent=5 // pred_check_branch
        %494 = sbr.rel (%p491) target = $region88
      $region87: #{effnet_model_forward.1} parent=5 // pred_region
        %s495 = ssub.s32 %s26, 1
        %p496 = scmp.lt.s32.totalorder %s31, 1
        %s497 = scalar_select %p496, %s31, 1
        %s498 = smul.addr %s497, 8
        %s499 = smul.addr %s498, 8
        %s500 = scalar_lea.vmem %s0, %s499
        %p501 = pneg %p52
        %p502 = pneg %p49
        %p503 = pneg %p73
        %p504 = pneg %p70
        %p505 = pneg %p94
        %p506 = pneg %p91
        %p507 = pneg %p115
        %p508 = pneg %p112
        %p509 = pneg %p136
        %p510 = pneg %p133
        %p511 = pneg %p157
        %p512 = pneg %p154
        %p513 = pneg %p178
        %p514 = pneg %p175
        %p515 = pneg %p199
        %p516 = pneg %p196
        %p517 = pneg %p220
        %p518 = pneg %p217
        %p519 = pneg %p241
        %p520 = pneg %p238
        %p521 = pneg %p262
        %p522 = pneg %p259
        %p523 = pneg %p283
        %p524 = pneg %p280
        %p525 = pneg %p304
        %p526 = pneg %p301
        %p527 = pneg %p325
        %p528 = pneg %p322
        %p529 = pneg %p346
        %p530 = pneg %p343
        %p531 = pneg %p367
        %p532 = pneg %p364
        %p533 = pneg %p388
        %p534 = pneg %p385
        %p535 = pneg %p414
        %p536 = pneg %p411
        %s537 = sand.u32 %s401, 1
        %s538 = scalar_lea.sflag [#allocation3], %s537
        %s539 = sand.u32 %s401, 1
        %s540 = scalar_lea.vmem [#allocation2], %s539
        %p541 = scmp.lt.s32.totalorder %s31, 1
        %s542 = scalar_select %p541, %s31, 1
        %s543 = smul.addr %s542, 8
        %s544 = smul.addr %s543, 8
        %s545 = scalar_lea.vmem %s0, %s544
        %v547 = vld [vmem:[%s545] sm:$0xff]
        %v548 = vld [vmem:[%s545 + $0x8] sm:$0xff]
        %v549 = vld [vmem:[%s545 + $0x10] sm:$0xff]
        %v550 = vld [vmem:[%s545 + $0x18] sm:$0xff]
        %v551 = vld [vmem:[%s545 + $0x20] sm:$0xff]
        %v552 = vld [vmem:[%s545 + $0x28] sm:$0xff]
        %v553 = vld [vmem:[%s545 + $0x30] sm:$0xff]
        %v554 = vld [vmem:[%s545 + $0x38] sm:$0xff]
        %v555 = vld [vmem:[%s1] sm:$0xff]
        %v556 = vld [vmem:[%s1 + $0x8] sm:$0xff]
        %v557 = vld [vmem:[%s1 + $0x10] sm:$0xff]
        %v558 = vld [vmem:[%s1 + $0x18] sm:$0x7]
        %v559 = vld [vmem:[%s2] sm:$0x1]
        %v561 = vlaneseq
        %v562 = vshrl.u32 %v561, 7
        %v563 = vsub.s32 0, %v562
        %v564 = vrot.slane %v559, %v563
        %vm566 = vcmask 220160
        %v568 = vsel %vm566, %v547, 0
        %v571 = vsel %vm566, %v548, 0
        %v574 = vsel %vm566, %v549, 0
        %v577 = vsel %vm566, %v550, 0
        %v580 = vsel %vm566, %v551, 0
        %v583 = vsel %vm566, %v552, 0
        %v586 = vsel %vm566, %v553, 0
        %v589 = vsel %vm566, %v554, 0
        %vm591 = vcmask 1042432
        %v593 = vsel %vm591, %v558, 0
        %595 = vmatprep.subr.mxu0 0.0
        %596 = vmatpush1.msra.mxu0 0.0
        %597 = vmatprep.subr.mxu0 0.0
        %598 = vmatpush1.msra.mxu0 0.0
        %599 = vmatprep.subr.mxu0 0.0
        %600 = vmatpush1.msra.mxu0 0.0
        %601 = vmatprep.subr.mxu0 0.0
        %602 = vmatpush1.msra.mxu0 0.0
        %603 = vmatprep.subr.mxu0 0.0
        %604 = vmatpush1.msra.mxu0 0.0
        %605 = vmatprep.subr.mxu0 0.0
        %606 = vmatpush1.msra.mxu0 0.0
        %607 = vmatprep.subr.mxu0 0.0
        %608 = vmatpush1.msra.mxu0 0.0
        %609 = vmatprep.subr.mxu0 0.0
        %610 = vmatpush1.msra.mxu0 0.0
        %611 = vmatprep.subr.mxu0 0.0
        %612 = vmatpush1.msra.mxu0 0.0
        %613 = vmatprep.subr.mxu0 0.0
        %614 = vmatpush1.msra.mxu0 0.0
        %615 = vmatprep.subr.mxu0 0.0
        %616 = vmatpush1.msra.mxu0 0.0
        %617 = vmatprep.subr.mxu0 0.0
        %618 = vmatpush1.msra.mxu0 0.0
        %619 = vmatprep.subr.mxu0 0.0
        %620 = vmatpush1.msra.mxu0 %v593
        %621 = vmatprep.subr.mxu0 0.0
        %622 = vmatpush1.msra.mxu0 %v557
        %623 = vmatprep.subr.mxu0 0.0
        %624 = vmatpush1.msra.mxu0 %v556
        %625 = vmatprep.subr.mxu0 0.0
        %626 = vmatpush1.msra.mxu0 %v555
        %627 = vmatprep.subr.mxu0 0.0
        %628 = vmatpush2.msra.mxu0 0.0
        %629 = vmatprep.subr.mxu0 0.0
        %630 = vmatpush2.msra.mxu0 0.0
        %631 = vmatprep.subr.mxu0 0.0
        %632 = vmatpush2.msra.mxu0 0.0
        %633 = vmatprep.subr.mxu0 0.0
        %634 = vmatpush2.msra.mxu0 0.0
        %635 = vmatprep.subr.mxu0 0.0
        %636 = vmatpush2.msra.mxu0 0.0
        %637 = vmatprep.subr.mxu0 0.0
        %638 = vmatpush2.msra.mxu0 0.0
        %639 = vmatprep.subr.mxu0 0.0
        %640 = vmatpush2.msra.mxu0 0.0
        %641 = vmatprep.subr.mxu0 0.0
        %642 = vmatpush2.msra.mxu0 0.0
        %643 = vmatprep.subr.mxu0 0.0
        %644 = vmatpush2.msra.mxu0 0.0
        %645 = vmatprep.subr.mxu0 0.0
        %646 = vmatpush2.msra.mxu0 0.0
        %647 = vmatprep.subr.mxu0 0.0
        %648 = vmatpush2.msra.mxu0 0.0
        %649 = vmatprep.subr.mxu0 0.0
        %650 = vmatpush2.msra.mxu0 0.0
        %651 = vmatprep.subr.mxu0 0.0
        %652 = vmatpush2.msra.mxu0 0.0
        %653 = vmatprep.subr.mxu0 0.0
        %654 = vmatpush2.msra.mxu0 0.0
        %655 = vmatprep.subr.mxu0 0.0
        %656 = vmatpush2.msra.mxu0 0.0
        %657 = vmatprep.subr.mxu0 0.0
        %658 = vmatpush2.msra.mxu0 0.0
        %659 = vmatprep.mubr.f32.mxu0 0.0
        %660 = vmatmul.mubr.f32.gmra.mxu0 %v568
        %v661 = vpop.f32.mrf.mxu0
        %v662 = vadd.f32 %v564, %v661
        %v663 = vpop.f32.mrf.mxu0
        %664 = vmatprep.mubr.f32.mxu0 0.0
        %665 = vmatmul.mubr.f32.gmra.mxu0 %v571
        %v666 = vpop.f32.mrf.mxu0
        %v667 = vadd.f32 %v564, %v666
        %v668 = vpop.f32.mrf.mxu0
        %669 = vmatprep.mubr.f32.mxu0 0.0
        %670 = vmatmul.mubr.f32.gmra.mxu0 %v574
        %v671 = vpop.f32.mrf.mxu0
        %v672 = vadd.f32 %v564, %v671
        %v673 = vpop.f32.mrf.mxu0
        %674 = vmatprep.mubr.f32.mxu0 0.0
        %675 = vmatmul.mubr.f32.gmra.mxu0 %v577
        %v676 = vpop.f32.mrf.mxu0
        %v677 = vadd.f32 %v564, %v676
        %v678 = vpop.f32.mrf.mxu0
        %679 = vmatprep.mubr.f32.mxu0 0.0
        %680 = vmatmul.mubr.f32.gmra.mxu0 %v580
        %v681 = vpop.f32.mrf.mxu0
        %v682 = vadd.f32 %v564, %v681
        %v683 = vpop.f32.mrf.mxu0
        %684 = vmatprep.mubr.f32.mxu0 0.0
        %685 = vmatmul.mubr.f32.gmra.mxu0 %v583
        %v686 = vpop.f32.mrf.mxu0
        %v687 = vadd.f32 %v564, %v686
        %v688 = vpop.f32.mrf.mxu0
        %689 = vmatprep.mubr.f32.mxu0 0.0
        %690 = vmatmul.mubr.f32.gmra.mxu0 %v586
        %v691 = vpop.f32.mrf.mxu0
        %v692 = vadd.f32 %v564, %v691
        %v693 = vpop.f32.mrf.mxu0
        %694 = vmatprep.mubr.f32.mxu0 0.0
        %695 = vmatmul.mubr.f32.gmra.mxu0 %v589
        %v696 = vpop.f32.mrf.mxu0
        %v697 = vadd.f32 %v564, %v696
        %v698 = vpop.f32.mrf.mxu0
        %699 = vdwg.mxu0
        %v700 = vsub.f32 0.0, %v662
        %v701 = vsub.f32 0.0, %v667
        %v702 = vsub.f32 0.0, %v672
        %v703 = vsub.f32 0.0, %v677
        %v704 = vsub.f32 0.0, %v682
        %v705 = vsub.f32 0.0, %v687
        %v706 = vsub.f32 0.0, %v692
        %v707 = vsub.f32 0.0, %v697
        %v708 = vmul.f32 %v700, 1.442695
        %v709 = vpow.pop %v708
        %v710 = vmul.f32 %v701, 1.442695
        %v711 = vpow.pop %v710
        %v712 = vmul.f32 %v702, 1.442695
        %v713 = vpow.pop %v712
        %v714 = vmul.f32 %v703, 1.442695
        %v715 = vpow.pop %v714
        %v716 = vmul.f32 %v704, 1.442695
        %v717 = vpow.pop %v716
        %v718 = vmul.f32 %v705, 1.442695
        %v719 = vpow.pop %v718
        %v720 = vmul.f32 %v706, 1.442695
        %v721 = vpow.pop %v720
        %v722 = vmul.f32 %v707, 1.442695
        %v723 = vpow.pop %v722
        %v724 = vadd.f32 %v709, 1.0
        %v725 = vadd.f32 %v711, 1.0
        %v726 = vadd.f32 %v713, 1.0
        %v727 = vadd.f32 %v715, 1.0
        %v728 = vadd.f32 %v717, 1.0
        %v729 = vadd.f32 %v719, 1.0
        %v730 = vadd.f32 %v721, 1.0
        %v731 = vadd.f32 %v723, 1.0
        %v732 = vrcp.pop %v724
        %v733 = vrcp.pop %v725
        %v734 = vrcp.pop %v726
        %v735 = vrcp.pop %v727
        %v736 = vrcp.pop %v728
        %v737 = vrcp.pop %v729
        %v738 = vrcp.pop %v730
        %v739 = vrcp.pop %v731
        %v740 = vmul.f32 %v662, %v732
        %v741 = vmul.f32 %v667, %v733
        %v742 = vmul.f32 %v672, %v734
        %v743 = vmul.f32 %v677, %v735
        %v744 = vmul.f32 %v682, %v736
        %v745 = vmul.f32 %v687, %v737
        %v746 = vmul.f32 %v692, %v738
        %v747 = vmul.f32 %v697, %v739
        %v748 = vld [vmem:[%s3] sm:$0xff]
        %v749 = vld [vmem:[%s3 + $0x8] sm:$0xff]
        %v750 = vld [vmem:[%s3 + $0x10] sm:$0xff]
        %v751 = vld [vmem:[%s3 + $0x18] sm:$0xff]
        %v752 = vld [vmem:[%s4] sm:$0x1]
        %v754 = vlaneseq
        %v755 = vshrl.u32 %v754, 7
        %v756 = vsub.s32 0, %v755
        %v757 = vrot.slane %v752, %v756
        %vm759 = vcmask 261120
        %v761 = vsel %vm759, %v740, 0
        %v764 = vsel %vm759, %v741, 0
        %v767 = vsel %vm759, %v742, 0
        %v770 = vsel %vm759, %v743, 0
        %v773 = vsel %vm759, %v744, 0
        %v776 = vsel %vm759, %v745, 0
        %v779 = vsel %vm759, %v746, 0
        %v782 = vsel %vm759, %v747, 0
        %784 = vmatprep.subr.mxu0 0.0
        %785 = vmatpush1.msra.mxu0 0.0
        %786 = vmatprep.subr.mxu0 0.0
        %787 = vmatpush1.msra.mxu0 0.0
        %788 = vmatprep.subr.mxu0 0.0
        %789 = vmatpush1.msra.mxu0 0.0
        %790 = vmatprep.subr.mxu0 0.0
        %791 = vmatpush1.msra.mxu0 0.0
        %792 = vmatprep.subr.mxu0 0.0
        %793 = vmatpush1.msra.mxu0 0.0
        %794 = vmatprep.subr.mxu0 0.0
        %795 = vmatpush1.msra.mxu0 0.0
        %796 = vmatprep.subr.mxu0 0.0
        %797 = vmatpush1.msra.mxu0 0.0
        %798 = vmatprep.subr.mxu0 0.0
        %799 = vmatpush1.msra.mxu0 0.0
        %800 = vmatprep.subr.mxu0 0.0
        %801 = vmatpush1.msra.mxu0 0.0
        %802 = vmatprep.subr.mxu0 0.0
        %803 = vmatpush1.msra.mxu0 0.0
        %804 = vmatprep.subr.mxu0 0.0
        %805 = vmatpush1.msra.mxu0 0.0
        %806 = vmatprep.subr.mxu0 0.0
        %807 = vmatpush1.msra.mxu0 0.0
        %808 = vmatprep.subr.mxu0 0.0
        %809 = vmatpush1.msra.mxu0 %v751
        %810 = vmatprep.subr.mxu0 0.0
        %811 = vmatpush1.msra.mxu0 %v750
        %812 = vmatprep.subr.mxu0 0.0
        %813 = vmatpush1.msra.mxu0 %v749
        %814 = vmatprep.subr.mxu0 0.0
        %815 = vmatpush1.msra.mxu0 %v748
        %816 = vmatprep.subr.mxu0 0.0
        %817 = vmatpush2.msra.mxu0 0.0
        %818 = vmatprep.subr.mxu0 0.0
        %819 = vmatpush2.msra.mxu0 0.0
        %820 = vmatprep.subr.mxu0 0.0
        %821 = vmatpush2.msra.mxu0 0.0
        %822 = vmatprep.subr.mxu0 0.0
        %823 = vmatpush2.msra.mxu0 0.0
        %824 = vmatprep.subr.mxu0 0.0
        %825 = vmatpush2.msra.mxu0 0.0
        %826 = vmatprep.subr.mxu0 0.0
        %827 = vmatpush2.msra.mxu0 0.0
        %828 = vmatprep.subr.mxu0 0.0
        %829 = vmatpush2.msra.mxu0 0.0
        %830 = vmatprep.subr.mxu0 0.0
        %831 = vmatpush2.msra.mxu0 0.0
        %832 = vmatprep.subr.mxu0 0.0
        %833 = vmatpush2.msra.mxu0 0.0
        %834 = vmatprep.subr.mxu0 0.0
        %835 = vmatpush2.msra.mxu0 0.0
        %836 = vmatprep.subr.mxu0 0.0
        %837 = vmatpush2.msra.mxu0 0.0
        %838 = vmatprep.subr.mxu0 0.0
        %839 = vmatpush2.msra.mxu0 0.0
        %840 = vmatprep.subr.mxu0 0.0
        %841 = vmatpush2.msra.mxu0 0.0
        %842 = vmatprep.subr.mxu0 0.0
        %843 = vmatpush2.msra.mxu0 0.0
        %844 = vmatprep.subr.mxu0 0.0
        %845 = vmatpush2.msra.mxu0 0.0
        %846 = vmatprep.subr.mxu0 0.0
        %847 = vmatpush2.msra.mxu0 0.0
        %848 = vmatprep.mubr.f32.mxu0 0.0
        %849 = vmatmul.mubr.f32.gmra.mxu0 %v761
        %v850 = vpop.f32.mrf.mxu0
        %v851 = vadd.f32 %v757, %v850
        %v852 = vpop.f32.mrf.mxu0
        %853 = vmatprep.mubr.f32.mxu0 0.0
        %854 = vmatmul.mubr.f32.gmra.mxu0 %v764
        %v855 = vpop.f32.mrf.mxu0
        %v856 = vadd.f32 %v757, %v855
        %v857 = vpop.f32.mrf.mxu0
        %858 = vmatprep.mubr.f32.mxu0 0.0
        %859 = vmatmul.mubr.f32.gmra.mxu0 %v767
        %v860 = vpop.f32.mrf.mxu0
        %v861 = vadd.f32 %v757, %v860
        %v862 = vpop.f32.mrf.mxu0
        %863 = vmatprep.mubr.f32.mxu0 0.0
        %864 = vmatmul.mubr.f32.gmra.mxu0 %v770
        %v865 = vpop.f32.mrf.mxu0
        %v866 = vadd.f32 %v757, %v865
        %v867 = vpop.f32.mrf.mxu0
        %868 = vmatprep.mubr.f32.mxu0 0.0
        %869 = vmatmul.mubr.f32.gmra.mxu0 %v773
        %v870 = vpop.f32.mrf.mxu0
        %v871 = vadd.f32 %v757, %v870
        %v872 = vpop.f32.mrf.mxu0
        %873 = vmatprep.mubr.f32.mxu0 0.0
        %874 = vmatmul.mubr.f32.gmra.mxu0 %v776
        %v875 = vpop.f32.mrf.mxu0
        %v876 = vadd.f32 %v757, %v875
        %v877 = vpop.f32.mrf.mxu0
        %878 = vmatprep.mubr.f32.mxu0 0.0
        %879 = vmatmul.mubr.f32.gmra.mxu0 %v779
        %v880 = vpop.f32.mrf.mxu0
        %v881 = vadd.f32 %v757, %v880
        %v882 = vpop.f32.mrf.mxu0
        %883 = vmatprep.mubr.f32.mxu0 0.0
        %884 = vmatmul.mubr.f32.gmra.mxu0 %v782
        %v885 = vpop.f32.mrf.mxu0
        %v886 = vadd.f32 %v757, %v885
        %v887 = vpop.f32.mrf.mxu0
        %888 = vdwg.mxu0
        %v889 = vsub.f32 0.0, %v851
        %v890 = vsub.f32 0.0, %v856
        %v891 = vsub.f32 0.0, %v861
        %v892 = vsub.f32 0.0, %v866
        %v893 = vsub.f32 0.0, %v871
        %v894 = vsub.f32 0.0, %v876
        %v895 = vsub.f32 0.0, %v881
        %v896 = vsub.f32 0.0, %v886
        %v897 = vmul.f32 %v889, 1.442695
        %v898 = vpow.pop %v897
        %v899 = vmul.f32 %v890, 1.442695
        %v900 = vpow.pop %v899
        %v901 = vmul.f32 %v891, 1.442695
        %v902 = vpow.pop %v901
        %v903 = vmul.f32 %v892, 1.442695
        %v904 = vpow.pop %v903
        %v905 = vmul.f32 %v893, 1.442695
        %v906 = vpow.pop %v905
        %v907 = vmul.f32 %v894, 1.442695
        %v908 = vpow.pop %v907
        %v909 = vmul.f32 %v895, 1.442695
        %v910 = vpow.pop %v909
        %v911 = vmul.f32 %v896, 1.442695
        %v912 = vpow.pop %v911
        %v913 = vadd.f32 %v898, 1.0
        %v914 = vadd.f32 %v900, 1.0
        %v915 = vadd.f32 %v902, 1.0
        %v916 = vadd.f32 %v904, 1.0
        %v917 = vadd.f32 %v906, 1.0
        %v918 = vadd.f32 %v908, 1.0
        %v919 = vadd.f32 %v910, 1.0
        %v920 = vadd.f32 %v912, 1.0
        %v921 = vrcp.pop %v913
        %v922 = vrcp.pop %v914
        %v923 = vrcp.pop %v915
        %v924 = vrcp.pop %v916
        %v925 = vrcp.pop %v917
        %v926 = vrcp.pop %v918
        %v927 = vrcp.pop %v919
        %v928 = vrcp.pop %v920
        %v929 = vmul.f32 %v851, %v921
        %v930 = vmul.f32 %v856, %v922
        %v931 = vmul.f32 %v861, %v923
        %v932 = vmul.f32 %v866, %v924
        %v933 = vmul.f32 %v871, %v925
        %v934 = vmul.f32 %v876, %v926
        %v935 = vmul.f32 %v881, %v927
        %v936 = vmul.f32 %v886, %v928
        %v937 = vlaneseq
        %v938 = vshrl.u32 %v937, 7
        %v939 = vadd.s32 %v938, 8
        %v940 = vadd.s32 %v938, 16
        %v941 = vadd.s32 %v938, 24
        %v942 = vadd.s32 %v938, 32
        %v943 = vadd.s32 %v938, 40
        %v944 = vadd.s32 %v938, 48
        %v945 = vadd.s32 %v938, 56
        %v946 = vand.u32 %v938, 7
        %v947 = vand.u32 %v939, 7
        %v948 = vand.u32 %v940, 7
        %v949 = vand.u32 %v941, 7
        %v950 = vand.u32 %v942, 7
        %v951 = vand.u32 %v943, 7
        %v952 = vand.u32 %v944, 7
        %v953 = vand.u32 %v945, 7
        %v954 = vld [vmem:[%s5] sm:$0xff]
        %v955 = vld [vmem:[%s5 + $0x8] sm:$0x1]
        %v956 = vrot.slane %v929, 7
        %v957 = vrot.slane %v930, 7
        %v958 = vrot.slane %v931, 7
        %v959 = vrot.slane %v932, 7
        %v960 = vrot.slane %v933, 7
        %v961 = vrot.slane %v934, 7
        %v962 = vrot.slane %v935, 7
        %v963 = vrot.slane %v936, 7
        %vm964 = vcmp.lt.s32.totalorder %v938, 1
        %v965 = vsel %vm964, %v962, %v963
        %v966 = vsel %vm964, %v961, %v962
        %v967 = vsel %vm964, %v960, %v961
        %v968 = vsel %vm964, %v959, %v960
        %v969 = vsel %vm964, %v958, %v959
        %v970 = vsel %vm964, %v957, %v958
        %v971 = vsel %vm964, %v956, %v957
        %v972 = vsel %vm964, %v963, %v956
        %vm973 = vcmp.ge.s32.totalorder %v938, 8
        %vm974 = vcmp.ge.s32.totalorder %v939, 8
        %vm975 = vcmp.ge.s32.totalorder %v940, 8
        %vm976 = vcmp.ge.s32.totalorder %v941, 8
        %vm977 = vcmp.ge.s32.totalorder %v942, 8
        %vm978 = vcmp.ge.s32.totalorder %v943, 8
        %vm979 = vcmp.ge.s32.totalorder %v944, 8
        %vm980 = vcmp.ge.s32.totalorder %v945, 8
        %vm981 = vcmp.lt.s32.totalorder %v938, 64
        %vm982 = vcmp.lt.s32.totalorder %v939, 64
        %vm983 = vcmp.lt.s32.totalorder %v940, 64
        %vm984 = vcmp.lt.s32.totalorder %v941, 64
        %vm985 = vcmp.lt.s32.totalorder %v942, 64
        %vm986 = vcmp.lt.s32.totalorder %v943, 64
        %vm987 = vcmp.lt.s32.totalorder %v944, 64
        %vm988 = vcmp.lt.s32.totalorder %v945, 64
        %vm989 = vmand %vm973, %vm981
        %vm990 = vmand %vm974, %vm982
        %vm991 = vmand %vm975, %vm983
        %vm992 = vmand %vm976, %vm984
        %vm993 = vmand %vm977, %vm985
        %vm994 = vmand %vm978, %vm986
        %vm995 = vmand %vm979, %vm987
        %vm996 = vmand %vm980, %vm988
        %v997 = vadd.s32 %v946, 4294967295
        %v998 = vadd.s32 %v947, 4294967295
        %v999 = vadd.s32 %v948, 4294967295
        %v1000 = vadd.s32 %v949, 4294967295
        %v1001 = vadd.s32 %v950, 4294967295
        %v1002 = vadd.s32 %v951, 4294967295
        %v1003 = vadd.s32 %v952, 4294967295
        %v1004 = vadd.s32 %v953, 4294967295
        %vm1005 = vcmp.ge.s32.totalorder %v997, 0
        %vm1006 = vcmp.ge.s32.totalorder %v998, 0
        %vm1007 = vcmp.ge.s32.totalorder %v999, 0
        %vm1008 = vcmp.ge.s32.totalorder %v1000, 0
        %vm1009 = vcmp.ge.s32.totalorder %v1001, 0
        %vm1010 = vcmp.ge.s32.totalorder %v1002, 0
        %vm1011 = vcmp.ge.s32.totalorder %v1003, 0
        %vm1012 = vcmp.ge.s32.totalorder %v1004, 0
        %vm1013 = vcmp.lt.s32.totalorder %v997, 8
        %vm1014 = vcmp.lt.s32.totalorder %v998, 8
        %vm1015 = vcmp.lt.s32.totalorder %v999, 8
        %vm1016 = vcmp.lt.s32.totalorder %v1000, 8
        %vm1017 = vcmp.lt.s32.totalorder %v1001, 8
        %vm1018 = vcmp.lt.s32.totalorder %v1002, 8
        %vm1019 = vcmp.lt.s32.totalorder %v1003, 8
        %vm1020 = vcmp.lt.s32.totalorder %v1004, 8
        %vm1021 = vmand %vm1005, %vm1013
        %vm1022 = vmand %vm1006, %vm1014
        %vm1023 = vmand %vm1007, %vm1015
        %vm1024 = vmand %vm1008, %vm1016
        %vm1025 = vmand %vm1009, %vm1017
        %vm1026 = vmand %vm1010, %vm1018
        %vm1027 = vmand %vm1011, %vm1019
        %vm1028 = vmand %vm1012, %vm1020
        %vm1029 = vmand %vm989, %vm1021
        %vm1030 = vmand %vm990, %vm1022
        %vm1031 = vmand %vm991, %vm1023
        %vm1032 = vmand %vm992, %vm1024
        %vm1033 = vmand %vm993, %vm1025
        %vm1034 = vmand %vm994, %vm1026
        %vm1035 = vmand %vm995, %vm1027
        %vm1036 = vmand %vm996, %vm1028
        %v1037 = vsel %vm1029, 1, 0
        %v1038 = vsel %vm1030, 1, 0
        %v1039 = vsel %vm1031, 1, 0
        %v1040 = vsel %vm1032, 1, 0
        %v1041 = vsel %vm1033, 1, 0
        %v1042 = vsel %vm1034, 1, 0
        %v1043 = vsel %vm1035, 1, 0
        %v1044 = vsel %vm1036, 1, 0
        %vm1045 = vcmp.eq.s32.totalorder %v1037, 1
        %vm1046 = vcmp.eq.s32.totalorder %v1038, 1
        %vm1047 = vcmp.eq.s32.totalorder %v1039, 1
        %vm1048 = vcmp.eq.s32.totalorder %v1040, 1
        %vm1049 = vcmp.eq.s32.totalorder %v1041, 1
        %vm1050 = vcmp.eq.s32.totalorder %v1042, 1
        %vm1051 = vcmp.eq.s32.totalorder %v1043, 1
        %vm1052 = vcmp.eq.s32.totalorder %v1044, 1
        %v1053 = vsel %vm1045, %v965, 0.0
        %v1054 = vsel %vm1046, %v972, 0.0
        %v1055 = vsel %vm1047, %v971, 0.0
        %v1056 = vsel %vm1048, %v970, 0.0
        %v1057 = vsel %vm1049, %v969, 0.0
        %v1058 = vsel %vm1050, %v968, 0.0
        %v1059 = vsel %vm1051, %v967, 0.0
        %v1060 = vsel %vm1052, %v966, 0.0
        %v1061 = vlaneseq
        %v1062 = vshrl.u32 %v1061, 7
        %v1063 = vsub.s32 0, %v1062
        %v1064 = vrot.slane %v954, %v1063
        %v1065 = vmul.f32 %v1053, %v1064
        %v1066 = vmul.f32 %v1054, %v1064
        %v1067 = vmul.f32 %v1055, %v1064
        %v1068 = vmul.f32 %v1056, %v1064
        %v1069 = vmul.f32 %v1057, %v1064
        %v1070 = vmul.f32 %v1058, %v1064
        %v1071 = vmul.f32 %v1059, %v1064
        %v1072 = vmul.f32 %v1060, %v1064
        %v1073 = vadd.f32 %v1065, 0.0
        %v1074 = vadd.f32 %v1066, 0.0
        %v1075 = vadd.f32 %v1067, 0.0
        %v1076 = vadd.f32 %v1068, 0.0
        %v1077 = vadd.f32 %v1069, 0.0
        %v1078 = vadd.f32 %v1070, 0.0
        %v1079 = vadd.f32 %v1071, 0.0
        %v1080 = vadd.f32 %v1072, 0.0
        %vm1081 = vcmp.ge.s32.totalorder %v946, 0
        %vm1082 = vcmp.ge.s32.totalorder %v947, 0
        %vm1083 = vcmp.ge.s32.totalorder %v948, 0
        %vm1084 = vcmp.ge.s32.totalorder %v949, 0
        %vm1085 = vcmp.ge.s32.totalorder %v950, 0
        %vm1086 = vcmp.ge.s32.totalorder %v951, 0
        %vm1087 = vcmp.ge.s32.totalorder %v952, 0
        %vm1088 = vcmp.ge.s32.totalorder %v953, 0
        %vm1089 = vcmp.lt.s32.totalorder %v946, 8
        %vm1090 = vcmp.lt.s32.totalorder %v947, 8
        %vm1091 = vcmp.lt.s32.totalorder %v948, 8
        %vm1092 = vcmp.lt.s32.totalorder %v949, 8
        %vm1093 = vcmp.lt.s32.totalorder %v950, 8
        %vm1094 = vcmp.lt.s32.totalorder %v951, 8
        %vm1095 = vcmp.lt.s32.totalorder %v952, 8
        %vm1096 = vcmp.lt.s32.totalorder %v953, 8
        %vm1097 = vmand %vm1081, %vm1089
        %vm1098 = vmand %vm1082, %vm1090
        %vm1099 = vmand %vm1083, %vm1091
        %vm1100 = vmand %vm1084, %vm1092
        %vm1101 = vmand %vm1085, %vm1093
        %vm1102 = vmand %vm1086, %vm1094
        %vm1103 = vmand %vm1087, %vm1095
        %vm1104 = vmand %vm1088, %vm1096
        %vm1105 = vmand %vm989, %vm1097
        %vm1106 = vmand %vm990, %vm1098
        %vm1107 = vmand %vm991, %vm1099
        %vm1108 = vmand %vm992, %vm1100
        %vm1109 = vmand %vm993, %vm1101
        %vm1110 = vmand %vm994, %vm1102
        %vm1111 = vmand %vm995, %vm1103
        %vm1112 = vmand %vm996, %vm1104
        %v1113 = vsel %vm1105, 1, 0
        %v1114 = vsel %vm1106, 1, 0
        %v1115 = vsel %vm1107, 1, 0
        %v1116 = vsel %vm1108, 1, 0
        %v1117 = vsel %vm1109, 1, 0
        %v1118 = vsel %vm1110, 1, 0
        %v1119 = vsel %vm1111, 1, 0
        %v1120 = vsel %vm1112, 1, 0
        %vm1121 = vcmp.eq.s32.totalorder %v1113, 1
        %vm1122 = vcmp.eq.s32.totalorder %v1114, 1
        %vm1123 = vcmp.eq.s32.totalorder %v1115, 1
        %vm1124 = vcmp.eq.s32.totalorder %v1116, 1
        %vm1125 = vcmp.eq.s32.totalorder %v1117, 1
        %vm1126 = vcmp.eq.s32.totalorder %v1118, 1
        %vm1127 = vcmp.eq.s32.totalorder %v1119, 1
        %vm1128 = vcmp.eq.s32.totalorder %v1120, 1
        %v1129 = vsel %vm1121, %v936, 0.0
        %v1130 = vsel %vm1122, %v929, 0.0
        %v1131 = vsel %vm1123, %v930, 0.0
        %v1132 = vsel %vm1124, %v931, 0.0
        %v1133 = vsel %vm1125, %v932, 0.0
        %v1134 = vsel %vm1126, %v933, 0.0
        %v1135 = vsel %vm1127, %v934, 0.0
        %v1136 = vsel %vm1128, %v935, 0.0
        %v1137 = vlaneseq
        %v1138 = vshrl.u32 %v1137, 7
        %v1139 = vsub.s32 1, %v1138
        %v1140 = vrot.slane %v954, %v1139
        %v1141 = vmul.f32 %v1129, %v1140
        %v1142 = vmul.f32 %v1130, %v1140
        %v1143 = vmul.f32 %v1131, %v1140
        %v1144 = vmul.f32 %v1132, %v1140
        %v1145 = vmul.f32 %v1133, %v1140
        %v1146 = vmul.f32 %v1134, %v1140
        %v1147 = vmul.f32 %v1135, %v1140
        %v1148 = vmul.f32 %v1136, %v1140
        %v1149 = vadd.f32 %v1073, %v1141
        %v1150 = vadd.f32 %v1074, %v1142
        %v1151 = vadd.f32 %v1075, %v1143
        %v1152 = vadd.f32 %v1076, %v1144
        %v1153 = vadd.f32 %v1077, %v1145
        %v1154 = vadd.f32 %v1078, %v1146
        %v1155 = vadd.f32 %v1079, %v1147
        %v1156 = vadd.f32 %v1080, %v1148
        %v1157 = vrot.slane %v929, 1
        %v1158 = vrot.slane %v930, 1
        %v1159 = vrot.slane %v931, 1
        %v1160 = vrot.slane %v932, 1
        %v1161 = vrot.slane %v933, 1
        %v1162 = vrot.slane %v934, 1
        %v1163 = vrot.slane %v935, 1
        %v1164 = vrot.slane %v936, 1
        %vm1165 = vcmp.lt.s32.totalorder %v938, 7
        %v1166 = vsel %vm1165, %v1163, %v1164
        %v1167 = vsel %vm1165, %v1162, %v1163
        %v1168 = vsel %vm1165, %v1161, %v1162
        %v1169 = vsel %vm1165, %v1160, %v1161
        %v1170 = vsel %vm1165, %v1159, %v1160
        %v1171 = vsel %vm1165, %v1158, %v1159
        %v1172 = vsel %vm1165, %v1157, %v1158
        %v1173 = vsel %vm1165, %v1164, %v1157
        %v1174 = vadd.s32 %v946, 1
        %v1175 = vadd.s32 %v947, 1
        %v1176 = vadd.s32 %v948, 1
        %v1177 = vadd.s32 %v949, 1
        %v1178 = vadd.s32 %v950, 1
        %v1179 = vadd.s32 %v951, 1
        %v1180 = vadd.s32 %v952, 1
        %v1181 = vadd.s32 %v953, 1
        %vm1182 = vcmp.ge.s32.totalorder %v1174, 0
        %vm1183 = vcmp.ge.s32.totalorder %v1175, 0
        %vm1184 = vcmp.ge.s32.totalorder %v1176, 0
        %vm1185 = vcmp.ge.s32.totalorder %v1177, 0
        %vm1186 = vcmp.ge.s32.totalorder %v1178, 0
        %vm1187 = vcmp.ge.s32.totalorder %v1179, 0
        %vm1188 = vcmp.ge.s32.totalorder %v1180, 0
        %vm1189 = vcmp.ge.s32.totalorder %v1181, 0
        %vm1190 = vcmp.lt.s32.totalorder %v1174, 8
        %vm1191 = vcmp.lt.s32.totalorder %v1175, 8
        %vm1192 = vcmp.lt.s32.totalorder %v1176, 8
        %vm1193 = vcmp.lt.s32.totalorder %v1177, 8
        %vm1194 = vcmp.lt.s32.totalorder %v1178, 8
        %vm1195 = vcmp.lt.s32.totalorder %v1179, 8
        %vm1196 = vcmp.lt.s32.totalorder %v1180, 8
        %vm1197 = vcmp.lt.s32.totalorder %v1181, 8
        %vm1198 = vmand %vm1182, %vm1190
        %vm1199 = vmand %vm1183, %vm1191
        %vm1200 = vmand %vm1184, %vm1192
        %vm1201 = vmand %vm1185, %vm1193
        %vm1202 = vmand %vm1186, %vm1194
        %vm1203 = vmand %vm1187, %vm1195
        %vm1204 = vmand %vm1188, %vm1196
        %vm1205 = vmand %vm1189, %vm1197
        %vm1206 = vmand %vm989, %vm1198
        %vm1207 = vmand %vm990, %vm1199
        %vm1208 = vmand %vm991, %vm1200
        %vm1209 = vmand %vm992, %vm1201
        %vm1210 = vmand %vm993, %vm1202
        %vm1211 = vmand %vm994, %vm1203
        %vm1212 = vmand %vm995, %vm1204
        %vm1213 = vmand %vm996, %vm1205
        %v1214 = vsel %vm1206, 1, 0
        %v1215 = vsel %vm1207, 1, 0
        %v1216 = vsel %vm1208, 1, 0
        %v1217 = vsel %vm1209, 1, 0
        %v1218 = vsel %vm1210, 1, 0
        %v1219 = vsel %vm1211, 1, 0
        %v1220 = vsel %vm1212, 1, 0
        %v1221 = vsel %vm1213, 1, 0
        %vm1222 = vcmp.eq.s32.totalorder %v1214, 1
        %vm1223 = vcmp.eq.s32.totalorder %v1215, 1
        %vm1224 = vcmp.eq.s32.totalorder %v1216, 1
        %vm1225 = vcmp.eq.s32.totalorder %v1217, 1
        %vm1226 = vcmp.eq.s32.totalorder %v1218, 1
        %vm1227 = vcmp.eq.s32.totalorder %v1219, 1
        %vm1228 = vcmp.eq.s32.totalorder %v1220, 1
        %vm1229 = vcmp.eq.s32.totalorder %v1221, 1
        %v1230 = vsel %vm1222, %v1173, 0.0
        %v1231 = vsel %vm1223, %v1172, 0.0
        %v1232 = vsel %vm1224, %v1171, 0.0
        %v1233 = vsel %vm1225, %v1170, 0.0
        %v1234 = vsel %vm1226, %v1169, 0.0
        %v1235 = vsel %vm1227, %v1168, 0.0
        %v1236 = vsel %vm1228, %v1167, 0.0
        %v1237 = vsel %vm1229, %v1166, 0.0
        %v1238 = vlaneseq
        %v1239 = vshrl.u32 %v1238, 7
        %v1240 = vsub.s32 2, %v1239
        %v1241 = vrot.slane %v954, %v1240
        %v1242 = vmul.f32 %v1230, %v1241
        %v1243 = vmul.f32 %v1231, %v1241
        %v1244 = vmul.f32 %v1232, %v1241
        %v1245 = vmul.f32 %v1233, %v1241
        %v1246 = vmul.f32 %v1234, %v1241
        %v1247 = vmul.f32 %v1235, %v1241
        %v1248 = vmul.f32 %v1236, %v1241
        %v1249 = vmul.f32 %v1237, %v1241
        %v1250 = vadd.f32 %v1149, %v1242
        %v1251 = vadd.f32 %v1150, %v1243
        %v1252 = vadd.f32 %v1151, %v1244
        %v1253 = vadd.f32 %v1152, %v1245
        %v1254 = vadd.f32 %v1153, %v1246
        %v1255 = vadd.f32 %v1154, %v1247
        %v1256 = vadd.f32 %v1155, %v1248
        %v1257 = vadd.f32 %v1156, %v1249
        %vm1258 = vcmp.ge.s32.totalorder %v938, 0
        %vm1259 = vcmp.ge.s32.totalorder %v939, 0
        %vm1260 = vcmp.ge.s32.totalorder %v940, 0
        %vm1261 = vcmp.ge.s32.totalorder %v941, 0
        %vm1262 = vcmp.ge.s32.totalorder %v942, 0
        %vm1263 = vcmp.ge.s32.totalorder %v943, 0
        %vm1264 = vcmp.ge.s32.totalorder %v944, 0
        %vm1265 = vcmp.ge.s32.totalorder %v945, 0
        %vm1266 = vmand %vm1258, %vm981
        %vm1267 = vmand %vm1259, %vm982
        %vm1268 = vmand %vm1260, %vm983
        %vm1269 = vmand %vm1261, %vm984
        %vm1270 = vmand %vm1262, %vm985
        %vm1271 = vmand %vm1263, %vm986
        %vm1272 = vmand %vm1264, %vm987
        %vm1273 = vmand %vm1265, %vm988
        %vm1274 = vmand %vm1266, %vm1021
        %vm1275 = vmand %vm1267, %vm1022
        %vm1276 = vmand %vm1268, %vm1023
        %vm1277 = vmand %vm1269, %vm1024
        %vm1278 = vmand %vm1270, %vm1025
        %vm1279 = vmand %vm1271, %vm1026
        %vm1280 = vmand %vm1272, %vm1027
        %vm1281 = vmand %vm1273, %vm1028
        %v1282 = vsel %vm1274, 1, 0
        %v1283 = vsel %vm1275, 1, 0
        %v1284 = vsel %vm1276, 1, 0
        %v1285 = vsel %vm1277, 1, 0
        %v1286 = vsel %vm1278, 1, 0
        %v1287 = vsel %vm1279, 1, 0
        %v1288 = vsel %vm1280, 1, 0
        %v1289 = vsel %vm1281, 1, 0
        %vm1290 = vcmp.eq.s32.totalorder %v1282, 1
        %vm1291 = vcmp.eq.s32.totalorder %v1283, 1
        %vm1292 = vcmp.eq.s32.totalorder %v1284, 1
        %vm1293 = vcmp.eq.s32.totalorder %v1285, 1
        %vm1294 = vcmp.eq.s32.totalorder %v1286, 1
        %vm1295 = vcmp.eq.s32.totalorder %v1287, 1
        %vm1296 = vcmp.eq.s32.totalorder %v1288, 1
        %vm1297 = vcmp.eq.s32.totalorder %v1289, 1
        %v1298 = vsel %vm1290, %v972, 0.0
        %v1299 = vsel %vm1291, %v971, 0.0
        %v1300 = vsel %vm1292, %v970, 0.0
        %v1301 = vsel %vm1293, %v969, 0.0
        %v1302 = vsel %vm1294, %v968, 0.0
        %v1303 = vsel %vm1295, %v967, 0.0
        %v1304 = vsel %vm1296, %v966, 0.0
        %v1305 = vsel %vm1297, %v965, 0.0
        %v1306 = vlaneseq
        %v1307 = vshrl.u32 %v1306, 7
        %v1308 = vsub.s32 3, %v1307
        %v1309 = vrot.slane %v954, %v1308
        %v1310 = vmul.f32 %v1298, %v1309
        %v1311 = vmul.f32 %v1299, %v1309
        %v1312 = vmul.f32 %v1300, %v1309
        %v1313 = vmul.f32 %v1301, %v1309
        %v1314 = vmul.f32 %v1302, %v1309
        %v1315 = vmul.f32 %v1303, %v1309
        %v1316 = vmul.f32 %v1304, %v1309
        %v1317 = vmul.f32 %v1305, %v1309
        %v1318 = vadd.f32 %v1250, %v1310
        %v1319 = vadd.f32 %v1251, %v1311
        %v1320 = vadd.f32 %v1252, %v1312
        %v1321 = vadd.f32 %v1253, %v1313
        %v1322 = vadd.f32 %v1254, %v1314
        %v1323 = vadd.f32 %v1255, %v1315
        %v1324 = vadd.f32 %v1256, %v1316
        %v1325 = vadd.f32 %v1257, %v1317
        %v1326 = vlaneseq
        %v1327 = vshrl.u32 %v1326, 7
        %v1328 = vsub.s32 4, %v1327
        %v1329 = vrot.slane %v954, %v1328
        %v1330 = vmul.f32 %v929, %v1329
        %v1331 = vmul.f32 %v930, %v1329
        %v1332 = vmul.f32 %v931, %v1329
        %v1333 = vmul.f32 %v932, %v1329
        %v1334 = vmul.f32 %v933, %v1329
        %v1335 = vmul.f32 %v934, %v1329
        %v1336 = vmul.f32 %v935, %v1329
        %v1337 = vmul.f32 %v936, %v1329
        %v1338 = vadd.f32 %v1318, %v1330
        %v1339 = vadd.f32 %v1319, %v1331
        %v1340 = vadd.f32 %v1320, %v1332
        %v1341 = vadd.f32 %v1321, %v1333
        %v1342 = vadd.f32 %v1322, %v1334
        %v1343 = vadd.f32 %v1323, %v1335
        %v1344 = vadd.f32 %v1324, %v1336
        %v1345 = vadd.f32 %v1325, %v1337
        %vm1346 = vmand %vm1266, %vm1198
        %vm1347 = vmand %vm1267, %vm1199
        %vm1348 = vmand %vm1268, %vm1200
        %vm1349 = vmand %vm1269, %vm1201
        %vm1350 = vmand %vm1270, %vm1202
        %vm1351 = vmand %vm1271, %vm1203
        %vm1352 = vmand %vm1272, %vm1204
        %vm1353 = vmand %vm1273, %vm1205
        %v1354 = vsel %vm1346, 1, 0
        %v1355 = vsel %vm1347, 1, 0
        %v1356 = vsel %vm1348, 1, 0
        %v1357 = vsel %vm1349, 1, 0
        %v1358 = vsel %vm1350, 1, 0
        %v1359 = vsel %vm1351, 1, 0
        %v1360 = vsel %vm1352, 1, 0
        %v1361 = vsel %vm1353, 1, 0
        %vm1362 = vcmp.eq.s32.totalorder %v1354, 1
        %vm1363 = vcmp.eq.s32.totalorder %v1355, 1
        %vm1364 = vcmp.eq.s32.totalorder %v1356, 1
        %vm1365 = vcmp.eq.s32.totalorder %v1357, 1
        %vm1366 = vcmp.eq.s32.totalorder %v1358, 1
        %vm1367 = vcmp.eq.s32.totalorder %v1359, 1
        %vm1368 = vcmp.eq.s32.totalorder %v1360, 1
        %vm1369 = vcmp.eq.s32.totalorder %v1361, 1
        %v1370 = vsel %vm1362, %v1172, 0.0
        %v1371 = vsel %vm1363, %v1171, 0.0
        %v1372 = vsel %vm1364, %v1170, 0.0
        %v1373 = vsel %vm1365, %v1169, 0.0
        %v1374 = vsel %vm1366, %v1168, 0.0
        %v1375 = vsel %vm1367, %v1167, 0.0
        %v1376 = vsel %vm1368, %v1166, 0.0
        %v1377 = vsel %vm1369, %v1173, 0.0
        %v1378 = vlaneseq
        %v1379 = vshrl.u32 %v1378, 7
        %v1380 = vsub.s32 5, %v1379
        %v1381 = vrot.slane %v954, %v1380
        %v1382 = vmul.f32 %v1370, %v1381
        %v1383 = vmul.f32 %v1371, %v1381
        %v1384 = vmul.f32 %v1372, %v1381
        %v1385 = vmul.f32 %v1373, %v1381
        %v1386 = vmul.f32 %v1374, %v1381
        %v1387 = vmul.f32 %v1375, %v1381
        %v1388 = vmul.f32 %v1376, %v1381
        %v1389 = vmul.f32 %v1377, %v1381
        %v1390 = vadd.f32 %v1338, %v1382
        %v1391 = vadd.f32 %v1339, %v1383
        %v1392 = vadd.f32 %v1340, %v1384
        %v1393 = vadd.f32 %v1341, %v1385
        %v1394 = vadd.f32 %v1342, %v1386
        %v1395 = vadd.f32 %v1343, %v1387
        %v1396 = vadd.f32 %v1344, %v1388
        %v1397 = vadd.f32 %v1345, %v1389
        %vm1398 = vcmp.lt.s32.totalorder %v938, 56
        %vm1399 = vcmp.lt.s32.totalorder %v939, 56
        %vm1400 = vcmp.lt.s32.totalorder %v940, 56
        %vm1401 = vcmp.lt.s32.totalorder %v941, 56
        %vm1402 = vcmp.lt.s32.totalorder %v942, 56
        %vm1403 = vcmp.lt.s32.totalorder %v943, 56
        %vm1404 = vcmp.lt.s32.totalorder %v944, 56
        %vm1405 = vcmp.lt.s32.totalorder %v945, 56
        %vm1406 = vmand %vm1258, %vm1398
        %vm1407 = vmand %vm1259, %vm1399
        %vm1408 = vmand %vm1260, %vm1400
        %vm1409 = vmand %vm1261, %vm1401
        %vm1410 = vmand %vm1262, %vm1402
        %vm1411 = vmand %vm1263, %vm1403
        %vm1412 = vmand %vm1264, %vm1404
        %vm1413 = vmand %vm1265, %vm1405
        %vm1414 = vmand %vm1406, %vm1021
        %vm1415 = vmand %vm1407, %vm1022
        %vm1416 = vmand %vm1408, %vm1023
        %vm1417 = vmand %vm1409, %vm1024
        %vm1418 = vmand %vm1410, %vm1025
        %vm1419 = vmand %vm1411, %vm1026
        %vm1420 = vmand %vm1412, %vm1027
        %vm1421 = vmand %vm1413, %vm1028
        %v1422 = vsel %vm1414, 1, 0
        %v1423 = vsel %vm1415, 1, 0
        %v1424 = vsel %vm1416, 1, 0
        %v1425 = vsel %vm1417, 1, 0
        %v1426 = vsel %vm1418, 1, 0
        %v1427 = vsel %vm1419, 1, 0
        %v1428 = vsel %vm1420, 1, 0
        %v1429 = vsel %vm1421, 1, 0
        %vm1430 = vcmp.eq.s32.totalorder %v1422, 1
        %vm1431 = vcmp.eq.s32.totalorder %v1423, 1
        %vm1432 = vcmp.eq.s32.totalorder %v1424, 1
        %vm1433 = vcmp.eq.s32.totalorder %v1425, 1
        %vm1434 = vcmp.eq.s32.totalorder %v1426, 1
        %vm1435 = vcmp.eq.s32.totalorder %v1427, 1
        %vm1436 = vcmp.eq.s32.totalorder %v1428, 1
        %vm1437 = vcmp.eq.s32.totalorder %v1429, 1
        %v1438 = vsel %vm1430, %v971, 0.0
        %v1439 = vsel %vm1431, %v970, 0.0
        %v1440 = vsel %vm1432, %v969, 0.0
        %v1441 = vsel %vm1433, %v968, 0.0
        %v1442 = vsel %vm1434, %v967, 0.0
        %v1443 = vsel %vm1435, %v966, 0.0
        %v1444 = vsel %vm1436, %v965, 0.0
        %v1445 = vsel %vm1437, %v972, 0.0
        %v1446 = vlaneseq
        %v1447 = vshrl.u32 %v1446, 7
        %v1448 = vsub.s32 6, %v1447
        %v1449 = vrot.slane %v954, %v1448
        %v1450 = vmul.f32 %v1438, %v1449
        %v1451 = vmul.f32 %v1439, %v1449
        %v1452 = vmul.f32 %v1440, %v1449
        %v1453 = vmul.f32 %v1441, %v1449
        %v1454 = vmul.f32 %v1442, %v1449
        %v1455 = vmul.f32 %v1443, %v1449
        %v1456 = vmul.f32 %v1444, %v1449
        %v1457 = vmul.f32 %v1445, %v1449
        %v1458 = vadd.f32 %v1390, %v1450
        %v1459 = vadd.f32 %v1391, %v1451
        %v1460 = vadd.f32 %v1392, %v1452
        %v1461 = vadd.f32 %v1393, %v1453
        %v1462 = vadd.f32 %v1394, %v1454
        %v1463 = vadd.f32 %v1395, %v1455
        %v1464 = vadd.f32 %v1396, %v1456
        %v1465 = vadd.f32 %v1397, %v1457
        %vm1466 = vmand %vm1406, %vm1097
        %vm1467 = vmand %vm1407, %vm1098
        %vm1468 = vmand %vm1408, %vm1099
        %vm1469 = vmand %vm1409, %vm1100
        %vm1470 = vmand %vm1410, %vm1101
        %vm1471 = vmand %vm1411, %vm1102
        %vm1472 = vmand %vm1412, %vm1103
        %vm1473 = vmand %vm1413, %vm1104
        %v1474 = vsel %vm1466, 1, 0
        %v1475 = vsel %vm1467, 1, 0
        %v1476 = vsel %vm1468, 1, 0
        %v1477 = vsel %vm1469, 1, 0
        %v1478 = vsel %vm1470, 1, 0
        %v1479 = vsel %vm1471, 1, 0
        %v1480 = vsel %vm1472, 1, 0
        %v1481 = vsel %vm1473, 1, 0
        %vm1482 = vcmp.eq.s32.totalorder %v1474, 1
        %vm1483 = vcmp.eq.s32.totalorder %v1475, 1
        %vm1484 = vcmp.eq.s32.totalorder %v1476, 1
        %vm1485 = vcmp.eq.s32.totalorder %v1477, 1
        %vm1486 = vcmp.eq.s32.totalorder %v1478, 1
        %vm1487 = vcmp.eq.s32.totalorder %v1479, 1
        %vm1488 = vcmp.eq.s32.totalorder %v1480, 1
        %vm1489 = vcmp.eq.s32.totalorder %v1481, 1
        %v1490 = vsel %vm1482, %v930, 0.0
        %v1491 = vsel %vm1483, %v931, 0.0
        %v1492 = vsel %vm1484, %v932, 0.0
        %v1493 = vsel %vm1485, %v933, 0.0
        %v1494 = vsel %vm1486, %v934, 0.0
        %v1495 = vsel %vm1487, %v935, 0.0
        %v1496 = vsel %vm1488, %v936, 0.0
        %v1497 = vsel %vm1489, %v929, 0.0
        %v1498 = vlaneseq
        %v1499 = vshrl.u32 %v1498, 7
        %v1500 = vsub.s32 7, %v1499
        %v1501 = vrot.slane %v954, %v1500
        %v1502 = vmul.f32 %v1490, %v1501
        %v1503 = vmul.f32 %v1491, %v1501
        %v1504 = vmul.f32 %v1492, %v1501
        %v1505 = vmul.f32 %v1493, %v1501
        %v1506 = vmul.f32 %v1494, %v1501
        %v1507 = vmul.f32 %v1495, %v1501
        %v1508 = vmul.f32 %v1496, %v1501
        %v1509 = vmul.f32 %v1497, %v1501
        %v1510 = vadd.f32 %v1458, %v1502
        %v1511 = vadd.f32 %v1459, %v1503
        %v1512 = vadd.f32 %v1460, %v1504
        %v1513 = vadd.f32 %v1461, %v1505
        %v1514 = vadd.f32 %v1462, %v1506
        %v1515 = vadd.f32 %v1463, %v1507
        %v1516 = vadd.f32 %v1464, %v1508
        %v1517 = vadd.f32 %v1465, %v1509
        %vm1518 = vmand %vm1406, %vm1198
        %vm1519 = vmand %vm1407, %vm1199
        %vm1520 = vmand %vm1408, %vm1200
        %vm1521 = vmand %vm1409, %vm1201
        %vm1522 = vmand %vm1410, %vm1202
        %vm1523 = vmand %vm1411, %vm1203
        %vm1524 = vmand %vm1412, %vm1204
        %vm1525 = vmand %vm1413, %vm1205
        %v1526 = vsel %vm1518, 1, 0
        %v1527 = vsel %vm1519, 1, 0
        %v1528 = vsel %vm1520, 1, 0
        %v1529 = vsel %vm1521, 1, 0
        %v1530 = vsel %vm1522, 1, 0
        %v1531 = vsel %vm1523, 1, 0
        %v1532 = vsel %vm1524, 1, 0
        %v1533 = vsel %vm1525, 1, 0
        %vm1534 = vcmp.eq.s32.totalorder %v1526, 1
        %vm1535 = vcmp.eq.s32.totalorder %v1527, 1
        %vm1536 = vcmp.eq.s32.totalorder %v1528, 1
        %vm1537 = vcmp.eq.s32.totalorder %v1529, 1
        %vm1538 = vcmp.eq.s32.totalorder %v1530, 1
        %vm1539 = vcmp.eq.s32.totalorder %v1531, 1
        %vm1540 = vcmp.eq.s32.totalorder %v1532, 1
        %vm1541 = vcmp.eq.s32.totalorder %v1533, 1
        %v1542 = vsel %vm1534, %v1171, 0.0
        %v1543 = vsel %vm1535, %v1170, 0.0
        %v1544 = vsel %vm1536, %v1169, 0.0
        %v1545 = vsel %vm1537, %v1168, 0.0
        %v1546 = vsel %vm1538, %v1167, 0.0
        %v1547 = vsel %vm1539, %v1166, 0.0
        %v1548 = vsel %vm1540, %v1173, 0.0
        %v1549 = vsel %vm1541, %v1172, 0.0
        %v1550 = vlaneseq
        %v1551 = vshrl.u32 %v1550, 7
        %v1552 = vsub.s32 0, %v1551
        %v1553 = vrot.slane %v955, %v1552
        %v1554 = vmul.f32 %v1542, %v1553
        %v1555 = vmul.f32 %v1543, %v1553
        %v1556 = vmul.f32 %v1544, %v1553
        %v1557 = vmul.f32 %v1545, %v1553
        %v1558 = vmul.f32 %v1546, %v1553
        %v1559 = vmul.f32 %v1547, %v1553
        %v1560 = vmul.f32 %v1548, %v1553
        %v1561 = vmul.f32 %v1549, %v1553
        %v1562 = vadd.f32 %v1510, %v1554
        %v1563 = vadd.f32 %v1511, %v1555
        %v1564 = vadd.f32 %v1512, %v1556
        %v1565 = vadd.f32 %v1513, %v1557
        %v1566 = vadd.f32 %v1514, %v1558
        %v1567 = vadd.f32 %v1515, %v1559
        %v1568 = vadd.f32 %v1516, %v1560
        %v1569 = vadd.f32 %v1517, %v1561
        %v1570 = vld [vmem:[%s6] sm:$0x1]
        %v1572 = vlaneseq
        %v1573 = vshrl.u32 %v1572, 7
        %v1574 = vsub.s32 0, %v1573
        %v1575 = vrot.slane %v1570, %v1574
        %v1577 = vadd.f32 %v1562, %v1575
        %v1578 = vadd.f32 %v1563, %v1575
        %v1579 = vadd.f32 %v1564, %v1575
        %v1580 = vadd.f32 %v1565, %v1575
        %v1581 = vadd.f32 %v1566, %v1575
        %v1582 = vadd.f32 %v1567, %v1575
        %v1583 = vadd.f32 %v1568, %v1575
        %v1584 = vadd.f32 %v1569, %v1575
        %v1585 = vsub.f32 0.0, %v1577
        %v1586 = vsub.f32 0.0, %v1578
        %v1587 = vsub.f32 0.0, %v1579
        %v1588 = vsub.f32 0.0, %v1580
        %v1589 = vsub.f32 0.0, %v1581
        %v1590 = vsub.f32 0.0, %v1582
        %v1591 = vsub.f32 0.0, %v1583
        %v1592 = vsub.f32 0.0, %v1584
        %v1593 = vmul.f32 %v1585, 1.442695
        %v1594 = vpow.pop %v1593
        %v1595 = vmul.f32 %v1586, 1.442695
        %v1596 = vpow.pop %v1595
        %v1597 = vmul.f32 %v1587, 1.442695
        %v1598 = vpow.pop %v1597
        %v1599 = vmul.f32 %v1588, 1.442695
        %v1600 = vpow.pop %v1599
        %v1601 = vmul.f32 %v1589, 1.442695
        %v1602 = vpow.pop %v1601
        %v1603 = vmul.f32 %v1590, 1.442695
        %v1604 = vpow.pop %v1603
        %v1605 = vmul.f32 %v1591, 1.442695
        %v1606 = vpow.pop %v1605
        %v1607 = vmul.f32 %v1592, 1.442695
        %v1608 = vpow.pop %v1607
        %v1609 = vadd.f32 %v1594, 1.0
        %v1610 = vadd.f32 %v1596, 1.0
        %v1611 = vadd.f32 %v1598, 1.0
        %v1612 = vadd.f32 %v1600, 1.0
        %v1613 = vadd.f32 %v1602, 1.0
        %v1614 = vadd.f32 %v1604, 1.0
        %v1615 = vadd.f32 %v1606, 1.0
        %v1616 = vadd.f32 %v1608, 1.0
        %v1617 = vrcp.pop %v1609
        %v1618 = vrcp.pop %v1610
        %v1619 = vrcp.pop %v1611
        %v1620 = vrcp.pop %v1612
        %v1621 = vrcp.pop %v1613
        %v1622 = vrcp.pop %v1614
        %v1623 = vrcp.pop %v1615
        %v1624 = vrcp.pop %v1616
        %v1625 = vmul.f32 %v1577, %v1617
        %v1626 = vmul.f32 %v1578, %v1618
        %v1627 = vmul.f32 %v1579, %v1619
        %v1628 = vmul.f32 %v1580, %v1620
        %v1629 = vmul.f32 %v1581, %v1621
        %v1630 = vmul.f32 %v1582, %v1622
        %v1631 = vmul.f32 %v1583, %v1623
        %v1632 = vmul.f32 %v1584, %v1624
        %v1633 = vadd.f32 %v1625, %v1626
        %v1634 = vadd.f32 %v1633, %v1627
        %v1635 = vadd.f32 %v1634, %v1628
        %v1636 = vadd.f32 %v1635, %v1629
        %v1637 = vadd.f32 %v1636, %v1630
        %v1638 = vadd.f32 %v1637, %v1631
        %v1639 = vadd.f32 %v1638, %v1632
        %v1640 = vrot.slane %v1639, 4
        %v1641 = vadd.f32 %v1639, %v1640
        %v1642 = vrot.slane %v1641, 2
        %v1643 = vadd.f32 %v1641, %v1642
        %v1644 = vrot.slane %v1643, 1
        %v1645 = vadd.f32 %v1643, %v1644
        %v1646 = vmul.f32 %v1645, 0.015625
        %v1647 = vld [vmem:[%s7] sm:$0xff]
        %v1648 = vld [vmem:[%s7 + $0x8] sm:$0xff]
        %v1649 = vld [vmem:[%s7 + $0x10] sm:$0xff]
        %v1650 = vld [vmem:[%s7 + $0x18] sm:$0xff]
        %v1651 = vld [vmem:[%s7 + $0x20] sm:$0xff]
        %v1652 = vld [vmem:[%s7 + $0x28] sm:$0xff]
        %v1653 = vld [vmem:[%s7 + $0x30] sm:$0xff]
        %v1654 = vld [vmem:[%s7 + $0x38] sm:$0xff]
        %v1655 = vld [vmem:[%s7 + $0x40] sm:$0xff]
        %v1656 = vld [vmem:[%s7 + $0x48] sm:$0xff]
        %v1657 = vld [vmem:[%s7 + $0x50] sm:$0xff]
        %v1658 = vld [vmem:[%s7 + $0x58] sm:$0xff]
        %v1659 = vld [vmem:[%s7 + $0x60] sm:$0xff]
        %v1660 = vld [vmem:[%s7 + $0x68] sm:$0xff]
        %v1661 = vld [vmem:[%s7 + $0x70] sm:$0xff]
        %v1662 = vld [vmem:[%s7 + $0x78] sm:$0xff]
        %v1663 = vld [vmem:[%s8] sm:$0x1]
        %1664 = vmatprep.subr.mxu0 0.0
        %1665 = vmatpush1.msra.mxu0 %v1662
        %1666 = vmatprep.subr.mxu0 0.0
        %1667 = vmatpush1.msra.mxu0 %v1661
        %1668 = vmatprep.subr.mxu0 0.0
        %1669 = vmatpush1.msra.mxu0 %v1660
        %1670 = vmatprep.subr.mxu0 0.0
        %1671 = vmatpush1.msra.mxu0 %v1659
        %1672 = vmatprep.subr.mxu0 0.0
        %1673 = vmatpush1.msra.mxu0 %v1658
        %1674 = vmatprep.subr.mxu0 0.0
        %1675 = vmatpush1.msra.mxu0 %v1657
        %1676 = vmatprep.subr.mxu0 0.0
        %1677 = vmatpush1.msra.mxu0 %v1656
        %1678 = vmatprep.subr.mxu0 0.0
        %1679 = vmatpush1.msra.mxu0 %v1655
        %1680 = vmatprep.subr.mxu0 0.0
        %1681 = vmatpush1.msra.mxu0 %v1654
        %1682 = vmatprep.subr.mxu0 0.0
        %1683 = vmatpush1.msra.mxu0 %v1653
        %1684 = vmatprep.subr.mxu0 0.0
        %1685 = vmatpush1.msra.mxu0 %v1652
        %1686 = vmatprep.subr.mxu0 0.0
        %1687 = vmatpush1.msra.mxu0 %v1651
        %1688 = vmatprep.subr.mxu0 0.0
        %1689 = vmatpush1.msra.mxu0 %v1650
        %1690 = vmatprep.subr.mxu0 0.0
        %1691 = vmatpush1.msra.mxu0 %v1649
        %1692 = vmatprep.subr.mxu0 0.0
        %1693 = vmatpush1.msra.mxu0 %v1648
        %1694 = vmatprep.subr.mxu0 0.0
        %1695 = vmatpush1.msra.mxu0 %v1647
        %1696 = vmatprep.subr.mxu0 0.0
        %1697 = vmatpush2.msra.mxu0 0.0
        %1698 = vmatprep.subr.mxu0 0.0
        %1699 = vmatpush2.msra.mxu0 0.0
        %1700 = vmatprep.subr.mxu0 0.0
        %1701 = vmatpush2.msra.mxu0 0.0
        %1702 = vmatprep.subr.mxu0 0.0
        %1703 = vmatpush2.msra.mxu0 0.0
        %1704 = vmatprep.subr.mxu0 0.0
        %1705 = vmatpush2.msra.mxu0 0.0
        %1706 = vmatprep.subr.mxu0 0.0
        %1707 = vmatpush2.msra.mxu0 0.0
        %1708 = vmatprep.subr.mxu0 0.0
        %1709 = vmatpush2.msra.mxu0 0.0
        %1710 = vmatprep.subr.mxu0 0.0
        %1711 = vmatpush2.msra.mxu0 0.0
        %1712 = vmatprep.subr.mxu0 0.0
        %1713 = vmatpush2.msra.mxu0 0.0
        %1714 = vmatprep.subr.mxu0 0.0
        %1715 = vmatpush2.msra.mxu0 0.0
        %1716 = vmatprep.subr.mxu0 0.0
        %1717 = vmatpush2.msra.mxu0 0.0
        %1718 = vmatprep.subr.mxu0 0.0
        %1719 = vmatpush2.msra.mxu0 0.0
        %1720 = vmatprep.subr.mxu0 0.0
        %1721 = vmatpush2.msra.mxu0 0.0
        %1722 = vmatprep.subr.mxu0 0.0
        %1723 = vmatpush2.msra.mxu0 0.0
        %1724 = vmatprep.subr.mxu0 0.0
        %1725 = vmatpush2.msra.mxu0 0.0
        %1726 = vmatprep.subr.mxu0 0.0
        %1727 = vmatpush2.msra.mxu0 0.0
        %1728 = vmatprep.mubr.f32.mxu0 0.0
        %1729 = vmatmul.mubr.f32.gmra.mxu0 %v1646
        %v1730 = vpop.f32.mrf.mxu0
        %v1731 = vadd.f32 %v1663, %v1730
        %v1732 = vpop.f32.mrf.mxu0
        %1733 = vdwg.mxu0
        %v1734 = vsub.f32 0.0, %v1731
        %v1735 = vmul.f32 %v1734, 1.442695
        %v1736 = vpow.pop %v1735
        %v1737 = vadd.f32 %v1736, 1.0
        %v1738 = vrcp.pop %v1737
        %v1739 = vmul.f32 %v1731, %v1738
        %v1740 = vld [vmem:[%s9] sm:$0xff]
        %v1741 = vld [vmem:[%s10] sm:$0x1]
        %vm1742 = vcmask 64512
        %v1744 = vsel %vm1742, %v1739, 0
        %1746 = vmatprep.subr.mxu0 0.0
        %1747 = vmatpush1.msra.mxu0 0.0
        %1748 = vmatprep.subr.mxu0 0.0
        %1749 = vmatpush1.msra.mxu0 0.0
        %1750 = vmatprep.subr.mxu0 0.0
        %1751 = vmatpush1.msra.mxu0 0.0
        %1752 = vmatprep.subr.mxu0 0.0
        %1753 = vmatpush1.msra.mxu0 0.0
        %1754 = vmatprep.subr.mxu0 0.0
        %1755 = vmatpush1.msra.mxu0 0.0
        %1756 = vmatprep.subr.mxu0 0.0
        %1757 = vmatpush1.msra.mxu0 0.0
        %1758 = vmatprep.subr.mxu0 0.0
        %1759 = vmatpush1.msra.mxu0 0.0
        %1760 = vmatprep.subr.mxu0 0.0
        %1761 = vmatpush1.msra.mxu0 0.0
        %1762 = vmatprep.subr.mxu0 0.0
        %1763 = vmatpush1.msra.mxu0 0.0
        %1764 = vmatprep.subr.mxu0 0.0
        %1765 = vmatpush1.msra.mxu0 0.0
        %1766 = vmatprep.subr.mxu0 0.0
        %1767 = vmatpush1.msra.mxu0 0.0
        %1768 = vmatprep.subr.mxu0 0.0
        %1769 = vmatpush1.msra.mxu0 0.0
        %1770 = vmatprep.subr.mxu0 0.0
        %1771 = vmatpush1.msra.mxu0 0.0
        %1772 = vmatprep.subr.mxu0 0.0
        %1773 = vmatpush1.msra.mxu0 0.0
        %1774 = vmatprep.subr.mxu0 0.0
        %1775 = vmatpush1.msra.mxu0 0.0
        %1776 = vmatprep.subr.mxu0 0.0
        %1777 = vmatpush1.msra.mxu0 %v1740
        %1778 = vmatprep.subr.mxu0 0.0
        %1779 = vmatpush2.msra.mxu0 0.0
        %1780 = vmatprep.subr.mxu0 0.0
        %1781 = vmatpush2.msra.mxu0 0.0
        %1782 = vmatprep.subr.mxu0 0.0
        %1783 = vmatpush2.msra.mxu0 0.0
        %1784 = vmatprep.subr.mxu0 0.0
        %1785 = vmatpush2.msra.mxu0 0.0
        %1786 = vmatprep.subr.mxu0 0.0
        %1787 = vmatpush2.msra.mxu0 0.0
        %1788 = vmatprep.subr.mxu0 0.0
        %1789 = vmatpush2.msra.mxu0 0.0
        %1790 = vmatprep.subr.mxu0 0.0
        %1791 = vmatpush2.msra.mxu0 0.0
        %1792 = vmatprep.subr.mxu0 0.0
        %1793 = vmatpush2.msra.mxu0 0.0
        %1794 = vmatprep.subr.mxu0 0.0
        %1795 = vmatpush2.msra.mxu0 0.0
        %1796 = vmatprep.subr.mxu0 0.0
        %1797 = vmatpush2.msra.mxu0 0.0
        %1798 = vmatprep.subr.mxu0 0.0
        %1799 = vmatpush2.msra.mxu0 0.0
        %1800 = vmatprep.subr.mxu0 0.0
        %1801 = vmatpush2.msra.mxu0 0.0
        %1802 = vmatprep.subr.mxu0 0.0
        %1803 = vmatpush2.msra.mxu0 0.0
        %1804 = vmatprep.subr.mxu0 0.0
        %1805 = vmatpush2.msra.mxu0 0.0
        %1806 = vmatprep.subr.mxu0 0.0
        %1807 = vmatpush2.msra.mxu0 0.0
        %1808 = vmatprep.subr.mxu0 0.0
        %1809 = vmatpush2.msra.mxu0 0.0
        %1810 = vmatprep.mubr.f32.mxu0 0.0
        %1811 = vmatmul.mubr.f32.gmra.mxu0 %v1744
        %v1812 = vpop.f32.mrf.mxu0
        %v1813 = vadd.f32 %v1741, %v1812
        %v1814 = vpop.f32.mrf.mxu0
        %1815 = vdwg.mxu0
        %v1816 = vsub.f32 0.0, %v1813
        %v1817 = vmul.f32 %v1816, 1.442695
        %v1818 = vpow.pop %v1817
        %v1819 = vadd.f32 %v1818, 1.0
        %v1820 = vrcp.pop %v1819
        %v1821 = vmul.f32 1.0, %v1820
        %v1822 = vlaneseq
        %v1823 = vshrl.u32 %v1822, 7
        %v1824 = vsub.s32 0, %v1823
        %v1825 = vrot.slane %v1821, %v1824
        %v1826 = vmul.f32 %v1625, %v1825
        %v1827 = vmul.f32 %v1626, %v1825
        %v1828 = vmul.f32 %v1627, %v1825
        %v1829 = vmul.f32 %v1628, %v1825
        %v1830 = vmul.f32 %v1629, %v1825
        %v1831 = vmul.f32 %v1630, %v1825
        %v1832 = vmul.f32 %v1631, %v1825
        %v1833 = vmul.f32 %v1632, %v1825
        %v1834 = vld [vmem:[%s11] sm:$0xff]
        %v1835 = vld [vmem:[%s11 + $0x8] sm:$0xff]
        %v1836 = vld [vmem:[%s11 + $0x10] sm:$0xff]
        %v1837 = vld [vmem:[%s11 + $0x18] sm:$0xff]
        %v1838 = vld [vmem:[%s11 + $0x20] sm:$0xff]
        %v1839 = vld [vmem:[%s11 + $0x28] sm:$0xff]
        %v1840 = vld [vmem:[%s11 + $0x30] sm:$0xff]
        %v1841 = vld [vmem:[%s11 + $0x38] sm:$0xff]
        %v1842 = vld [vmem:[%s11 + $0x40] sm:$0xff]
        %v1843 = vld [vmem:[%s11 + $0x48] sm:$0xff]
        %v1844 = vld [vmem:[%s11 + $0x50] sm:$0xff]
        %v1845 = vld [vmem:[%s11 + $0x58] sm:$0xff]
        %v1846 = vld [vmem:[%s11 + $0x60] sm:$0xff]
        %v1847 = vld [vmem:[%s11 + $0x68] sm:$0xff]
        %v1848 = vld [vmem:[%s11 + $0x70] sm:$0xff]
        %v1849 = vld [vmem:[%s11 + $0x78] sm:$0xff]
        %v1850 = vld [vmem:[%s12] sm:$0x1]
        %v1852 = vlaneseq
        %v1853 = vshrl.u32 %v1852, 7
        %v1854 = vsub.s32 0, %v1853
        %v1855 = vrot.slane %v1850, %v1854
        %1857 = vmatprep.subr.mxu0 0.0
        %1858 = vmatpush1.msra.mxu0 %v1849
        %1859 = vmatprep.subr.mxu0 0.0
        %1860 = vmatpush1.msra.mxu0 %v1848
        %1861 = vmatprep.subr.mxu0 0.0
        %1862 = vmatpush1.msra.mxu0 %v1847
        %1863 = vmatprep.subr.mxu0 0.0
        %1864 = vmatpush1.msra.mxu0 %v1846
        %1865 = vmatprep.subr.mxu0 0.0
        %1866 = vmatpush1.msra.mxu0 %v1845
        %1867 = vmatprep.subr.mxu0 0.0
        %1868 = vmatpush1.msra.mxu0 %v1844
        %1869 = vmatprep.subr.mxu0 0.0
        %1870 = vmatpush1.msra.mxu0 %v1843
        %1871 = vmatprep.subr.mxu0 0.0
        %1872 = vmatpush1.msra.mxu0 %v1842
        %1873 = vmatprep.subr.mxu0 0.0
        %1874 = vmatpush1.msra.mxu0 %v1841
        %1875 = vmatprep.subr.mxu0 0.0
        %1876 = vmatpush1.msra.mxu0 %v1840
        %1877 = vmatprep.subr.mxu0 0.0
        %1878 = vmatpush1.msra.mxu0 %v1839
        %1879 = vmatprep.subr.mxu0 0.0
        %1880 = vmatpush1.msra.mxu0 %v1838
        %1881 = vmatprep.subr.mxu0 0.0
        %1882 = vmatpush1.msra.mxu0 %v1837
        %1883 = vmatprep.subr.mxu0 0.0
        %1884 = vmatpush1.msra.mxu0 %v1836
        %1885 = vmatprep.subr.mxu0 0.0
        %1886 = vmatpush1.msra.mxu0 %v1835
        %1887 = vmatprep.subr.mxu0 0.0
        %1888 = vmatpush1.msra.mxu0 %v1834
        %1889 = vmatprep.subr.mxu0 0.0
        %1890 = vmatpush2.msra.mxu0 0.0
        %1891 = vmatprep.subr.mxu0 0.0
        %1892 = vmatpush2.msra.mxu0 0.0
        %1893 = vmatprep.subr.mxu0 0.0
        %1894 = vmatpush2.msra.mxu0 0.0
        %1895 = vmatprep.subr.mxu0 0.0
        %1896 = vmatpush2.msra.mxu0 0.0
        %1897 = vmatprep.subr.mxu0 0.0
        %1898 = vmatpush2.msra.mxu0 0.0
        %1899 = vmatprep.subr.mxu0 0.0
        %1900 = vmatpush2.msra.mxu0 0.0
        %1901 = vmatprep.subr.mxu0 0.0
        %1902 = vmatpush2.msra.mxu0 0.0
        %1903 = vmatprep.subr.mxu0 0.0
        %1904 = vmatpush2.msra.mxu0 0.0
        %1905 = vmatprep.subr.mxu0 0.0
        %1906 = vmatpush2.msra.mxu0 0.0
        %1907 = vmatprep.subr.mxu0 0.0
        %1908 = vmatpush2.msra.mxu0 0.0
        %1909 = vmatprep.subr.mxu0 0.0
        %1910 = vmatpush2.msra.mxu0 0.0
        %1911 = vmatprep.subr.mxu0 0.0
        %1912 = vmatpush2.msra.mxu0 0.0
        %1913 = vmatprep.subr.mxu0 0.0
        %1914 = vmatpush2.msra.mxu0 0.0
        %1915 = vmatprep.subr.mxu0 0.0
        %1916 = vmatpush2.msra.mxu0 0.0
        %1917 = vmatprep.subr.mxu0 0.0
        %1918 = vmatpush2.msra.mxu0 0.0
        %1919 = vmatprep.subr.mxu0 0.0
        %1920 = vmatpush2.msra.mxu0 0.0
        %1921 = vmatprep.mubr.f32.mxu0 0.0
        %1922 = vmatmul.mubr.f32.gmra.mxu0 %v1826
        %v1923 = vpop.f32.mrf.mxu0
        %v1924 = vadd.f32 %v1855, %v1923
        %v1925 = vpop.f32.mrf.mxu0
        %1926 = vmatprep.mubr.f32.mxu0 0.0
        %1927 = vmatmul.mubr.f32.gmra.mxu0 %v1827
        %v1928 = vpop.f32.mrf.mxu0
        %v1929 = vadd.f32 %v1855, %v1928
        %v1930 = vpop.f32.mrf.mxu0
        %1931 = vmatprep.mubr.f32.mxu0 0.0
        %1932 = vmatmul.mubr.f32.gmra.mxu0 %v1828
        %v1933 = vpop.f32.mrf.mxu0
        %v1934 = vadd.f32 %v1855, %v1933
        %v1935 = vpop.f32.mrf.mxu0
        %1936 = vmatprep.mubr.f32.mxu0 0.0
        %1937 = vmatmul.mubr.f32.gmra.mxu0 %v1829
        %v1938 = vpop.f32.mrf.mxu0
        %v1939 = vadd.f32 %v1855, %v1938
        %v1940 = vpop.f32.mrf.mxu0
        %1941 = vmatprep.mubr.f32.mxu0 0.0
        %1942 = vmatmul.mubr.f32.gmra.mxu0 %v1830
        %v1943 = vpop.f32.mrf.mxu0
        %v1944 = vadd.f32 %v1855, %v1943
        %v1945 = vpop.f32.mrf.mxu0
        %1946 = vmatprep.mubr.f32.mxu0 0.0
        %1947 = vmatmul.mubr.f32.gmra.mxu0 %v1831
        %v1948 = vpop.f32.mrf.mxu0
        %v1949 = vadd.f32 %v1855, %v1948
        %v1950 = vpop.f32.mrf.mxu0
        %1951 = vmatprep.mubr.f32.mxu0 0.0
        %1952 = vmatmul.mubr.f32.gmra.mxu0 %v1832
        %v1953 = vpop.f32.mrf.mxu0
        %v1954 = vadd.f32 %v1855, %v1953
        %v1955 = vpop.f32.mrf.mxu0
        %1956 = vmatprep.mubr.f32.mxu0 0.0
        %1957 = vmatmul.mubr.f32.gmra.mxu0 %v1833
        %v1958 = vpop.f32.mrf.mxu0
        %v1959 = vadd.f32 %v1855, %v1958
        %v1960 = vpop.f32.mrf.mxu0
        %1961 = vdwg.mxu0
        %v1962 = vadd.f32 %v1924, %v740
        %v1963 = vadd.f32 %v1929, %v741
        %v1964 = vadd.f32 %v1934, %v742
        %v1965 = vadd.f32 %v1939, %v743
        %v1966 = vadd.f32 %v1944, %v744
        %v1967 = vadd.f32 %v1949, %v745
        %v1968 = vadd.f32 %v1954, %v746
        %v1969 = vadd.f32 %v1959, %v747
        %v1970 = vpack.c.bf16 %v1963, %v1962
        %v1971 = vpack.c.bf16 %v1965, %v1964
        %v1972 = vpack.c.bf16 %v1967, %v1966
        %v1973 = vpack.c.bf16 %v1969, %v1968
        %v1974 = vld [vmem:[%s13] sm:$0xff]
        %v1975 = vld [vmem:[%s13 + $0x8] sm:$0xff]
        %v1976 = vld [vmem:[%s13 + $0x10] sm:$0xff]
        %v1977 = vld [vmem:[%s13 + $0x18] sm:$0xff]
        %v1978 = vld [vmem:[%s13 + $0x20] sm:$0xff]
        %v1979 = vld [vmem:[%s13 + $0x28] sm:$0xff]
        %v1980 = vld [vmem:[%s13 + $0x30] sm:$0xff]
        %v1981 = vld [vmem:[%s13 + $0x38] sm:$0xff]
        %v1982 = vld [vmem:[%s13 + $0x40] sm:$0xff]
        %v1983 = vld [vmem:[%s13 + $0x48] sm:$0xff]
        %v1984 = vld [vmem:[%s13 + $0x50] sm:$0xff]
        %v1985 = vld [vmem:[%s13 + $0x58] sm:$0xff]
        %v1986 = vld [vmem:[%s13 + $0x60] sm:$0xff]
        %v1987 = vld [vmem:[%s13 + $0x68] sm:$0xff]
        %v1988 = vld [vmem:[%s13 + $0x70] sm:$0xff]
        %v1989 = vld [vmem:[%s13 + $0x78] sm:$0xff]
        %v1990 = vld [vmem:[%s13 + $0x80] sm:$0xff]
        %v1991 = vld [vmem:[%s13 + $0x88] sm:$0xff]
        %v1992 = vld [vmem:[%s13 + $0x90] sm:$0xff]
        %v1993 = vld [vmem:[%s13 + $0x98] sm:$0xff]
        %v1994 = vld [vmem:[%s14] sm:$0xff]
        %v1995 = vld [vmem:[%s14 + $0x8] sm:$0x3]
        %v1998 = vlaneseq
        %v1999 = vshrl.u32 %v1998, 7
        %v2000 = vsub.s32 0, %v1999
        %v2001 = vrot.slane %v1994, %v2000
        %v2002 = vlaneseq
        %v2003 = vshrl.u32 %v2002, 7
        %v2004 = vsub.s32 1, %v2003
        %v2005 = vrot.slane %v1994, %v2004
        %v2006 = vlaneseq
        %v2007 = vshrl.u32 %v2006, 7
        %v2008 = vsub.s32 2, %v2007
        %v2009 = vrot.slane %v1994, %v2008
        %v2010 = vlaneseq
        %v2011 = vshrl.u32 %v2010, 7
        %v2012 = vsub.s32 3, %v2011
        %v2013 = vrot.slane %v1994, %v2012
        %v2014 = vlaneseq
        %v2015 = vshrl.u32 %v2014, 7
        %v2016 = vsub.s32 4, %v2015
        %v2017 = vrot.slane %v1994, %v2016
        %v2018 = vlaneseq
        %v2019 = vshrl.u32 %v2018, 7
        %v2020 = vsub.s32 5, %v2019
        %v2021 = vrot.slane %v1994, %v2020
        %v2022 = vlaneseq
        %v2023 = vshrl.u32 %v2022, 7
        %v2024 = vsub.s32 6, %v2023
        %v2025 = vrot.slane %v1994, %v2024
        %v2026 = vlaneseq
        %v2027 = vshrl.u32 %v2026, 7
        %v2028 = vsub.s32 7, %v2027
        %v2029 = vrot.slane %v1994, %v2028
        %v2030 = vlaneseq
        %v2031 = vshrl.u32 %v2030, 7
        %v2032 = vsub.s32 0, %v2031
        %v2033 = vrot.slane %v1995, %v2032
        %v2034 = vlaneseq
        %v2035 = vshrl.u32 %v2034, 7
        %v2036 = vsub.s32 1, %v2035
        %v2037 = vrot.slane %v1995, %v2036
        %v2068 = vunpack.c.l.b16 %v1974
        %v2069 = vunpack.c.h.b16 %v1974
        %v2070 = vunpack.c.l.b16 %v1975
        %v2071 = vunpack.c.h.b16 %v1975
        %v2072 = vunpack.c.l.b16 %v1976
        %v2073 = vunpack.c.h.b16 %v1976
        %v2074 = vunpack.c.l.b16 %v1977
        %v2075 = vunpack.c.h.b16 %v1977
        %v2076 = vunpack.c.l.b16 %v1978
        %v2077 = vunpack.c.h.b16 %v1978
        %v2078 = vunpack.c.l.b16 %v1979
        %v2079 = vunpack.c.h.b16 %v1979
        %v2080 = vunpack.c.l.b16 %v1980
        %v2081 = vunpack.c.h.b16 %v1980
        %v2082 = vunpack.c.l.b16 %v1981
        %v2083 = vunpack.c.h.b16 %v1981
        %v2084 = vunpack.c.l.b16 %v1982
        %v2085 = vunpack.c.h.b16 %v1982
        %v2086 = vunpack.c.l.b16 %v1983
        %v2087 = vunpack.c.h.b16 %v1983
        %v2088 = vunpack.c.l.b16 %v1984
        %v2089 = vunpack.c.h.b16 %v1984
        %v2090 = vunpack.c.l.b16 %v1985
        %v2091 = vunpack.c.h.b16 %v1985
        %v2092 = vunpack.c.l.b16 %v1986
        %v2093 = vunpack.c.h.b16 %v1986
        %v2094 = vunpack.c.l.b16 %v1987
        %v2095 = vunpack.c.h.b16 %v1987
        %v2096 = vunpack.c.l.b16 %v1988
        %v2097 = vunpack.c.h.b16 %v1988
        %v2098 = vunpack.c.l.b16 %v1989
        %v2099 = vunpack.c.h.b16 %v1989
        %v2100 = vunpack.c.l.b16 %v1990
        %v2101 = vunpack.c.h.b16 %v1990
        %v2102 = vunpack.c.l.b16 %v1991
        %v2103 = vunpack.c.h.b16 %v1991
        %v2104 = vunpack.c.l.b16 %v1992
        %v2105 = vunpack.c.h.b16 %v1992
        %v2106 = vunpack.c.l.b16 %v1993
        %v2107 = vunpack.c.h.b16 %v1993
        %v2108 = vpack.c.b16 %v2078, %v2068
        %v2109 = vpack.c.b16 %v2079, %v2069
        %v2110 = vpack.c.b16 %v2080, %v2070
        %v2111 = vpack.c.b16 %v2081, %v2071
        %v2112 = vpack.c.b16 %v2082, %v2072
        %v2113 = vpack.c.b16 %v2083, %v2073
        %v2114 = vpack.c.b16 %v2084, %v2074
        %v2115 = vpack.c.b16 %v2085, %v2075
        %v2116 = vpack.c.b16 %v2086, %v2076
        %v2117 = vpack.c.b16 %v2087, %v2077
        %v2118 = vpack.c.b16 %v2098, %v2088
        %v2119 = vpack.c.b16 %v2099, %v2089
        %v2120 = vpack.c.b16 %v2100, %v2090
        %v2121 = vpack.c.b16 %v2101, %v2091
        %v2122 = vpack.c.b16 %v2102, %v2092
        %v2123 = vpack.c.b16 %v2103, %v2093
        %v2124 = vpack.c.b16 %v2104, %v2094
        %v2125 = vpack.c.b16 %v2105, %v2095
        %v2126 = vpack.c.b16 %v2106, %v2096
        %v2127 = vpack.c.b16 %v2107, %v2097
        %v2149 = vsel %vm759, %v1970, 0
        %v2152 = vsel %vm759, %v1971, 0
        %v2155 = vsel %vm759, %v1972, 0
        %v2158 = vsel %vm759, %v1973, 0
        %2160 = vmatprep.subr.bf16.mxu0 0
        %2161 = vmatpush1.bf16.msra.mxu0 0
        %2162 = vmatprep.subr.bf16.mxu0 0
        %2163 = vmatpush1.bf16.msra.mxu0 0
        %2164 = vmatprep.subr.bf16.mxu0 0
        %2165 = vmatpush1.bf16.msra.mxu0 0
        %2166 = vmatprep.subr.bf16.mxu0 0
        %2167 = vmatpush1.bf16.msra.mxu0 0
        %2168 = vmatprep.subr.bf16.mxu0 0
        %2169 = vmatpush1.bf16.msra.mxu0 0
        %2170 = vmatprep.subr.bf16.mxu0 0
        %2171 = vmatpush1.bf16.msra.mxu0 0
        %2172 = vmatprep.subr.bf16.mxu0 %v2119
        %2173 = vmatpush1.bf16.msra.mxu0 %v2118
        %2174 = vmatprep.subr.bf16.mxu0 %v2109
        %2175 = vmatpush1.bf16.msra.mxu0 %v2108
        %2176 = vmatprep.subr.bf16.mxu0 0
        %2177 = vmatpush2.bf16.msra.mxu0 0
        %2178 = vmatprep.subr.bf16.mxu0 0
        %2179 = vmatpush2.bf16.msra.mxu0 0
        %2180 = vmatprep.subr.bf16.mxu0 0
        %2181 = vmatpush2.bf16.msra.mxu0 0
        %2182 = vmatprep.subr.bf16.mxu0 0
        %2183 = vmatpush2.bf16.msra.mxu0 0
        %2184 = vmatprep.subr.bf16.mxu0 0
        %2185 = vmatpush2.bf16.msra.mxu0 0
        %2186 = vmatprep.subr.bf16.mxu0 0
        %2187 = vmatpush2.bf16.msra.mxu0 0
        %2188 = vmatprep.subr.bf16.mxu0 0
        %2189 = vmatpush2.bf16.msra.mxu0 0
        %2190 = vmatprep.subr.bf16.mxu0 0
        %2191 = vmatpush2.bf16.msra.mxu0 0
        %2192 = vmatprep.mubr.bf16.mxu0 0
        %2193 = vmatmul.mubr.bf16.gmra.mxu0 %v2149
        %v2194 = vpop.f32.mrf.mxu0
        %v2195 = vadd.f32 %v2001, %v2194
        %v2196 = vpop.f32.mrf.mxu0
        %v2197 = vadd.f32 %v2005, %v2196
        %v2198 = vpop.f32.mrf.mxu0
        %v2199 = vadd.f32 %v2001, %v2198
        %v2200 = vpop.f32.mrf.mxu0
        %v2201 = vadd.f32 %v2005, %v2200
        %2202 = vmatprep.mubr.bf16.mxu0 0
        %2203 = vmatmul.mubr.bf16.gmra.mxu0 %v2152
        %v2204 = vpop.f32.mrf.mxu0
        %v2205 = vadd.f32 %v2001, %v2204
        %v2206 = vpop.f32.mrf.mxu0
        %v2207 = vadd.f32 %v2005, %v2206
        %v2208 = vpop.f32.mrf.mxu0
        %v2209 = vadd.f32 %v2001, %v2208
        %v2210 = vpop.f32.mrf.mxu0
        %v2211 = vadd.f32 %v2005, %v2210
        %2212 = vmatprep.mubr.bf16.mxu0 0
        %2213 = vmatmul.mubr.bf16.gmra.mxu0 %v2155
        %v2214 = vpop.f32.mrf.mxu0
        %v2215 = vadd.f32 %v2001, %v2214
        %v2216 = vpop.f32.mrf.mxu0
        %v2217 = vadd.f32 %v2005, %v2216
        %v2218 = vpop.f32.mrf.mxu0
        %v2219 = vadd.f32 %v2001, %v2218
        %v2220 = vpop.f32.mrf.mxu0
        %v2221 = vadd.f32 %v2005, %v2220
        %2222 = vmatprep.mubr.bf16.mxu0 0
        %2223 = vmatmul.mubr.bf16.gmra.mxu0 %v2158
        %v2224 = vpop.f32.mrf.mxu0
        %v2225 = vadd.f32 %v2001, %v2224
        %v2226 = vpop.f32.mrf.mxu0
        %v2227 = vadd.f32 %v2005, %v2226
        %v2228 = vpop.f32.mrf.mxu0
        %v2229 = vadd.f32 %v2001, %v2228
        %v2230 = vpop.f32.mrf.mxu0
        %v2231 = vadd.f32 %v2005, %v2230
        %2232 = vdwg.mxu0
        %2233 = vmatprep.subr.bf16.mxu0 0
        %2234 = vmatpush1.bf16.msra.mxu0 0
        %2235 = vmatprep.subr.bf16.mxu0 0
        %2236 = vmatpush1.bf16.msra.mxu0 0
        %2237 = vmatprep.subr.bf16.mxu0 0
        %2238 = vmatpush1.bf16.msra.mxu0 0
        %2239 = vmatprep.subr.bf16.mxu0 0
        %2240 = vmatpush1.bf16.msra.mxu0 0
        %2241 = vmatprep.subr.bf16.mxu0 0
        %2242 = vmatpush1.bf16.msra.mxu0 0
        %2243 = vmatprep.subr.bf16.mxu0 0
        %2244 = vmatpush1.bf16.msra.mxu0 0
        %2245 = vmatprep.subr.bf16.mxu0 %v2121
        %2246 = vmatpush1.bf16.msra.mxu0 %v2120
        %2247 = vmatprep.subr.bf16.mxu0 %v2111
        %2248 = vmatpush1.bf16.msra.mxu0 %v2110
        %2249 = vmatprep.subr.bf16.mxu0 0
        %2250 = vmatpush2.bf16.msra.mxu0 0
        %2251 = vmatprep.subr.bf16.mxu0 0
        %2252 = vmatpush2.bf16.msra.mxu0 0
        %2253 = vmatprep.subr.bf16.mxu0 0
        %2254 = vmatpush2.bf16.msra.mxu0 0
        %2255 = vmatprep.subr.bf16.mxu0 0
        %2256 = vmatpush2.bf16.msra.mxu0 0
        %2257 = vmatprep.subr.bf16.mxu0 0
        %2258 = vmatpush2.bf16.msra.mxu0 0
        %2259 = vmatprep.subr.bf16.mxu0 0
        %2260 = vmatpush2.bf16.msra.mxu0 0
        %2261 = vmatprep.subr.bf16.mxu0 0
        %2262 = vmatpush2.bf16.msra.mxu0 0
        %2263 = vmatprep.subr.bf16.mxu0 0
        %2264 = vmatpush2.bf16.msra.mxu0 0
        %2265 = vmatprep.mubr.bf16.mxu0 0
        %2266 = vmatmul.mubr.bf16.gmra.mxu0 %v2149
        %v2267 = vpop.f32.mrf.mxu0
        %v2268 = vadd.f32 %v2009, %v2267
        %v2269 = vpop.f32.mrf.mxu0
        %v2270 = vadd.f32 %v2013, %v2269
        %v2271 = vpop.f32.mrf.mxu0
        %v2272 = vadd.f32 %v2009, %v2271
        %v2273 = vpop.f32.mrf.mxu0
        %v2274 = vadd.f32 %v2013, %v2273
        %2275 = vmatprep.mubr.bf16.mxu0 0
        %2276 = vmatmul.mubr.bf16.gmra.mxu0 %v2152
        %v2277 = vpop.f32.mrf.mxu0
        %v2278 = vadd.f32 %v2009, %v2277
        %v2279 = vpop.f32.mrf.mxu0
        %v2280 = vadd.f32 %v2013, %v2279
        %v2281 = vpop.f32.mrf.mxu0
        %v2282 = vadd.f32 %v2009, %v2281
        %v2283 = vpop.f32.mrf.mxu0
        %v2284 = vadd.f32 %v2013, %v2283
        %2285 = vmatprep.mubr.bf16.mxu0 0
        %2286 = vmatmul.mubr.bf16.gmra.mxu0 %v2155
        %v2287 = vpop.f32.mrf.mxu0
        %v2288 = vadd.f32 %v2009, %v2287
        %v2289 = vpop.f32.mrf.mxu0
        %v2290 = vadd.f32 %v2013, %v2289
        %v2291 = vpop.f32.mrf.mxu0
        %v2292 = vadd.f32 %v2009, %v2291
        %v2293 = vpop.f32.mrf.mxu0
        %v2294 = vadd.f32 %v2013, %v2293
        %2295 = vmatprep.mubr.bf16.mxu0 0
        %2296 = vmatmul.mubr.bf16.gmra.mxu0 %v2158
        %v2297 = vpop.f32.mrf.mxu0
        %v2298 = vadd.f32 %v2009, %v2297
        %v2299 = vpop.f32.mrf.mxu0
        %v2300 = vadd.f32 %v2013, %v2299
        %v2301 = vpop.f32.mrf.mxu0
        %v2302 = vadd.f32 %v2009, %v2301
        %v2303 = vpop.f32.mrf.mxu0
        %v2304 = vadd.f32 %v2013, %v2303
        %2305 = vdwg.mxu0
        %2306 = vmatprep.subr.bf16.mxu0 0
        %2307 = vmatpush1.bf16.msra.mxu0 0
        %2308 = vmatprep.subr.bf16.mxu0 0
        %2309 = vmatpush1.bf16.msra.mxu0 0
        %2310 = vmatprep.subr.bf16.mxu0 0
        %2311 = vmatpush1.bf16.msra.mxu0 0
        %2312 = vmatprep.subr.bf16.mxu0 0
        %2313 = vmatpush1.bf16.msra.mxu0 0
        %2314 = vmatprep.subr.bf16.mxu0 0
        %2315 = vmatpush1.bf16.msra.mxu0 0
        %2316 = vmatprep.subr.bf16.mxu0 0
        %2317 = vmatpush1.bf16.msra.mxu0 0
        %2318 = vmatprep.subr.bf16.mxu0 %v2123
        %2319 = vmatpush1.bf16.msra.mxu0 %v2122
        %2320 = vmatprep.subr.bf16.mxu0 %v2113
        %2321 = vmatpush1.bf16.msra.mxu0 %v2112
        %2322 = vmatprep.subr.bf16.mxu0 0
        %2323 = vmatpush2.bf16.msra.mxu0 0
        %2324 = vmatprep.subr.bf16.mxu0 0
        %2325 = vmatpush2.bf16.msra.mxu0 0
        %2326 = vmatprep.subr.bf16.mxu0 0
        %2327 = vmatpush2.bf16.msra.mxu0 0
        %2328 = vmatprep.subr.bf16.mxu0 0
        %2329 = vmatpush2.bf16.msra.mxu0 0
        %2330 = vmatprep.subr.bf16.mxu0 0
        %2331 = vmatpush2.bf16.msra.mxu0 0
        %2332 = vmatprep.subr.bf16.mxu0 0
        %2333 = vmatpush2.bf16.msra.mxu0 0
        %2334 = vmatprep.subr.bf16.mxu0 0
        %2335 = vmatpush2.bf16.msra.mxu0 0
        %2336 = vmatprep.subr.bf16.mxu0 0
        %2337 = vmatpush2.bf16.msra.mxu0 0
        %2338 = vmatprep.mubr.bf16.mxu0 0
        %2339 = vmatmul.mubr.bf16.gmra.mxu0 %v2149
        %v2340 = vpop.f32.mrf.mxu0
        %v2341 = vadd.f32 %v2017, %v2340
        %v2342 = vpop.f32.mrf.mxu0
        %v2343 = vadd.f32 %v2021, %v2342
        %v2344 = vpop.f32.mrf.mxu0
        %v2345 = vadd.f32 %v2017, %v2344
        %v2346 = vpop.f32.mrf.mxu0
        %v2347 = vadd.f32 %v2021, %v2346
        %2348 = vmatprep.mubr.bf16.mxu0 0
        %2349 = vmatmul.mubr.bf16.gmra.mxu0 %v2152
        %v2350 = vpop.f32.mrf.mxu0
        %v2351 = vadd.f32 %v2017, %v2350
        %v2352 = vpop.f32.mrf.mxu0
        %v2353 = vadd.f32 %v2021, %v2352
        %v2354 = vpop.f32.mrf.mxu0
        %v2355 = vadd.f32 %v2017, %v2354
        %v2356 = vpop.f32.mrf.mxu0
        %v2357 = vadd.f32 %v2021, %v2356
        %2358 = vmatprep.mubr.bf16.mxu0 0
        %2359 = vmatmul.mubr.bf16.gmra.mxu0 %v2155
        %v2360 = vpop.f32.mrf.mxu0
        %v2361 = vadd.f32 %v2017, %v2360
        %v2362 = vpop.f32.mrf.mxu0
        %v2363 = vadd.f32 %v2021, %v2362
        %v2364 = vpop.f32.mrf.mxu0
        %v2365 = vadd.f32 %v2017, %v2364
        %v2366 = vpop.f32.mrf.mxu0
        %v2367 = vadd.f32 %v2021, %v2366
        %2368 = vmatprep.mubr.bf16.mxu0 0
        %2369 = vmatmul.mubr.bf16.gmra.mxu0 %v2158
        %v2370 = vpop.f32.mrf.mxu0
        %v2371 = vadd.f32 %v2017, %v2370
        %v2372 = vpop.f32.mrf.mxu0
        %v2373 = vadd.f32 %v2021, %v2372
        %v2374 = vpop.f32.mrf.mxu0
        %v2375 = vadd.f32 %v2017, %v2374
        %v2376 = vpop.f32.mrf.mxu0
        %v2377 = vadd.f32 %v2021, %v2376
        %2378 = vdwg.mxu0
        %2379 = vmatprep.subr.bf16.mxu0 0
        %2380 = vmatpush1.bf16.msra.mxu0 0
        %2381 = vmatprep.subr.bf16.mxu0 0
        %2382 = vmatpush1.bf16.msra.mxu0 0
        %2383 = vmatprep.subr.bf16.mxu0 0
        %2384 = vmatpush1.bf16.msra.mxu0 0
        %2385 = vmatprep.subr.bf16.mxu0 0
        %2386 = vmatpush1.bf16.msra.mxu0 0
        %2387 = vmatprep.subr.bf16.mxu0 0
        %2388 = vmatpush1.bf16.msra.mxu0 0
        %2389 = vmatprep.subr.bf16.mxu0 0
        %2390 = vmatpush1.bf16.msra.mxu0 0
        %2391 = vmatprep.subr.bf16.mxu0 %v2125
        %2392 = vmatpush1.bf16.msra.mxu0 %v2124
        %2393 = vmatprep.subr.bf16.mxu0 %v2115
        %2394 = vmatpush1.bf16.msra.mxu0 %v2114
        %2395 = vmatprep.subr.bf16.mxu0 0
        %2396 = vmatpush2.bf16.msra.mxu0 0
        %2397 = vmatprep.subr.bf16.mxu0 0
        %2398 = vmatpush2.bf16.msra.mxu0 0
        %2399 = vmatprep.subr.bf16.mxu0 0
        %2400 = vmatpush2.bf16.msra.mxu0 0
        %2401 = vmatprep.subr.bf16.mxu0 0
        %2402 = vmatpush2.bf16.msra.mxu0 0
        %2403 = vmatprep.subr.bf16.mxu0 0
        %2404 = vmatpush2.bf16.msra.mxu0 0
        %2405 = vmatprep.subr.bf16.mxu0 0
        %2406 = vmatpush2.bf16.msra.mxu0 0
        %2407 = vmatprep.subr.bf16.mxu0 0
        %2408 = vmatpush2.bf16.msra.mxu0 0
        %2409 = vmatprep.subr.bf16.mxu0 0
        %2410 = vmatpush2.bf16.msra.mxu0 0
        %2411 = vmatprep.mubr.bf16.mxu0 0
        %2412 = vmatmul.mubr.bf16.gmra.mxu0 %v2149
        %v2413 = vpop.f32.mrf.mxu0
        %v2414 = vadd.f32 %v2025, %v2413
        %v2415 = vpop.f32.mrf.mxu0
        %v2416 = vadd.f32 %v2029, %v2415
        %v2417 = vpop.f32.mrf.mxu0
        %v2418 = vadd.f32 %v2025, %v2417
        %v2419 = vpop.f32.mrf.mxu0
        %v2420 = vadd.f32 %v2029, %v2419
        %2421 = vmatprep.mubr.bf16.mxu0 0
        %2422 = vmatmul.mubr.bf16.gmra.mxu0 %v2152
        %v2423 = vpop.f32.mrf.mxu0
        %v2424 = vadd.f32 %v2025, %v2423
        %v2425 = vpop.f32.mrf.mxu0
        %v2426 = vadd.f32 %v2029, %v2425
        %v2427 = vpop.f32.mrf.mxu0
        %v2428 = vadd.f32 %v2025, %v2427
        %v2429 = vpop.f32.mrf.mxu0
        %v2430 = vadd.f32 %v2029, %v2429
        %2431 = vmatprep.mubr.bf16.mxu0 0
        %2432 = vmatmul.mubr.bf16.gmra.mxu0 %v2155
        %v2433 = vpop.f32.mrf.mxu0
        %v2434 = vadd.f32 %v2025, %v2433
        %v2435 = vpop.f32.mrf.mxu0
        %v2436 = vadd.f32 %v2029, %v2435
        %v2437 = vpop.f32.mrf.mxu0
        %v2438 = vadd.f32 %v2025, %v2437
        %v2439 = vpop.f32.mrf.mxu0
        %v2440 = vadd.f32 %v2029, %v2439
        %2441 = vmatprep.mubr.bf16.mxu0 0
        %2442 = vmatmul.mubr.bf16.gmra.mxu0 %v2158
        %v2443 = vpop.f32.mrf.mxu0
        %v2444 = vadd.f32 %v2025, %v2443
        %v2445 = vpop.f32.mrf.mxu0
        %v2446 = vadd.f32 %v2029, %v2445
        %v2447 = vpop.f32.mrf.mxu0
        %v2448 = vadd.f32 %v2025, %v2447
        %v2449 = vpop.f32.mrf.mxu0
        %v2450 = vadd.f32 %v2029, %v2449
        %2451 = vdwg.mxu0
        %2452 = vmatprep.subr.bf16.mxu0 0
        %2453 = vmatpush1.bf16.msra.mxu0 0
        %2454 = vmatprep.subr.bf16.mxu0 0
        %2455 = vmatpush1.bf16.msra.mxu0 0
        %2456 = vmatprep.subr.bf16.mxu0 0
        %2457 = vmatpush1.bf16.msra.mxu0 0
        %2458 = vmatprep.subr.bf16.mxu0 0
        %2459 = vmatpush1.bf16.msra.mxu0 0
        %2460 = vmatprep.subr.bf16.mxu0 0
        %2461 = vmatpush1.bf16.msra.mxu0 0
        %2462 = vmatprep.subr.bf16.mxu0 0
        %2463 = vmatpush1.bf16.msra.mxu0 0
        %2464 = vmatprep.subr.bf16.mxu0 %v2127
        %2465 = vmatpush1.bf16.msra.mxu0 %v2126
        %2466 = vmatprep.subr.bf16.mxu0 %v2117
        %2467 = vmatpush1.bf16.msra.mxu0 %v2116
        %2468 = vmatprep.subr.bf16.mxu0 0
        %2469 = vmatpush2.bf16.msra.mxu0 0
        %2470 = vmatprep.subr.bf16.mxu0 0
        %2471 = vmatpush2.bf16.msra.mxu0 0
        %2472 = vmatprep.subr.bf16.mxu0 0
        %2473 = vmatpush2.bf16.msra.mxu0 0
        %2474 = vmatprep.subr.bf16.mxu0 0
        %2475 = vmatpush2.bf16.msra.mxu0 0
        %2476 = vmatprep.subr.bf16.mxu0 0
        %2477 = vmatpush2.bf16.msra.mxu0 0
        %2478 = vmatprep.subr.bf16.mxu0 0
        %2479 = vmatpush2.bf16.msra.mxu0 0
        %2480 = vmatprep.subr.bf16.mxu0 0
        %2481 = vmatpush2.bf16.msra.mxu0 0
        %2482 = vmatprep.subr.bf16.mxu0 0
        %2483 = vmatpush2.bf16.msra.mxu0 0
        %2484 = vmatprep.mubr.bf16.mxu0 0
        %2485 = vmatmul.mubr.bf16.gmra.mxu0 %v2149
        %v2486 = vpop.f32.mrf.mxu0
        %v2487 = vadd.f32 %v2033, %v2486
        %v2488 = vpop.f32.mrf.mxu0
        %v2489 = vadd.f32 %v2037, %v2488
        %v2490 = vpop.f32.mrf.mxu0
        %v2491 = vadd.f32 %v2033, %v2490
        %v2492 = vpop.f32.mrf.mxu0
        %v2493 = vadd.f32 %v2037, %v2492
        %2494 = vmatprep.mubr.bf16.mxu0 0
        %2495 = vmatmul.mubr.bf16.gmra.mxu0 %v2152
        %v2496 = vpop.f32.mrf.mxu0
        %v2497 = vadd.f32 %v2033, %v2496
        %v2498 = vpop.f32.mrf.mxu0
        %v2499 = vadd.f32 %v2037, %v2498
        %v2500 = vpop.f32.mrf.mxu0
        %v2501 = vadd.f32 %v2033, %v2500
        %v2502 = vpop.f32.mrf.mxu0
        %v2503 = vadd.f32 %v2037, %v2502
        %2504 = vmatprep.mubr.bf16.mxu0 0
        %2505 = vmatmul.mubr.bf16.gmra.mxu0 %v2155
        %v2506 = vpop.f32.mrf.mxu0
        %v2507 = vadd.f32 %v2033, %v2506
        %v2508 = vpop.f32.mrf.mxu0
        %v2509 = vadd.f32 %v2037, %v2508
        %v2510 = vpop.f32.mrf.mxu0
        %v2511 = vadd.f32 %v2033, %v2510
        %v2512 = vpop.f32.mrf.mxu0
        %v2513 = vadd.f32 %v2037, %v2512
        %2514 = vmatprep.mubr.bf16.mxu0 0
        %2515 = vmatmul.mubr.bf16.gmra.mxu0 %v2158
        %v2516 = vpop.f32.mrf.mxu0
        %v2517 = vadd.f32 %v2033, %v2516
        %v2518 = vpop.f32.mrf.mxu0
        %v2519 = vadd.f32 %v2037, %v2518
        %v2520 = vpop.f32.mrf.mxu0
        %v2521 = vadd.f32 %v2033, %v2520
        %v2522 = vpop.f32.mrf.mxu0
        %v2523 = vadd.f32 %v2037, %v2522
        %2524 = vdwg.mxu0
        %v2525 = vsub.f32 0.0, %v2195
        %v2526 = vsub.f32 0.0, %v2197
        %v2527 = vsub.f32 0.0, %v2268
        %v2528 = vsub.f32 0.0, %v2270
        %v2529 = vsub.f32 0.0, %v2341
        %v2530 = vsub.f32 0.0, %v2343
        %v2531 = vsub.f32 0.0, %v2414
        %v2532 = vsub.f32 0.0, %v2416
        %v2533 = vsub.f32 0.0, %v2487
        %v2534 = vsub.f32 0.0, %v2489
        %v2535 = vsub.f32 0.0, %v2199
        %v2536 = vsub.f32 0.0, %v2201
        %v2537 = vsub.f32 0.0, %v2272
        %v2538 = vsub.f32 0.0, %v2274
        %v2539 = vsub.f32 0.0, %v2345
        %v2540 = vsub.f32 0.0, %v2347
        %v2541 = vsub.f32 0.0, %v2418
        %v2542 = vsub.f32 0.0, %v2420
        %v2543 = vsub.f32 0.0, %v2491
        %v2544 = vsub.f32 0.0, %v2493
        %v2545 = vsub.f32 0.0, %v2205
        %v2546 = vsub.f32 0.0, %v2207
        %v2547 = vsub.f32 0.0, %v2278
        %v2548 = vsub.f32 0.0, %v2280
        %v2549 = vsub.f32 0.0, %v2351
        %v2550 = vsub.f32 0.0, %v2353
        %v2551 = vsub.f32 0.0, %v2424
        %v2552 = vsub.f32 0.0, %v2426
        %v2553 = vsub.f32 0.0, %v2497
        %v2554 = vsub.f32 0.0, %v2499
        %v2555 = vsub.f32 0.0, %v2209
        %v2556 = vsub.f32 0.0, %v2211
        %v2557 = vsub.f32 0.0, %v2282
        %v2558 = vsub.f32 0.0, %v2284
        %v2559 = vsub.f32 0.0, %v2355
        %v2560 = vsub.f32 0.0, %v2357
        %v2561 = vsub.f32 0.0, %v2428
        %v2562 = vsub.f32 0.0, %v2430
        %v2563 = vsub.f32 0.0, %v2501
        %v2564 = vsub.f32 0.0, %v2503
        %v2565 = vsub.f32 0.0, %v2215
        %v2566 = vsub.f32 0.0, %v2217
        %v2567 = vsub.f32 0.0, %v2288
        %v2568 = vsub.f32 0.0, %v2290
        %v2569 = vsub.f32 0.0, %v2361
        %v2570 = vsub.f32 0.0, %v2363
        %v2571 = vsub.f32 0.0, %v2434
        %v2572 = vsub.f32 0.0, %v2436
        %v2573 = vsub.f32 0.0, %v2507
        %v2574 = vsub.f32 0.0, %v2509
        %v2575 = vsub.f32 0.0, %v2219
        %v2576 = vsub.f32 0.0, %v2221
        %v2577 = vsub.f32 0.0, %v2292
        %v2578 = vsub.f32 0.0, %v2294
        %v2579 = vsub.f32 0.0, %v2365
        %v2580 = vsub.f32 0.0, %v2367
        %v2581 = vsub.f32 0.0, %v2438
        %v2582 = vsub.f32 0.0, %v2440
        %v2583 = vsub.f32 0.0, %v2511
        %v2584 = vsub.f32 0.0, %v2513
        %v2585 = vsub.f32 0.0, %v2225
        %v2586 = vsub.f32 0.0, %v2227
        %v2587 = vsub.f32 0.0, %v2298
        %v2588 = vsub.f32 0.0, %v2300
        %v2589 = vsub.f32 0.0, %v2371
        %v2590 = vsub.f32 0.0, %v2373
        %v2591 = vsub.f32 0.0, %v2444
        %v2592 = vsub.f32 0.0, %v2446
        %v2593 = vsub.f32 0.0, %v2517
        %v2594 = vsub.f32 0.0, %v2519
        %v2595 = vsub.f32 0.0, %v2229
        %v2596 = vsub.f32 0.0, %v2231
        %v2597 = vsub.f32 0.0, %v2302
        %v2598 = vsub.f32 0.0, %v2304
        %v2599 = vsub.f32 0.0, %v2375
        %v2600 = vsub.f32 0.0, %v2377
        %v2601 = vsub.f32 0.0, %v2448
        %v2602 = vsub.f32 0.0, %v2450
        %v2603 = vsub.f32 0.0, %v2521
        %v2604 = vsub.f32 0.0, %v2523
        %v2605 = vmul.f32 %v2525, 1.442695
        %v2606 = vpow.pop %v2605
        %v2607 = vmul.f32 %v2526, 1.442695
        %v2608 = vpow.pop %v2607
        %v2609 = vmul.f32 %v2527, 1.442695
        %v2610 = vpow.pop %v2609
        %v2611 = vmul.f32 %v2528, 1.442695
        %v2612 = vpow.pop %v2611
        %v2613 = vmul.f32 %v2529, 1.442695
        %v2614 = vpow.pop %v2613
        %v2615 = vmul.f32 %v2530, 1.442695
        %v2616 = vpow.pop %v2615
        %v2617 = vmul.f32 %v2531, 1.442695
        %v2618 = vpow.pop %v2617
        %v2619 = vmul.f32 %v2532, 1.442695
        %v2620 = vpow.pop %v2619
        %v2621 = vmul.f32 %v2533, 1.442695
        %v2622 = vpow.pop %v2621
        %v2623 = vmul.f32 %v2534, 1.442695
        %v2624 = vpow.pop %v2623
        %v2625 = vmul.f32 %v2535, 1.442695
        %v2626 = vpow.pop %v2625
        %v2627 = vmul.f32 %v2536, 1.442695
        %v2628 = vpow.pop %v2627
        %v2629 = vmul.f32 %v2537, 1.442695
        %v2630 = vpow.pop %v2629
        %v2631 = vmul.f32 %v2538, 1.442695
        %v2632 = vpow.pop %v2631
        %v2633 = vmul.f32 %v2539, 1.442695
        %v2634 = vpow.pop %v2633
        %v2635 = vmul.f32 %v2540, 1.442695
        %v2636 = vpow.pop %v2635
        %v2637 = vmul.f32 %v2541, 1.442695
        %v2638 = vpow.pop %v2637
        %v2639 = vmul.f32 %v2542, 1.442695
        %v2640 = vpow.pop %v2639
        %v2641 = vmul.f32 %v2543, 1.442695
        %v2642 = vpow.pop %v2641
        %v2643 = vmul.f32 %v2544, 1.442695
        %v2644 = vpow.pop %v2643
        %v2645 = vmul.f32 %v2545, 1.442695
        %v2646 = vpow.pop %v2645
        %v2647 = vmul.f32 %v2546, 1.442695
        %v2648 = vpow.pop %v2647
        %v2649 = vmul.f32 %v2547, 1.442695
        %v2650 = vpow.pop %v2649
        %v2651 = vmul.f32 %v2548, 1.442695
        %v2652 = vpow.pop %v2651
        %v2653 = vmul.f32 %v2549, 1.442695
        %v2654 = vpow.pop %v2653
        %v2655 = vmul.f32 %v2550, 1.442695
        %v2656 = vpow.pop %v2655
        %v2657 = vmul.f32 %v2551, 1.442695
        %v2658 = vpow.pop %v2657
        %v2659 = vmul.f32 %v2552, 1.442695
        %v2660 = vpow.pop %v2659
        %v2661 = vmul.f32 %v2553, 1.442695
        %v2662 = vpow.pop %v2661
        %v2663 = vmul.f32 %v2554, 1.442695
        %v2664 = vpow.pop %v2663
        %v2665 = vmul.f32 %v2555, 1.442695
        %v2666 = vpow.pop %v2665
        %v2667 = vmul.f32 %v2556, 1.442695
        %v2668 = vpow.pop %v2667
        %v2669 = vmul.f32 %v2557, 1.442695
        %v2670 = vpow.pop %v2669
        %v2671 = vmul.f32 %v2558, 1.442695
        %v2672 = vpow.pop %v2671
        %v2673 = vmul.f32 %v2559, 1.442695
        %v2674 = vpow.pop %v2673
        %v2675 = vmul.f32 %v2560, 1.442695
        %v2676 = vpow.pop %v2675
        %v2677 = vmul.f32 %v2561, 1.442695
        %v2678 = vpow.pop %v2677
        %v2679 = vmul.f32 %v2562, 1.442695
        %v2680 = vpow.pop %v2679
        %v2681 = vmul.f32 %v2563, 1.442695
        %v2682 = vpow.pop %v2681
        %v2683 = vmul.f32 %v2564, 1.442695
        %v2684 = vpow.pop %v2683
        %v2685 = vmul.f32 %v2565, 1.442695
        %v2686 = vpow.pop %v2685
        %v2687 = vmul.f32 %v2566, 1.442695
        %v2688 = vpow.pop %v2687
        %v2689 = vmul.f32 %v2567, 1.442695
        %v2690 = vpow.pop %v2689
        %v2691 = vmul.f32 %v2568, 1.442695
        %v2692 = vpow.pop %v2691
        %v2693 = vmul.f32 %v2569, 1.442695
        %v2694 = vpow.pop %v2693
        %v2695 = vmul.f32 %v2570, 1.442695
        %v2696 = vpow.pop %v2695
        %v2697 = vmul.f32 %v2571, 1.442695
        %v2698 = vpow.pop %v2697
        %v2699 = vmul.f32 %v2572, 1.442695
        %v2700 = vpow.pop %v2699
        %v2701 = vmul.f32 %v2573, 1.442695
        %v2702 = vpow.pop %v2701
        %v2703 = vmul.f32 %v2574, 1.442695
        %v2704 = vpow.pop %v2703
        %v2705 = vmul.f32 %v2575, 1.442695
        %v2706 = vpow.pop %v2705
        %v2707 = vmul.f32 %v2576, 1.442695
        %v2708 = vpow.pop %v2707
        %v2709 = vmul.f32 %v2577, 1.442695
        %v2710 = vpow.pop %v2709
        %v2711 = vmul.f32 %v2578, 1.442695
        %v2712 = vpow.pop %v2711
        %v2713 = vmul.f32 %v2579, 1.442695
        %v2714 = vpow.pop %v2713
        %v2715 = vmul.f32 %v2580, 1.442695
        %v2716 = vpow.pop %v2715
        %v2717 = vmul.f32 %v2581, 1.442695
        %v2718 = vpow.pop %v2717
        %v2719 = vmul.f32 %v2582, 1.442695
        %v2720 = vpow.pop %v2719
        %v2721 = vmul.f32 %v2583, 1.442695
        %v2722 = vpow.pop %v2721
        %v2723 = vmul.f32 %v2584, 1.442695
        %v2724 = vpow.pop %v2723
        %v2725 = vmul.f32 %v2585, 1.442695
        %v2726 = vpow.pop %v2725
        %v2727 = vmul.f32 %v2586, 1.442695
        %v2728 = vpow.pop %v2727
        %v2729 = vmul.f32 %v2587, 1.442695
        %v2730 = vpow.pop %v2729
        %v2731 = vmul.f32 %v2588, 1.442695
        %v2732 = vpow.pop %v2731
        %v2733 = vmul.f32 %v2589, 1.442695
        %v2734 = vpow.pop %v2733
        %v2735 = vmul.f32 %v2590, 1.442695
        %v2736 = vpow.pop %v2735
        %v2737 = vmul.f32 %v2591, 1.442695
        %v2738 = vpow.pop %v2737
        %v2739 = vmul.f32 %v2592, 1.442695
        %v2740 = vpow.pop %v2739
        %v2741 = vmul.f32 %v2593, 1.442695
        %v2742 = vpow.pop %v2741
        %v2743 = vmul.f32 %v2594, 1.442695
        %v2744 = vpow.pop %v2743
        %v2745 = vmul.f32 %v2595, 1.442695
        %v2746 = vpow.pop %v2745
        %v2747 = vmul.f32 %v2596, 1.442695
        %v2748 = vpow.pop %v2747
        %v2749 = vmul.f32 %v2597, 1.442695
        %v2750 = vpow.pop %v2749
        %v2751 = vmul.f32 %v2598, 1.442695
        %v2752 = vpow.pop %v2751
        %v2753 = vmul.f32 %v2599, 1.442695
        %v2754 = vpow.pop %v2753
        %v2755 = vmul.f32 %v2600, 1.442695
        %v2756 = vpow.pop %v2755
        %v2757 = vmul.f32 %v2601, 1.442695
        %v2758 = vpow.pop %v2757
        %v2759 = vmul.f32 %v2602, 1.442695
        %v2760 = vpow.pop %v2759
        %v2761 = vmul.f32 %v2603, 1.442695
        %v2762 = vpow.pop %v2761
        %v2763 = vmul.f32 %v2604, 1.442695
        %v2764 = vpow.pop %v2763
        %v2765 = vadd.f32 %v2606, 1.0
        %v2766 = vadd.f32 %v2608, 1.0
        %v2767 = vadd.f32 %v2610, 1.0
        %v2768 = vadd.f32 %v2612, 1.0
        %v2769 = vadd.f32 %v2614, 1.0
        %v2770 = vadd.f32 %v2616, 1.0
        %v2771 = vadd.f32 %v2618, 1.0
        %v2772 = vadd.f32 %v2620, 1.0
        %v2773 = vadd.f32 %v2622, 1.0
        %v2774 = vadd.f32 %v2624, 1.0
        %v2775 = vadd.f32 %v2626, 1.0
        %v2776 = vadd.f32 %v2628, 1.0
        %v2777 = vadd.f32 %v2630, 1.0
        %v2778 = vadd.f32 %v2632, 1.0
        %v2779 = vadd.f32 %v2634, 1.0
        %v2780 = vadd.f32 %v2636, 1.0
        %v2781 = vadd.f32 %v2638, 1.0
        %v2782 = vadd.f32 %v2640, 1.0
        %v2783 = vadd.f32 %v2642, 1.0
        %v2784 = vadd.f32 %v2644, 1.0
        %v2785 = vadd.f32 %v2646, 1.0
        %v2786 = vadd.f32 %v2648, 1.0
        %v2787 = vadd.f32 %v2650, 1.0
        %v2788 = vadd.f32 %v2652, 1.0
        %v2789 = vadd.f32 %v2654, 1.0
        %v2790 = vadd.f32 %v2656, 1.0
        %v2791 = vadd.f32 %v2658, 1.0
        %v2792 = vadd.f32 %v2660, 1.0
        %v2793 = vadd.f32 %v2662, 1.0
        %v2794 = vadd.f32 %v2664, 1.0
        %v2795 = vadd.f32 %v2666, 1.0
        %v2796 = vadd.f32 %v2668, 1.0
        %v2797 = vadd.f32 %v2670, 1.0
        %v2798 = vadd.f32 %v2672, 1.0
        %v2799 = vadd.f32 %v2674, 1.0
        %v2800 = vadd.f32 %v2676, 1.0
        %v2801 = vadd.f32 %v2678, 1.0
        %v2802 = vadd.f32 %v2680, 1.0
        %v2803 = vadd.f32 %v2682, 1.0
        %v2804 = vadd.f32 %v2684, 1.0
        %v2805 = vadd.f32 %v2686, 1.0
        %v2806 = vadd.f32 %v2688, 1.0
        %v2807 = vadd.f32 %v2690, 1.0
        %v2808 = vadd.f32 %v2692, 1.0
        %v2809 = vadd.f32 %v2694, 1.0
        %v2810 = vadd.f32 %v2696, 1.0
        %v2811 = vadd.f32 %v2698, 1.0
        %v2812 = vadd.f32 %v2700, 1.0
        %v2813 = vadd.f32 %v2702, 1.0
        %v2814 = vadd.f32 %v2704, 1.0
        %v2815 = vadd.f32 %v2706, 1.0
        %v2816 = vadd.f32 %v2708, 1.0
        %v2817 = vadd.f32 %v2710, 1.0
        %v2818 = vadd.f32 %v2712, 1.0
        %v2819 = vadd.f32 %v2714, 1.0
        %v2820 = vadd.f32 %v2716, 1.0
        %v2821 = vadd.f32 %v2718, 1.0
        %v2822 = vadd.f32 %v2720, 1.0
        %v2823 = vadd.f32 %v2722, 1.0
        %v2824 = vadd.f32 %v2724, 1.0
        %v2825 = vadd.f32 %v2726, 1.0
        %v2826 = vadd.f32 %v2728, 1.0
        %v2827 = vadd.f32 %v2730, 1.0
        %v2828 = vadd.f32 %v2732, 1.0
        %v2829 = vadd.f32 %v2734, 1.0
        %v2830 = vadd.f32 %v2736, 1.0
        %v2831 = vadd.f32 %v2738, 1.0
        %v2832 = vadd.f32 %v2740, 1.0
        %v2833 = vadd.f32 %v2742, 1.0
        %v2834 = vadd.f32 %v2744, 1.0
        %v2835 = vadd.f32 %v2746, 1.0
        %v2836 = vadd.f32 %v2748, 1.0
        %v2837 = vadd.f32 %v2750, 1.0
        %v2838 = vadd.f32 %v2752, 1.0
        %v2839 = vadd.f32 %v2754, 1.0
        %v2840 = vadd.f32 %v2756, 1.0
        %v2841 = vadd.f32 %v2758, 1.0
        %v2842 = vadd.f32 %v2760, 1.0
        %v2843 = vadd.f32 %v2762, 1.0
        %v2844 = vadd.f32 %v2764, 1.0
        %v2845 = vrcp.pop %v2765
        %v2846 = vrcp.pop %v2766
        %v2847 = vrcp.pop %v2767
        %v2848 = vrcp.pop %v2768
        %v2849 = vrcp.pop %v2769
        %v2850 = vrcp.pop %v2770
        %v2851 = vrcp.pop %v2771
        %v2852 = vrcp.pop %v2772
        %v2853 = vrcp.pop %v2773
        %v2854 = vrcp.pop %v2774
        %v2855 = vrcp.pop %v2775
        %v2856 = vrcp.pop %v2776
        %v2857 = vrcp.pop %v2777
        %v2858 = vrcp.pop %v2778
        %v2859 = vrcp.pop %v2779
        %v2860 = vrcp.pop %v2780
        %v2861 = vrcp.pop %v2781
        %v2862 = vrcp.pop %v2782
        %v2863 = vrcp.pop %v2783
        %v2864 = vrcp.pop %v2784
        %v2865 = vrcp.pop %v2785
        %v2866 = vrcp.pop %v2786
        %v2867 = vrcp.pop %v2787
        %v2868 = vrcp.pop %v2788
        %v2869 = vrcp.pop %v2789
        %v2870 = vrcp.pop %v2790
        %v2871 = vrcp.pop %v2791
        %v2872 = vrcp.pop %v2792
        %v2873 = vrcp.pop %v2793
        %v2874 = vrcp.pop %v2794
        %v2875 = vrcp.pop %v2795
        %v2876 = vrcp.pop %v2796
        %v2877 = vrcp.pop %v2797
        %v2878 = vrcp.pop %v2798
        %v2879 = vrcp.pop %v2799
        %v2880 = vrcp.pop %v2800
        %v2881 = vrcp.pop %v2801
        %v2882 = vrcp.pop %v2802
        %v2883 = vrcp.pop %v2803
        %v2884 = vrcp.pop %v2804
        %v2885 = vrcp.pop %v2805
        %v2886 = vrcp.pop %v2806
        %v2887 = vrcp.pop %v2807
        %v2888 = vrcp.pop %v2808
        %v2889 = vrcp.pop %v2809
        %v2890 = vrcp.pop %v2810
        %v2891 = vrcp.pop %v2811
        %v2892 = vrcp.pop %v2812
        %v2893 = vrcp.pop %v2813
        %v2894 = vrcp.pop %v2814
        %v2895 = vrcp.pop %v2815
        %v2896 = vrcp.pop %v2816
        %v2897 = vrcp.pop %v2817
        %v2898 = vrcp.pop %v2818
        %v2899 = vrcp.pop %v2819
        %v2900 = vrcp.pop %v2820
        %v2901 = vrcp.pop %v2821
        %v2902 = vrcp.pop %v2822
        %v2903 = vrcp.pop %v2823
        %v2904 = vrcp.pop %v2824
        %v2905 = vrcp.pop %v2825
        %v2906 = vrcp.pop %v2826
        %v2907 = vrcp.pop %v2827
        %v2908 = vrcp.pop %v2828
        %v2909 = vrcp.pop %v2829
        %v2910 = vrcp.pop %v2830
        %v2911 = vrcp.pop %v2831
        %v2912 = vrcp.pop %v2832
        %v2913 = vrcp.pop %v2833
        %v2914 = vrcp.pop %v2834
        %v2915 = vrcp.pop %v2835
        %v2916 = vrcp.pop %v2836
        %v2917 = vrcp.pop %v2837
        %v2918 = vrcp.pop %v2838
        %v2919 = vrcp.pop %v2839
        %v2920 = vrcp.pop %v2840
        %v2921 = vrcp.pop %v2841
        %v2922 = vrcp.pop %v2842
        %v2923 = vrcp.pop %v2843
        %v2924 = vrcp.pop %v2844
        %v2925 = vmul.f32 %v2195, %v2845
        %v2926 = vmul.f32 %v2197, %v2846
        %v2927 = vmul.f32 %v2268, %v2847
        %v2928 = vmul.f32 %v2270, %v2848
        %v2929 = vmul.f32 %v2341, %v2849
        %v2930 = vmul.f32 %v2343, %v2850
        %v2931 = vmul.f32 %v2414, %v2851
        %v2932 = vmul.f32 %v2416, %v2852
        %v2933 = vmul.f32 %v2487, %v2853
        %v2934 = vmul.f32 %v2489, %v2854
        %v2935 = vmul.f32 %v2199, %v2855
        %v2936 = vmul.f32 %v2201, %v2856
        %v2937 = vmul.f32 %v2272, %v2857
        %v2938 = vmul.f32 %v2274, %v2858
        %v2939 = vmul.f32 %v2345, %v2859
        %v2940 = vmul.f32 %v2347, %v2860
        %v2941 = vmul.f32 %v2418, %v2861
        %v2942 = vmul.f32 %v2420, %v2862
        %v2943 = vmul.f32 %v2491, %v2863
        %v2944 = vmul.f32 %v2493, %v2864
        %v2945 = vmul.f32 %v2205, %v2865
        %v2946 = vmul.f32 %v2207, %v2866
        %v2947 = vmul.f32 %v2278, %v2867
        %v2948 = vmul.f32 %v2280, %v2868
        %v2949 = vmul.f32 %v2351, %v2869
        %v2950 = vmul.f32 %v2353, %v2870
        %v2951 = vmul.f32 %v2424, %v2871
        %v2952 = vmul.f32 %v2426, %v2872
        %v2953 = vmul.f32 %v2497, %v2873
        %v2954 = vmul.f32 %v2499, %v2874
        %v2955 = vmul.f32 %v2209, %v2875
        %v2956 = vmul.f32 %v2211, %v2876
        %v2957 = vmul.f32 %v2282, %v2877
        %v2958 = vmul.f32 %v2284, %v2878
        %v2959 = vmul.f32 %v2355, %v2879
        %v2960 = vmul.f32 %v2357, %v2880
        %v2961 = vmul.f32 %v2428, %v2881
        %v2962 = vmul.f32 %v2430, %v2882
        %v2963 = vmul.f32 %v2501, %v2883
        %v2964 = vmul.f32 %v2503, %v2884
        %v2965 = vmul.f32 %v2215, %v2885
        %v2966 = vmul.f32 %v2217, %v2886
        %v2967 = vmul.f32 %v2288, %v2887
        %v2968 = vmul.f32 %v2290, %v2888
        %v2969 = vmul.f32 %v2361, %v2889
        %v2970 = vmul.f32 %v2363, %v2890
        %v2971 = vmul.f32 %v2434, %v2891
        %v2972 = vmul.f32 %v2436, %v2892
        %v2973 = vmul.f32 %v2507, %v2893
        %v2974 = vmul.f32 %v2509, %v2894
        %v2975 = vmul.f32 %v2219, %v2895
        %v2976 = vmul.f32 %v2221, %v2896
        %v2977 = vmul.f32 %v2292, %v2897
        %v2978 = vmul.f32 %v2294, %v2898
        %v2979 = vmul.f32 %v2365, %v2899
        %v2980 = vmul.f32 %v2367, %v2900
        %v2981 = vmul.f32 %v2438, %v2901
        %v2982 = vmul.f32 %v2440, %v2902
        %v2983 = vmul.f32 %v2511, %v2903
        %v2984 = vmul.f32 %v2513, %v2904
        %v2985 = vmul.f32 %v2225, %v2905
        %v2986 = vmul.f32 %v2227, %v2906
        %v2987 = vmul.f32 %v2298, %v2907
        %v2988 = vmul.f32 %v2300, %v2908
        %v2989 = vmul.f32 %v2371, %v2909
        %v2990 = vmul.f32 %v2373, %v2910
        %v2991 = vmul.f32 %v2444, %v2911
        %v2992 = vmul.f32 %v2446, %v2912
        %v2993 = vmul.f32 %v2517, %v2913
        %v2994 = vmul.f32 %v2519, %v2914
        %v2995 = vmul.f32 %v2229, %v2915
        %v2996 = vmul.f32 %v2231, %v2916
        %v2997 = vmul.f32 %v2302, %v2917
        %v2998 = vmul.f32 %v2304, %v2918
        %v2999 = vmul.f32 %v2375, %v2919
        %v3000 = vmul.f32 %v2377, %v2920
        %v3001 = vmul.f32 %v2448, %v2921
        %v3002 = vmul.f32 %v2450, %v2922
        %v3003 = vmul.f32 %v2521, %v2923
        %v3004 = vmul.f32 %v2523, %v2924
        %v3005 = vadd.f32 %v2925, %v2935
        %v3006 = vadd.f32 %v3005, %v2945
        %v3007 = vadd.f32 %v3006, %v2955
        %v3008 = vadd.f32 %v3007, %v2965
        %v3009 = vadd.f32 %v3008, %v2975
        %v3010 = vadd.f32 %v3009, %v2985
        %v3011 = vadd.f32 %v3010, %v2995
        %v3012 = vrot.slane %v3011, 4
        %v3013 = vadd.f32 %v3011, %v3012
        %v3014 = vrot.slane %v3013, 2
        %v3015 = vadd.f32 %v3013, %v3014
        %v3016 = vrot.slane %v3015, 1
        %v3017 = vadd.f32 %v3015, %v3016
        %v3018 = vadd.f32 %v2926, %v2936
        %v3019 = vadd.f32 %v3018, %v2946
        %v3020 = vadd.f32 %v3019, %v2956
        %v3021 = vadd.f32 %v3020, %v2966
        %v3022 = vadd.f32 %v3021, %v2976
        %v3023 = vadd.f32 %v3022, %v2986
        %v3024 = vadd.f32 %v3023, %v2996
        %v3025 = vrot.slane %v3024, 4
        %v3026 = vadd.f32 %v3024, %v3025
        %v3027 = vrot.slane %v3026, 2
        %v3028 = vadd.f32 %v3026, %v3027
        %v3029 = vrot.slane %v3028, 1
        %v3030 = vadd.f32 %v3028, %v3029
        %v3031 = vadd.f32 %v2927, %v2937
        %v3032 = vadd.f32 %v3031, %v2947
        %v3033 = vadd.f32 %v3032, %v2957
        %v3034 = vadd.f32 %v3033, %v2967
        %v3035 = vadd.f32 %v3034, %v2977
        %v3036 = vadd.f32 %v3035, %v2987
        %v3037 = vadd.f32 %v3036, %v2997
        %v3038 = vrot.slane %v3037, 4
        %v3039 = vadd.f32 %v3037, %v3038
        %v3040 = vrot.slane %v3039, 2
        %v3041 = vadd.f32 %v3039, %v3040
        %v3042 = vrot.slane %v3041, 1
        %v3043 = vadd.f32 %v3041, %v3042
        %v3044 = vadd.f32 %v2928, %v2938
        %v3045 = vadd.f32 %v3044, %v2948
        %v3046 = vadd.f32 %v3045, %v2958
        %v3047 = vadd.f32 %v3046, %v2968
        %v3048 = vadd.f32 %v3047, %v2978
        %v3049 = vadd.f32 %v3048, %v2988
        %v3050 = vadd.f32 %v3049, %v2998
        %v3051 = vrot.slane %v3050, 4
        %v3052 = vadd.f32 %v3050, %v3051
        %v3053 = vrot.slane %v3052, 2
        %v3054 = vadd.f32 %v3052, %v3053
        %v3055 = vrot.slane %v3054, 1
        %v3056 = vadd.f32 %v3054, %v3055
        %v3057 = vadd.f32 %v2929, %v2939
        %v3058 = vadd.f32 %v3057, %v2949
        %v3059 = vadd.f32 %v3058, %v2959
        %v3060 = vadd.f32 %v3059, %v2969
        %v3061 = vadd.f32 %v3060, %v2979
        %v3062 = vadd.f32 %v3061, %v2989
        %v3063 = vadd.f32 %v3062, %v2999
        %v3064 = vrot.slane %v3063, 4
        %v3065 = vadd.f32 %v3063, %v3064
        %v3066 = vrot.slane %v3065, 2
        %v3067 = vadd.f32 %v3065, %v3066
        %v3068 = vrot.slane %v3067, 1
        %v3069 = vadd.f32 %v3067, %v3068
        %v3070 = vadd.f32 %v2930, %v2940
        %v3071 = vadd.f32 %v3070, %v2950
        %v3072 = vadd.f32 %v3071, %v2960
        %v3073 = vadd.f32 %v3072, %v2970
        %v3074 = vadd.f32 %v3073, %v2980
        %v3075 = vadd.f32 %v3074, %v2990
        %v3076 = vadd.f32 %v3075, %v3000
        %v3077 = vrot.slane %v3076, 4
        %v3078 = vadd.f32 %v3076, %v3077
        %v3079 = vrot.slane %v3078, 2
        %v3080 = vadd.f32 %v3078, %v3079
        %v3081 = vrot.slane %v3080, 1
        %v3082 = vadd.f32 %v3080, %v3081
        %v3083 = vadd.f32 %v2931, %v2941
        %v3084 = vadd.f32 %v3083, %v2951
        %v3085 = vadd.f32 %v3084, %v2961
        %v3086 = vadd.f32 %v3085, %v2971
        %v3087 = vadd.f32 %v3086, %v2981
        %v3088 = vadd.f32 %v3087, %v2991
        %v3089 = vadd.f32 %v3088, %v3001
        %v3090 = vrot.slane %v3089, 4
        %v3091 = vadd.f32 %v3089, %v3090
        %v3092 = vrot.slane %v3091, 2
        %v3093 = vadd.f32 %v3091, %v3092
        %v3094 = vrot.slane %v3093, 1
        %v3095 = vadd.f32 %v3093, %v3094
        %v3096 = vadd.f32 %v2932, %v2942
        %v3097 = vadd.f32 %v3096, %v2952
        %v3098 = vadd.f32 %v3097, %v2962
        %v3099 = vadd.f32 %v3098, %v2972
        %v3100 = vadd.f32 %v3099, %v2982
        %v3101 = vadd.f32 %v3100, %v2992
        %v3102 = vadd.f32 %v3101, %v3002
        %v3103 = vrot.slane %v3102, 4
        %v3104 = vadd.f32 %v3102, %v3103
        %v3105 = vrot.slane %v3104, 2
        %v3106 = vadd.f32 %v3104, %v3105
        %v3107 = vrot.slane %v3106, 1
        %v3108 = vadd.f32 %v3106, %v3107
        %v3109 = vadd.f32 %v2933, %v2943
        %v3110 = vadd.f32 %v3109, %v2953
        %v3111 = vadd.f32 %v3110, %v2963
        %v3112 = vadd.f32 %v3111, %v2973
        %v3113 = vadd.f32 %v3112, %v2983
        %v3114 = vadd.f32 %v3113, %v2993
        %v3115 = vadd.f32 %v3114, %v3003
        %v3116 = vrot.slane %v3115, 4
        %v3117 = vadd.f32 %v3115, %v3116
        %v3118 = vrot.slane %v3117, 2
        %v3119 = vadd.f32 %v3117, %v3118
        %v3120 = vrot.slane %v3119, 1
        %v3121 = vadd.f32 %v3119, %v3120
        %v3122 = vadd.f32 %v2934, %v2944
        %v3123 = vadd.f32 %v3122, %v2954
        %v3124 = vadd.f32 %v3123, %v2964
        %v3125 = vadd.f32 %v3124, %v2974
        %v3126 = vadd.f32 %v3125, %v2984
        %v3127 = vadd.f32 %v3126, %v2994
        %v3128 = vadd.f32 %v3127, %v3004
        %v3129 = vrot.slane %v3128, 4
        %v3130 = vadd.f32 %v3128, %v3129
        %v3131 = vrot.slane %v3130, 2
        %v3132 = vadd.f32 %v3130, %v3131
        %v3133 = vrot.slane %v3132, 1
        %v3134 = vadd.f32 %v3132, %v3133
        %v3135 = vmul.f32 %v3017, 0.015625
        %v3136 = vmul.f32 %v3030, 0.015625
        %v3137 = vmul.f32 %v3043, 0.015625
        %v3138 = vmul.f32 %v3056, 0.015625
        %v3139 = vmul.f32 %v3069, 0.015625
        %v3140 = vmul.f32 %v3082, 0.015625
        %v3141 = vmul.f32 %v3095, 0.015625
        %v3142 = vmul.f32 %v3108, 0.015625
        %v3143 = vmul.f32 %v3121, 0.015625
        %v3144 = vmul.f32 %v3134, 0.015625
        %v3145 = vmax.f32 %v3135, 0.0
        %v3146 = vmax.f32 %v3136, 0.0
        %v3147 = vmax.f32 %v3137, 0.0
        %v3148 = vmax.f32 %v3138, 0.0
        %v3149 = vmax.f32 %v3139, 0.0
        %v3150 = vmax.f32 %v3140, 0.0
        %v3151 = vmax.f32 %v3141, 0.0
        %v3152 = vmax.f32 %v3142, 0.0
        %v3153 = vmax.f32 %v3143, 0.0
        %v3154 = vmax.f32 %v3144, 0.0
        %v3155 = vld [vmem:[%s15] sm:$0xff]
        %v3156 = vld [vmem:[%s15 + $0x8] sm:$0xff]
        %v3157 = vld [vmem:[%s15 + $0x10] sm:$0xff]
        %v3158 = vld [vmem:[%s15 + $0x18] sm:$0xff]
        %v3159 = vld [vmem:[%s15 + $0x20] sm:$0xff]
        %v3160 = vld [vmem:[%s15 + $0x28] sm:$0xff]
        %v3161 = vld [vmem:[%s15 + $0x30] sm:$0xff]
        %v3162 = vld [vmem:[%s15 + $0x38] sm:$0xff]
        %v3163 = vld [vmem:[%s15 + $0x40] sm:$0xff]
        %v3164 = vld [vmem:[%s15 + $0x48] sm:$0xff]
        %v3165 = vld [vmem:[%s15 + $0x50] sm:$0xff]
        %v3166 = vld [vmem:[%s15 + $0x58] sm:$0xff]
        %v3167 = vld [vmem:[%s15 + $0x60] sm:$0xff]
        %v3168 = vld [vmem:[%s15 + $0x68] sm:$0xff]
        %v3169 = vld [vmem:[%s15 + $0x70] sm:$0xff]
        %v3170 = vld [vmem:[%s15 + $0x78] sm:$0xff]
        %v3171 = vld [vmem:[%s15 + $0x80] sm:$0xff]
        %v3172 = vld [vmem:[%s15 + $0x88] sm:$0xff]
        %v3173 = vld [vmem:[%s15 + $0x90] sm:$0xff]
        %v3174 = vld [vmem:[%s15 + $0x98] sm:$0xff]
        %v3175 = vld [vmem:[%s15 + $0xa0] sm:$0xff]
        %v3176 = vld [vmem:[%s15 + $0xa8] sm:$0xff]
        %v3177 = vld [vmem:[%s15 + $0xb0] sm:$0xff]
        %v3178 = vld [vmem:[%s15 + $0xb8] sm:$0xff]
        %v3179 = vld [vmem:[%s15 + $0xc0] sm:$0xff]
        %v3180 = vld [vmem:[%s15 + $0xc8] sm:$0xff]
        %v3181 = vld [vmem:[%s15 + $0xd0] sm:$0xff]
        %v3182 = vld [vmem:[%s15 + $0xd8] sm:$0xff]
        %v3183 = vld [vmem:[%s15 + $0xe0] sm:$0xff]
        %v3184 = vld [vmem:[%s15 + $0xe8] sm:$0xff]
        %v3185 = vld [vmem:[%s15 + $0xf0] sm:$0xff]
        %v3186 = vld [vmem:[%s15 + $0xf8] sm:$0xff]
        %v3187 = vld [vmem:[%s15 + $0x100] sm:$0xff]
        %v3188 = vld [vmem:[%s15 + $0x108] sm:$0xff]
        %v3189 = vld [vmem:[%s15 + $0x110] sm:$0xff]
        %v3190 = vld [vmem:[%s15 + $0x118] sm:$0xff]
        %v3191 = vld [vmem:[%s15 + $0x120] sm:$0xff]
        %v3192 = vld [vmem:[%s15 + $0x128] sm:$0xff]
        %v3193 = vld [vmem:[%s15 + $0x130] sm:$0xff]
        %v3194 = vld [vmem:[%s15 + $0x138] sm:$0xff]
        %v3195 = vld [vmem:[%s15 + $0x140] sm:$0xff]
        %v3196 = vld [vmem:[%s15 + $0x148] sm:$0xff]
        %v3197 = vld [vmem:[%s15 + $0x150] sm:$0xff]
        %v3198 = vld [vmem:[%s15 + $0x158] sm:$0xff]
        %v3199 = vld [vmem:[%s15 + $0x160] sm:$0xff]
        %v3200 = vld [vmem:[%s15 + $0x168] sm:$0xff]
        %v3201 = vld [vmem:[%s15 + $0x170] sm:$0xff]
        %v3202 = vld [vmem:[%s15 + $0x178] sm:$0xff]
        %v3203 = vld [vmem:[%s15 + $0x180] sm:$0xff]
        %v3204 = vld [vmem:[%s15 + $0x188] sm:$0xff]
        %v3205 = vld [vmem:[%s15 + $0x190] sm:$0xff]
        %v3206 = vld [vmem:[%s15 + $0x198] sm:$0xff]
        %v3207 = vld [vmem:[%s15 + $0x1a0] sm:$0xff]
        %v3208 = vld [vmem:[%s15 + $0x1a8] sm:$0xff]
        %v3209 = vld [vmem:[%s15 + $0x1b0] sm:$0xff]
        %v3210 = vld [vmem:[%s15 + $0x1b8] sm:$0xff]
        %v3211 = vld [vmem:[%s15 + $0x1c0] sm:$0xff]
        %v3212 = vld [vmem:[%s15 + $0x1c8] sm:$0xff]
        %v3213 = vld [vmem:[%s15 + $0x1d0] sm:$0xff]
        %v3214 = vld [vmem:[%s15 + $0x1d8] sm:$0xff]
        %v3215 = vld [vmem:[%s15 + $0x1e0] sm:$0xff]
        %v3216 = vld [vmem:[%s15 + $0x1e8] sm:$0xff]
        %v3217 = vld [vmem:[%s15 + $0x1f0] sm:$0xff]
        %v3218 = vld [vmem:[%s15 + $0x1f8] sm:$0xff]
        %v3219 = vld [vmem:[%s15 + $0x200] sm:$0xff]
        %v3220 = vld [vmem:[%s15 + $0x208] sm:$0xff]
        %v3221 = vld [vmem:[%s15 + $0x210] sm:$0xff]
        %v3222 = vld [vmem:[%s15 + $0x218] sm:$0xff]
        %v3223 = vld [vmem:[%s15 + $0x220] sm:$0xff]
        %v3224 = vld [vmem:[%s15 + $0x228] sm:$0xff]
        %v3225 = vld [vmem:[%s15 + $0x230] sm:$0xff]
        %v3226 = vld [vmem:[%s15 + $0x238] sm:$0xff]
        %v3227 = vld [vmem:[%s15 + $0x240] sm:$0xff]
        %v3228 = vld [vmem:[%s15 + $0x248] sm:$0xff]
        %v3229 = vld [vmem:[%s15 + $0x250] sm:$0xff]
        %v3230 = vld [vmem:[%s15 + $0x258] sm:$0xff]
        %v3231 = vld [vmem:[%s15 + $0x260] sm:$0xff]
        %v3232 = vld [vmem:[%s15 + $0x268] sm:$0xff]
        %v3233 = vld [vmem:[%s15 + $0x270] sm:$0xff]
        %v3234 = vld [vmem:[%s15 + $0x278] sm:$0xff]
        %v3235 = vld [vmem:[%s15 + $0x280] sm:$0xff]
        %v3236 = vld [vmem:[%s15 + $0x288] sm:$0xff]
        %v3237 = vld [vmem:[%s15 + $0x290] sm:$0xff]
        %v3238 = vld [vmem:[%s15 + $0x298] sm:$0xff]
        %v3239 = vld [vmem:[%s15 + $0x2a0] sm:$0xff]
        %v3240 = vld [vmem:[%s15 + $0x2a8] sm:$0xff]
        %v3241 = vld [vmem:[%s15 + $0x2b0] sm:$0xff]
        %v3242 = vld [vmem:[%s15 + $0x2b8] sm:$0xff]
        %v3243 = vld [vmem:[%s15 + $0x2c0] sm:$0xff]
        %v3244 = vld [vmem:[%s15 + $0x2c8] sm:$0xff]
        %v3245 = vld [vmem:[%s15 + $0x2d0] sm:$0xff]
        %v3246 = vld [vmem:[%s15 + $0x2d8] sm:$0xff]
        %v3247 = vld [vmem:[%s15 + $0x2e0] sm:$0xff]
        %v3248 = vld [vmem:[%s15 + $0x2e8] sm:$0xff]
        %v3249 = vld [vmem:[%s15 + $0x2f0] sm:$0xff]
        %v3250 = vld [vmem:[%s15 + $0x2f8] sm:$0xff]
        %v3251 = vld [vmem:[%s15 + $0x300] sm:$0xff]
        %v3252 = vld [vmem:[%s15 + $0x308] sm:$0xff]
        %v3253 = vld [vmem:[%s15 + $0x310] sm:$0xff]
        %v3254 = vld [vmem:[%s15 + $0x318] sm:$0xff]
        %v3255 = vld [vmem:[%s15 + $0x320] sm:$0xff]
        %v3256 = vld [vmem:[%s15 + $0x328] sm:$0xff]
        %v3257 = vld [vmem:[%s15 + $0x330] sm:$0xff]
        %v3258 = vld [vmem:[%s15 + $0x338] sm:$0xff]
        %v3259 = vld [vmem:[%s15 + $0x340] sm:$0xff]
        %v3260 = vld [vmem:[%s15 + $0x348] sm:$0xff]
        %v3261 = vld [vmem:[%s15 + $0x350] sm:$0xff]
        %v3262 = vld [vmem:[%s15 + $0x358] sm:$0xff]
        %v3263 = vld [vmem:[%s15 + $0x360] sm:$0xff]
        %v3264 = vld [vmem:[%s15 + $0x368] sm:$0xff]
        %v3265 = vld [vmem:[%s15 + $0x370] sm:$0xff]
        %v3266 = vld [vmem:[%s15 + $0x378] sm:$0xff]
        %v3267 = vld [vmem:[%s15 + $0x380] sm:$0xff]
        %v3268 = vld [vmem:[%s15 + $0x388] sm:$0xff]
        %v3269 = vld [vmem:[%s15 + $0x390] sm:$0xff]
        %v3270 = vld [vmem:[%s15 + $0x398] sm:$0xff]
        %v3271 = vld [vmem:[%s15 + $0x3a0] sm:$0xff]
        %v3272 = vld [vmem:[%s15 + $0x3a8] sm:$0xff]
        %v3273 = vld [vmem:[%s15 + $0x3b0] sm:$0xff]
        %v3274 = vld [vmem:[%s15 + $0x3b8] sm:$0xff]
        %v3275 = vld [vmem:[%s15 + $0x3c0] sm:$0xff]
        %v3276 = vld [vmem:[%s15 + $0x3c8] sm:$0xff]
        %v3277 = vld [vmem:[%s15 + $0x3d0] sm:$0xff]
        %v3278 = vld [vmem:[%s15 + $0x3d8] sm:$0xff]
        %v3279 = vld [vmem:[%s15 + $0x3e0] sm:$0xff]
        %v3280 = vld [vmem:[%s15 + $0x3e8] sm:$0xff]
        %v3281 = vld [vmem:[%s15 + $0x3f0] sm:$0xff]
        %v3282 = vld [vmem:[%s15 + $0x3f8] sm:$0xff]
        %v3283 = vld [vmem:[%s15 + $0x400] sm:$0xff]
        %v3284 = vld [vmem:[%s15 + $0x408] sm:$0xff]
        %v3285 = vld [vmem:[%s15 + $0x410] sm:$0xff]
        %v3286 = vld [vmem:[%s15 + $0x418] sm:$0xff]
        %v3287 = vld [vmem:[%s15 + $0x420] sm:$0xff]
        %v3288 = vld [vmem:[%s15 + $0x428] sm:$0xff]
        %v3289 = vld [vmem:[%s15 + $0x430] sm:$0xff]
        %v3290 = vld [vmem:[%s15 + $0x438] sm:$0xff]
        %v3291 = vld [vmem:[%s15 + $0x440] sm:$0xff]
        %v3292 = vld [vmem:[%s15 + $0x448] sm:$0xff]
        %v3293 = vld [vmem:[%s15 + $0x450] sm:$0xff]
        %v3294 = vld [vmem:[%s15 + $0x458] sm:$0xff]
        %v3295 = vld [vmem:[%s15 + $0x460] sm:$0xff]
        %v3296 = vld [vmem:[%s15 + $0x468] sm:$0xff]
        %v3297 = vld [vmem:[%s15 + $0x470] sm:$0xff]
        %v3298 = vld [vmem:[%s15 + $0x478] sm:$0xff]
        %v3299 = vld [vmem:[%s15 + $0x480] sm:$0xff]
        %v3300 = vld [vmem:[%s15 + $0x488] sm:$0xff]
        %v3301 = vld [vmem:[%s15 + $0x490] sm:$0xff]
        %v3302 = vld [vmem:[%s15 + $0x498] sm:$0xff]
        %v3303 = vld [vmem:[%s15 + $0x4a0] sm:$0xff]
        %v3304 = vld [vmem:[%s15 + $0x4a8] sm:$0xff]
        %v3305 = vld [vmem:[%s15 + $0x4b0] sm:$0xff]
        %v3306 = vld [vmem:[%s15 + $0x4b8] sm:$0xff]
        %v3307 = vld [vmem:[%s15 + $0x4c0] sm:$0xff]
        %v3308 = vld [vmem:[%s15 + $0x4c8] sm:$0xff]
        %v3309 = vld [vmem:[%s15 + $0x4d0] sm:$0xff]
        %v3310 = vld [vmem:[%s15 + $0x4d8] sm:$0xff]
        %v3311 = vld [vmem:[%s15 + $0x4e0] sm:$0xff]
        %v3312 = vld [vmem:[%s15 + $0x4e8] sm:$0xff]
        %v3313 = vld [vmem:[%s15 + $0x4f0] sm:$0xff]
        %v3314 = vld [vmem:[%s15 + $0x4f8] sm:$0xff]
        %v3315 = vld [vmem:[%s16] sm:$0x1]
        %3316 = vmatprep.subr.mxu0 0.0
        %3317 = vmatpush1.msra.mxu0 %v3170
        %3318 = vmatprep.subr.mxu0 0.0
        %3319 = vmatpush1.msra.mxu0 %v3169
        %3320 = vmatprep.subr.mxu0 0.0
        %3321 = vmatpush1.msra.mxu0 %v3168
        %3322 = vmatprep.subr.mxu0 0.0
        %3323 = vmatpush1.msra.mxu0 %v3167
        %3324 = vmatprep.subr.mxu0 0.0
        %3325 = vmatpush1.msra.mxu0 %v3166
        %3326 = vmatprep.subr.mxu0 0.0
        %3327 = vmatpush1.msra.mxu0 %v3165
        %3328 = vmatprep.subr.mxu0 0.0
        %3329 = vmatpush1.msra.mxu0 %v3164
        %3330 = vmatprep.subr.mxu0 0.0
        %3331 = vmatpush1.msra.mxu0 %v3163
        %3332 = vmatprep.subr.mxu0 0.0
        %3333 = vmatpush1.msra.mxu0 %v3162
        %3334 = vmatprep.subr.mxu0 0.0
        %3335 = vmatpush1.msra.mxu0 %v3161
        %3336 = vmatprep.subr.mxu0 0.0
        %3337 = vmatpush1.msra.mxu0 %v3160
        %3338 = vmatprep.subr.mxu0 0.0
        %3339 = vmatpush1.msra.mxu0 %v3159
        %3340 = vmatprep.subr.mxu0 0.0
        %3341 = vmatpush1.msra.mxu0 %v3158
        %3342 = vmatprep.subr.mxu0 0.0
        %3343 = vmatpush1.msra.mxu0 %v3157
        %3344 = vmatprep.subr.mxu0 0.0
        %3345 = vmatpush1.msra.mxu0 %v3156
        %3346 = vmatprep.subr.mxu0 0.0
        %3347 = vmatpush1.msra.mxu0 %v3155
        %3348 = vmatprep.subr.mxu0 0.0
        %3349 = vmatpush2.msra.mxu0 %v3186
        %3350 = vmatprep.subr.mxu0 0.0
        %3351 = vmatpush2.msra.mxu0 %v3185
        %3352 = vmatprep.subr.mxu0 0.0
        %3353 = vmatpush2.msra.mxu0 %v3184
        %3354 = vmatprep.subr.mxu0 0.0
        %3355 = vmatpush2.msra.mxu0 %v3183
        %3356 = vmatprep.subr.mxu0 0.0
        %3357 = vmatpush2.msra.mxu0 %v3182
        %3358 = vmatprep.subr.mxu0 0.0
        %3359 = vmatpush2.msra.mxu0 %v3181
        %3360 = vmatprep.subr.mxu0 0.0
        %3361 = vmatpush2.msra.mxu0 %v3180
        %3362 = vmatprep.subr.mxu0 0.0
        %3363 = vmatpush2.msra.mxu0 %v3179
        %3364 = vmatprep.subr.mxu0 0.0
        %3365 = vmatpush2.msra.mxu0 %v3178
        %3366 = vmatprep.subr.mxu0 0.0
        %3367 = vmatpush2.msra.mxu0 %v3177
        %3368 = vmatprep.subr.mxu0 0.0
        %3369 = vmatpush2.msra.mxu0 %v3176
        %3370 = vmatprep.subr.mxu0 0.0
        %3371 = vmatpush2.msra.mxu0 %v3175
        %3372 = vmatprep.subr.mxu0 0.0
        %3373 = vmatpush2.msra.mxu0 %v3174
        %3374 = vmatprep.subr.mxu0 0.0
        %3375 = vmatpush2.msra.mxu0 %v3173
        %3376 = vmatprep.subr.mxu0 0.0
        %3377 = vmatpush2.msra.mxu0 %v3172
        %3378 = vmatprep.subr.mxu0 0.0
        %3379 = vmatpush2.msra.mxu0 %v3171
        %3380 = vmatprep.mubr.f32.mxu0 %v3146
        %3381 = vmatmul.mubr.f32.gmra.mxu0 %v3145
        %v3382 = vpop.f32.mrf.mxu0
        %v3383 = vadd.f32 %v3315, %v3382
        %v3384 = vpop.f32.mrf.mxu0
        %3385 = vdwg.mxu0
        %3386 = vmatprep.subr.mxu0 0.0
        %3387 = vmatpush1.msra.mxu0 %v3202
        %3388 = vmatprep.subr.mxu0 0.0
        %3389 = vmatpush1.msra.mxu0 %v3201
        %3390 = vmatprep.subr.mxu0 0.0
        %3391 = vmatpush1.msra.mxu0 %v3200
        %3392 = vmatprep.subr.mxu0 0.0
        %3393 = vmatpush1.msra.mxu0 %v3199
        %3394 = vmatprep.subr.mxu0 0.0
        %3395 = vmatpush1.msra.mxu0 %v3198
        %3396 = vmatprep.subr.mxu0 0.0
        %3397 = vmatpush1.msra.mxu0 %v3197
        %3398 = vmatprep.subr.mxu0 0.0
        %3399 = vmatpush1.msra.mxu0 %v3196
        %3400 = vmatprep.subr.mxu0 0.0
        %3401 = vmatpush1.msra.mxu0 %v3195
        %3402 = vmatprep.subr.mxu0 0.0
        %3403 = vmatpush1.msra.mxu0 %v3194
        %3404 = vmatprep.subr.mxu0 0.0
        %3405 = vmatpush1.msra.mxu0 %v3193
        %3406 = vmatprep.subr.mxu0 0.0
        %3407 = vmatpush1.msra.mxu0 %v3192
        %3408 = vmatprep.subr.mxu0 0.0
        %3409 = vmatpush1.msra.mxu0 %v3191
        %3410 = vmatprep.subr.mxu0 0.0
        %3411 = vmatpush1.msra.mxu0 %v3190
        %3412 = vmatprep.subr.mxu0 0.0
        %3413 = vmatpush1.msra.mxu0 %v3189
        %3414 = vmatprep.subr.mxu0 0.0
        %3415 = vmatpush1.msra.mxu0 %v3188
        %3416 = vmatprep.subr.mxu0 0.0
        %3417 = vmatpush1.msra.mxu0 %v3187
        %3418 = vmatprep.subr.mxu0 0.0
        %3419 = vmatpush2.msra.mxu0 %v3218
        %3420 = vmatprep.subr.mxu0 0.0
        %3421 = vmatpush2.msra.mxu0 %v3217
        %3422 = vmatprep.subr.mxu0 0.0
        %3423 = vmatpush2.msra.mxu0 %v3216
        %3424 = vmatprep.subr.mxu0 0.0
        %3425 = vmatpush2.msra.mxu0 %v3215
        %3426 = vmatprep.subr.mxu0 0.0
        %3427 = vmatpush2.msra.mxu0 %v3214
        %3428 = vmatprep.subr.mxu0 0.0
        %3429 = vmatpush2.msra.mxu0 %v3213
        %3430 = vmatprep.subr.mxu0 0.0
        %3431 = vmatpush2.msra.mxu0 %v3212
        %3432 = vmatprep.subr.mxu0 0.0
        %3433 = vmatpush2.msra.mxu0 %v3211
        %3434 = vmatprep.subr.mxu0 0.0
        %3435 = vmatpush2.msra.mxu0 %v3210
        %3436 = vmatprep.subr.mxu0 0.0
        %3437 = vmatpush2.msra.mxu0 %v3209
        %3438 = vmatprep.subr.mxu0 0.0
        %3439 = vmatpush2.msra.mxu0 %v3208
        %3440 = vmatprep.subr.mxu0 0.0
        %3441 = vmatpush2.msra.mxu0 %v3207
        %3442 = vmatprep.subr.mxu0 0.0
        %3443 = vmatpush2.msra.mxu0 %v3206
        %3444 = vmatprep.subr.mxu0 0.0
        %3445 = vmatpush2.msra.mxu0 %v3205
        %3446 = vmatprep.subr.mxu0 0.0
        %3447 = vmatpush2.msra.mxu0 %v3204
        %3448 = vmatprep.subr.mxu0 0.0
        %3449 = vmatpush2.msra.mxu0 %v3203
        %3450 = vmatprep.mubr.f32.mxu0 %v3148
        %3451 = vmatmul.mubr.f32.gmra.mxu0 %v3147
        %v3452 = vpop.f32.mrf.mxu0
        %v3453 = vadd.f32 %v3383, %v3452
        %v3454 = vpop.f32.mrf.mxu0
        %3455 = vdwg.mxu0
        %3456 = vmatprep.subr.mxu0 0.0
        %3457 = vmatpush1.msra.mxu0 %v3234
        %3458 = vmatprep.subr.mxu0 0.0
        %3459 = vmatpush1.msra.mxu0 %v3233
        %3460 = vmatprep.subr.mxu0 0.0
        %3461 = vmatpush1.msra.mxu0 %v3232
        %3462 = vmatprep.subr.mxu0 0.0
        %3463 = vmatpush1.msra.mxu0 %v3231
        %3464 = vmatprep.subr.mxu0 0.0
        %3465 = vmatpush1.msra.mxu0 %v3230
        %3466 = vmatprep.subr.mxu0 0.0
        %3467 = vmatpush1.msra.mxu0 %v3229
        %3468 = vmatprep.subr.mxu0 0.0
        %3469 = vmatpush1.msra.mxu0 %v3228
        %3470 = vmatprep.subr.mxu0 0.0
        %3471 = vmatpush1.msra.mxu0 %v3227
        %3472 = vmatprep.subr.mxu0 0.0
        %3473 = vmatpush1.msra.mxu0 %v3226
        %3474 = vmatprep.subr.mxu0 0.0
        %3475 = vmatpush1.msra.mxu0 %v3225
        %3476 = vmatprep.subr.mxu0 0.0
        %3477 = vmatpush1.msra.mxu0 %v3224
        %3478 = vmatprep.subr.mxu0 0.0
        %3479 = vmatpush1.msra.mxu0 %v3223
        %3480 = vmatprep.subr.mxu0 0.0
        %3481 = vmatpush1.msra.mxu0 %v3222
        %3482 = vmatprep.subr.mxu0 0.0
        %3483 = vmatpush1.msra.mxu0 %v3221
        %3484 = vmatprep.subr.mxu0 0.0
        %3485 = vmatpush1.msra.mxu0 %v3220
        %3486 = vmatprep.subr.mxu0 0.0
        %3487 = vmatpush1.msra.mxu0 %v3219
        %3488 = vmatprep.subr.mxu0 0.0
        %3489 = vmatpush2.msra.mxu0 %v3250
        %3490 = vmatprep.subr.mxu0 0.0
        %3491 = vmatpush2.msra.mxu0 %v3249
        %3492 = vmatprep.subr.mxu0 0.0
        %3493 = vmatpush2.msra.mxu0 %v3248
        %3494 = vmatprep.subr.mxu0 0.0
        %3495 = vmatpush2.msra.mxu0 %v3247
        %3496 = vmatprep.subr.mxu0 0.0
        %3497 = vmatpush2.msra.mxu0 %v3246
        %3498 = vmatprep.subr.mxu0 0.0
        %3499 = vmatpush2.msra.mxu0 %v3245
        %3500 = vmatprep.subr.mxu0 0.0
        %3501 = vmatpush2.msra.mxu0 %v3244
        %3502 = vmatprep.subr.mxu0 0.0
        %3503 = vmatpush2.msra.mxu0 %v3243
        %3504 = vmatprep.subr.mxu0 0.0
        %3505 = vmatpush2.msra.mxu0 %v3242
        %3506 = vmatprep.subr.mxu0 0.0
        %3507 = vmatpush2.msra.mxu0 %v3241
        %3508 = vmatprep.subr.mxu0 0.0
        %3509 = vmatpush2.msra.mxu0 %v3240
        %3510 = vmatprep.subr.mxu0 0.0
        %3511 = vmatpush2.msra.mxu0 %v3239
        %3512 = vmatprep.subr.mxu0 0.0
        %3513 = vmatpush2.msra.mxu0 %v3238
        %3514 = vmatprep.subr.mxu0 0.0
        %3515 = vmatpush2.msra.mxu0 %v3237
        %3516 = vmatprep.subr.mxu0 0.0
        %3517 = vmatpush2.msra.mxu0 %v3236
        %3518 = vmatprep.subr.mxu0 0.0
        %3519 = vmatpush2.msra.mxu0 %v3235
        %3520 = vmatprep.mubr.f32.mxu0 %v3150
        %3521 = vmatmul.mubr.f32.gmra.mxu0 %v3149
        %v3522 = vpop.f32.mrf.mxu0
        %v3523 = vadd.f32 %v3453, %v3522
        %v3524 = vpop.f32.mrf.mxu0
        %3525 = vdwg.mxu0
        %3526 = vmatprep.subr.mxu0 0.0
        %3527 = vmatpush1.msra.mxu0 %v3266
        %3528 = vmatprep.subr.mxu0 0.0
        %3529 = vmatpush1.msra.mxu0 %v3265
        %3530 = vmatprep.subr.mxu0 0.0
        %3531 = vmatpush1.msra.mxu0 %v3264
        %3532 = vmatprep.subr.mxu0 0.0
        %3533 = vmatpush1.msra.mxu0 %v3263
        %3534 = vmatprep.subr.mxu0 0.0
        %3535 = vmatpush1.msra.mxu0 %v3262
        %3536 = vmatprep.subr.mxu0 0.0
        %3537 = vmatpush1.msra.mxu0 %v3261
        %3538 = vmatprep.subr.mxu0 0.0
        %3539 = vmatpush1.msra.mxu0 %v3260
        %3540 = vmatprep.subr.mxu0 0.0
        %3541 = vmatpush1.msra.mxu0 %v3259
        %3542 = vmatprep.subr.mxu0 0.0
        %3543 = vmatpush1.msra.mxu0 %v3258
        %3544 = vmatprep.subr.mxu0 0.0
        %3545 = vmatpush1.msra.mxu0 %v3257
        %3546 = vmatprep.subr.mxu0 0.0
        %3547 = vmatpush1.msra.mxu0 %v3256
        %3548 = vmatprep.subr.mxu0 0.0
        %3549 = vmatpush1.msra.mxu0 %v3255
        %3550 = vmatprep.subr.mxu0 0.0
        %3551 = vmatpush1.msra.mxu0 %v3254
        %3552 = vmatprep.subr.mxu0 0.0
        %3553 = vmatpush1.msra.mxu0 %v3253
        %3554 = vmatprep.subr.mxu0 0.0
        %3555 = vmatpush1.msra.mxu0 %v3252
        %3556 = vmatprep.subr.mxu0 0.0
        %3557 = vmatpush1.msra.mxu0 %v3251
        %3558 = vmatprep.subr.mxu0 0.0
        %3559 = vmatpush2.msra.mxu0 %v3282
        %3560 = vmatprep.subr.mxu0 0.0
        %3561 = vmatpush2.msra.mxu0 %v3281
        %3562 = vmatprep.subr.mxu0 0.0
        %3563 = vmatpush2.msra.mxu0 %v3280
        %3564 = vmatprep.subr.mxu0 0.0
        %3565 = vmatpush2.msra.mxu0 %v3279
        %3566 = vmatprep.subr.mxu0 0.0
        %3567 = vmatpush2.msra.mxu0 %v3278
        %3568 = vmatprep.subr.mxu0 0.0
        %3569 = vmatpush2.msra.mxu0 %v3277
        %3570 = vmatprep.subr.mxu0 0.0
        %3571 = vmatpush2.msra.mxu0 %v3276
        %3572 = vmatprep.subr.mxu0 0.0
        %3573 = vmatpush2.msra.mxu0 %v3275
        %3574 = vmatprep.subr.mxu0 0.0
        %3575 = vmatpush2.msra.mxu0 %v3274
        %3576 = vmatprep.subr.mxu0 0.0
        %3577 = vmatpush2.msra.mxu0 %v3273
        %3578 = vmatprep.subr.mxu0 0.0
        %3579 = vmatpush2.msra.mxu0 %v3272
        %3580 = vmatprep.subr.mxu0 0.0
        %3581 = vmatpush2.msra.mxu0 %v3271
        %3582 = vmatprep.subr.mxu0 0.0
        %3583 = vmatpush2.msra.mxu0 %v3270
        %3584 = vmatprep.subr.mxu0 0.0
        %3585 = vmatpush2.msra.mxu0 %v3269
        %3586 = vmatprep.subr.mxu0 0.0
        %3587 = vmatpush2.msra.mxu0 %v3268
        %3588 = vmatprep.subr.mxu0 0.0
        %3589 = vmatpush2.msra.mxu0 %v3267
        %3590 = vmatprep.mubr.f32.mxu0 %v3152
        %3591 = vmatmul.mubr.f32.gmra.mxu0 %v3151
        %v3592 = vpop.f32.mrf.mxu0
        %v3593 = vadd.f32 %v3523, %v3592
        %v3594 = vpop.f32.mrf.mxu0
        %3595 = vdwg.mxu0
        %3596 = vmatprep.subr.mxu0 0.0
        %3597 = vmatpush1.msra.mxu0 %v3298
        %3598 = vmatprep.subr.mxu0 0.0
        %3599 = vmatpush1.msra.mxu0 %v3297
        %3600 = vmatprep.subr.mxu0 0.0
        %3601 = vmatpush1.msra.mxu0 %v3296
        %3602 = vmatprep.subr.mxu0 0.0
        %3603 = vmatpush1.msra.mxu0 %v3295
        %3604 = vmatprep.subr.mxu0 0.0
        %3605 = vmatpush1.msra.mxu0 %v3294
        %3606 = vmatprep.subr.mxu0 0.0
        %3607 = vmatpush1.msra.mxu0 %v3293
        %3608 = vmatprep.subr.mxu0 0.0
        %3609 = vmatpush1.msra.mxu0 %v3292
        %3610 = vmatprep.subr.mxu0 0.0
        %3611 = vmatpush1.msra.mxu0 %v3291
        %3612 = vmatprep.subr.mxu0 0.0
        %3613 = vmatpush1.msra.mxu0 %v3290
        %3614 = vmatprep.subr.mxu0 0.0
        %3615 = vmatpush1.msra.mxu0 %v3289
        %3616 = vmatprep.subr.mxu0 0.0
        %3617 = vmatpush1.msra.mxu0 %v3288
        %3618 = vmatprep.subr.mxu0 0.0
        %3619 = vmatpush1.msra.mxu0 %v3287
        %3620 = vmatprep.subr.mxu0 0.0
        %3621 = vmatpush1.msra.mxu0 %v3286
        %3622 = vmatprep.subr.mxu0 0.0
        %3623 = vmatpush1.msra.mxu0 %v3285
        %3624 = vmatprep.subr.mxu0 0.0
        %3625 = vmatpush1.msra.mxu0 %v3284
        %3626 = vmatprep.subr.mxu0 0.0
        %3627 = vmatpush1.msra.mxu0 %v3283
        %3628 = vmatprep.subr.mxu0 0.0
        %3629 = vmatpush2.msra.mxu0 %v3314
        %3630 = vmatprep.subr.mxu0 0.0
        %3631 = vmatpush2.msra.mxu0 %v3313
        %3632 = vmatprep.subr.mxu0 0.0
        %3633 = vmatpush2.msra.mxu0 %v3312
        %3634 = vmatprep.subr.mxu0 0.0
        %3635 = vmatpush2.msra.mxu0 %v3311
        %3636 = vmatprep.subr.mxu0 0.0
        %3637 = vmatpush2.msra.mxu0 %v3310
        %3638 = vmatprep.subr.mxu0 0.0
        %3639 = vmatpush2.msra.mxu0 %v3309
        %3640 = vmatprep.subr.mxu0 0.0
        %3641 = vmatpush2.msra.mxu0 %v3308
        %3642 = vmatprep.subr.mxu0 0.0
        %3643 = vmatpush2.msra.mxu0 %v3307
        %3644 = vmatprep.subr.mxu0 0.0
        %3645 = vmatpush2.msra.mxu0 %v3306
        %3646 = vmatprep.subr.mxu0 0.0
        %3647 = vmatpush2.msra.mxu0 %v3305
        %3648 = vmatprep.subr.mxu0 0.0
        %3649 = vmatpush2.msra.mxu0 %v3304
        %3650 = vmatprep.subr.mxu0 0.0
        %3651 = vmatpush2.msra.mxu0 %v3303
        %3652 = vmatprep.subr.mxu0 0.0
        %3653 = vmatpush2.msra.mxu0 %v3302
        %3654 = vmatprep.subr.mxu0 0.0
        %3655 = vmatpush2.msra.mxu0 %v3301
        %3656 = vmatprep.subr.mxu0 0.0
        %3657 = vmatpush2.msra.mxu0 %v3300
        %3658 = vmatprep.subr.mxu0 0.0
        %3659 = vmatpush2.msra.mxu0 %v3299
        %3660 = vmatprep.mubr.f32.mxu0 %v3154
        %3661 = vmatmul.mubr.f32.gmra.mxu0 %v3153
        %v3662 = vpop.f32.mrf.mxu0
        %v3663 = vadd.f32 %v3593, %v3662
        %v3664 = vpop.f32.mrf.mxu0
        %3665 = vdwg.mxu0
        %vm3666 = vcmask 16384
        %3667 = vst.msk [vmem:[%s540] sm:$0x1] %vm3666, %v3663
        %s3668 = sand.u32 %s401, 1
        %s3669 = scalar_lea.sflag [#allocation3], %s3668
        %s3670 = sand.u32 %s401, 1
        %s3671 = scalar_lea.vmem [#allocation2], %s3670
        // Predicated region
        $region89: #{effnet_model_forward.1} parent=87 // pred_check
          %p3672 = pneg %p411
        $region90: #{effnet_model_forward.1} parent=87 // pred_check_branch
          %3674 = sbr.rel (%p3672) target = $region92
        $region91: #{effnet_model_forward.1} parent=87 // pred_region
          %s3676 = ssub.s32 16, 16
          %3677 = vsyncadd %s3669, %s3676
          %s3678 = smul.addr %s31, 16
          %s3679 = scalar_lea.hbm %s17, %s3678
          %s3681 = sshll.u32 %s3671, 4
          %s3682 = int_to_ptr.vmem [resolvable:$true] %s3681
          %3684 = dma.vmem_to_hbm [thread:$0]  %s3682, 16, %s3679, %s3669
        $region92: #{effnet_model_forward.1} parent=87 // pred_fallthru
          _
      $region88: #{effnet_model_forward.1} parent=5 // pred_fallthru
        _
      %p3685 = scmp.le.s32.totalorder 2, %s26
      // Predicated region
      $region93: #{effnet_model_forward.1} parent=5 // pred_check
        %p3686 = pneg %p3685
      $region94: #{effnet_model_forward.1} parent=5 // pred_check_branch
        %3688 = sbr.rel (%p3686) target = $region96
      $region95: #{effnet_model_forward.1} parent=5 // pred_region
        %s3689 = ssub.s32 %s26, 2
        // Predicated region
        $region97: #{effnet_model_forward.1} parent=95 // pred_check
          %p3690 = pneg %p417
        $region98: #{effnet_model_forward.1} parent=95 // pred_check_branch
          %3692 = sbr.rel (%p3690) target = $region100
        $region99: #{effnet_model_forward.1} parent=95 // pred_region
          %s3693 = sand.u32 %s402, 1
          %s3694 = scalar_lea.sflag [#allocation3], %s3693
          %s3695 = sand.u32 %s402, 1
          %s3696 = scalar_lea.vmem [#allocation2], %s3695
          %3697 = dma.done %s3694, 16
        $region100: #{effnet_model_forward.1} parent=95 // pred_fallthru
          _
      $region96: #{effnet_model_forward.1} parent=5 // pred_fallthru
        _
    $region6: #{effnet_model_forward.1} parent=1 // loop_footer
      %s30 = sadd.s32 1, %s26
    $region7: #{effnet_model_forward.1} parent=1 // loop_footer_branch
      %25 = sbr.rel target = $region3
    $region8: #{effnet_model_forward.1} parent=1 // loop_exit
      _
    %3698 = vsyncpa [#allocation3], 1
    %s3699 = scalar_lea.sflag [#allocation3], 1
    %3700 = vsyncpa %s3699, 1

</llo_original>
